<compile_context>
chip_gen: v7x
topology: tpu7x:2x2x1
jax: 0.10.0
libtpu: 0.0.40
codegen_flags: <defaults>
</compile_context>

<pallas_src>
import functools

import jax
import jax.numpy as jnp
from jax.experimental import pallas as pl
from jax.experimental.pallas import tpu as pltpu


def basic_block_kernel(xp_ref, w1_ref, b1_ref, w2_ref, b2_ref, out_ref,
                       mid_ref, *, valid_w):
    # xp_ref : (b, H+2, Ws, Cp) bf16  image at [:, 1:H+1, 0:W, :C], zeros elsewhere
    # w*_ref : (3*Cp, 3*Cp)     bf16  [dy*Cp + ci, dx*Cp + co], BN scale folded in
    # b*_ref : (1, Cp)          f32   folded BN bias
    # out_ref: (b, H, Ws, Cp)   bf16  valid at [:, :, 0:W, :C]
    # mid_ref: (b, H+2, Ws, Cp) bf16  scratch holding the padded conv1 activation
    b, hp, ws, cp = xp_ref.shape
    h = hp - 2
    m = b * h * ws
    k = 3 * cp

    def conv3x3(src_ref, w_ref):
        # K-fused 3x3 conv over full padded rows:
        #   ypack[., dy*cp+ci] = src[row+dy, col, ci]   (dy fused into K, lane-dense)
        #   res[.,  dx*cp+co]  = one MXU matmul; all 9 taps accumulate in the MXU.
        # Output column w needs the dx tap at column w+dx-1, so the dx=0 / dx=2
        # blocks are shifted by +/-1 flat row on the XLU; the zero columns
        # >= valid_w and zero halo rows make every wrapped element an exact 0.
        ypack = jnp.concatenate(
            [src_ref[:, dy:dy + h, :, :] for dy in range(3)], axis=-1
        ).reshape(m, k)
        res = jnp.dot(ypack, w_ref[...], preferred_element_type=jnp.float32)
        r0 = res[:, 0:cp]             # dx = 0 tap
        r1 = res[:, cp:2 * cp]        # dx = 1 tap (aligned)
        r2 = res[:, 2 * cp:3 * cp]    # dx = 2 tap
        return pltpu.roll(r0, 1, axis=0) + r1 + pltpu.roll(r2, m - 1, axis=0)

    # ---- conv1 + folded BN1 + ReLU ------------------------------------------
    a1 = jnp.maximum(conv3x3(xp_ref, w1_ref) + b1_ref[...], 0.0)

    # Stage the activation into the padded scratch for conv2.  Columns >= W are
    # masked back to zero so the scratch keeps an exact zero right/wrap halo;
    # the two halo rows are re-zeroed every step (cheap narrow stores, and safe
    # under a megacore split where each core owns its own scratch instance).
    col = jax.lax.broadcasted_iota(jnp.int32, (b, h, ws, cp), 2)
    a1 = jnp.where(col < valid_w, a1.reshape(b, h, ws, cp), 0.0)
    zero_row = jnp.zeros((b, 1, ws, cp), mid_ref.dtype)
    mid_ref[:, 0:1, :, :] = zero_row
    mid_ref[:, hp - 1:hp, :, :] = zero_row
    mid_ref[:, 1:1 + h, :, :] = a1.astype(mid_ref.dtype)

    # ---- conv2 + folded BN2 + residual + ReLU --------------------------------
    # Residual recovered from the interior of the bf16 padded input (no extra
    # f32 residual stream from HBM; padded columns/channels are zero there).
    identity = xp_ref[:, 1:1 + h, :, :].astype(jnp.float32).reshape(m, cp)
    o2 = conv3x3(mid_ref, w2_ref) + b2_ref[...] + identity
    out_ref[...] = jnp.maximum(o2, 0.0).reshape(b, h, ws, cp).astype(out_ref.dtype)


def _pick_images_per_block(n, h, ws):
    """Images per grid step: amortize per-step overhead for small feature maps
    while keeping >= 2 grid steps when possible (v7x megacore)."""
    target_rows = 1024                                 # ~matmul rows per step
    max_b = max(1, target_rows // max(1, h * ws))
    if n >= 2:
        max_b = min(max_b, max(1, n // 2))             # leave work for 2 cores
    best = 1
    for d in range(1, min(max_b, n) + 1):
        if n % d == 0:
            best = d
    return best


def basic_block_forward(x_nchw, w1, bn1, w2, bn2, eps=1e-5):
    """x_nchw: (N, C, H, W); w1/w2: (C, C, 3, 3) OIHW;
    bn* = (gamma, beta, running_mean, running_var), each (C,), eval mode."""
    N, Cin, H, W = x_nchw.shape
    Cout = w1.shape[0]
    if not (Cin == Cout == w1.shape[1] == w2.shape[0] == w2.shape[1]):
        raise ValueError("This kernel implements the stride=1 / no-downsample "
                         "BasicBlock, which requires inplanes == planes.")
    # TODO(synk): stride>1 / downsample projection branch not implemented.

    Cp = max(128, ((Cout + 127) // 128) * 128)   # lane-dense channel padding
    Ws = ((W + 1 + 7) // 8) * 8                  # >=1 zero column, sublane-aligned
    Hp = H + 2

    # NCHW -> NHWC bf16; zero halo rows, zero columns [W, Ws), channels -> Cp.
    x = jnp.transpose(x_nchw, (0, 2, 3, 1)).astype(jnp.bfloat16)
    xp = jnp.pad(x, ((0, 0), (1, 1), (0, Ws - W), (0, Cp - Cin)))

    # Fold eval-mode BN: scale goes into the weights, only the bias is added
    # inside the kernel (padded channels: zero weights, zero bias).
    def fold(bn):
        g, beta, mean, var = bn
        s = (g / jnp.sqrt(var + eps)).astype(jnp.float32)
        bias = (beta - mean * s).astype(jnp.float32)
        return s, jnp.pad(bias, (0, Cp - Cout)).reshape(1, Cp)

    s1, b1 = fold(bn1)
    s2, b2 = fold(bn2)

    # OIHW -> (3*Cp, 3*Cp) slab: row = dy*Cp + ci, col = dx*Cp + co.
    def prep_w(w, s):
        t = jnp.transpose(w.astype(jnp.float32) * s[:, None, None, None],
                          (2, 1, 3, 0))                        # (dy, ci, dx, co)
        t = jnp.pad(t, ((0, 0), (0, Cp - Cin), (0, 0), (0, Cp - Cout)))
        return t.reshape(3 * Cp, 3 * Cp).astype(jnp.bfloat16)

    w1f, w2f = prep_w(w1, s1), prep_w(w2, s2)

    b = _pick_images_per_block(N, H, Ws)
    grid = (N // b,)
    m_rows = b * H * Ws

    # VMEM budget: double-buffered in/out blocks + resident weight slabs +
    # scratch + matmul temporaries, with headroom, capped by this generation's
    # physical VMEM (no hard 64 MiB cap).
    bf16, f32 = 2, 4
    block_bytes = (
        2 * b * Hp * Ws * Cp * bf16            # input blocks (double-buffered)
        + 2 * b * H * Ws * Cp * bf16           # output blocks (double-buffered)
        + 2 * 2 * (3 * Cp) * (3 * Cp) * bf16   # w1 + w2 slabs (small at Cp=128)
        + 4 * 2 * Cp * f32                     # biases
        + b * Hp * Ws * Cp * bf16              # mid scratch
        + m_rows * 3 * Cp * (bf16 + f32)       # ypack + matmul result
        + 4 * m_rows * Cp * f32                # dx blocks / accumulation temps
    )
    try:
        vmem_cap = pltpu.get_tpu_info().vmem_capacity_bytes
    except Exception:
        vmem_cap = 64 * 1024 * 1024
    vmem_limit = int(min(max(int(1.5 * block_bytes), 16 * 1024 * 1024),
                         int(0.85 * vmem_cap)))

    out = pl.pallas_call(
        functools.partial(basic_block_kernel, valid_w=W),
        out_shape=jax.ShapeDtypeStruct((N, H, Ws, Cp), jnp.bfloat16),
        grid=grid,
        in_specs=[
            pl.BlockSpec((b, Hp, Ws, Cp), lambda n: (n, 0, 0, 0)),    # input
            pl.BlockSpec((3 * Cp, 3 * Cp), lambda n: (0, 0)),         # w1 (resident)
            pl.BlockSpec((1, Cp), lambda n: (0, 0)),                  # b1
            pl.BlockSpec((3 * Cp, 3 * Cp), lambda n: (0, 0)),         # w2 (resident)
            pl.BlockSpec((1, Cp), lambda n: (0, 0)),                  # b2
        ],
        out_specs=pl.BlockSpec((b, H, Ws, Cp), lambda n: (n, 0, 0, 0)),
        scratch_shapes=[pltpu.VMEM((b, Hp, Ws, Cp), jnp.bfloat16)],   # conv1 act
        compiler_params=pltpu.CompilerParams(
            dimension_semantics=("parallel",),
            vmem_limit_bytes=vmem_limit),
    )(xp, w1f, b1, w2f, b2)

    # Module contract is NCHW: one cheap bf16 slice+transpose epilogue (half the
    # bytes of an f32 epilogue).  NHWC consumers can use `out` directly.
    return jnp.transpose(out[:, :, :W, :Cout], (0, 3, 1, 2)).astype(x_nchw.dtype)


def _reference_forward(x, w1, bn1, w2, bn2, eps=1e-5):
    """Pure-JAX f32 reference of BasicBlock (eval-mode BN) in NCHW."""
    def conv(x, w):
        return jax.lax.conv_general_dilated(
            x, w, window_strides=(1, 1), padding=((1, 1), (1, 1)),
            dimension_numbers=("NCHW", "OIHW", "NCHW"))

    def bn(x, p):
        g, b, m, v = p
        c = lambda a: a[None, :, None, None]
        return (x - c(m)) / jnp.sqrt(c(v) + eps) * c(g) + c(b)

    out = jax.nn.relu(bn(conv(x, w1), bn1))
    out = bn(conv(out, w2), bn2)
    return jax.nn.relu(out + x)


if __name__ == "__main__":
    # Small deterministic config: inplanes = planes = 4, stride = 1, no downsample.
    N, C, H, W = 2, 4, 16, 16
    key = jax.random.PRNGKey(0)
    ks = jax.random.split(key, 9)

    def bf16_round(a):
        # Keep test inputs bf16-representable so the pure-f32 reference isolates
        # the kernel's extra rounding (bf16 intermediate/output, folded weights).
        return a.astype(jnp.bfloat16).astype(jnp.float32)

    x = bf16_round(jax.random.normal(ks[0], (N, C, H, W), jnp.float32))
    w1 = bf16_round(jax.random.normal(ks[1], (C, C, 3, 3), jnp.float32) * 0.2)
    w2 = bf16_round(jax.random.normal(ks[2], (C, C, 3, 3), jnp.float32) * 0.2)
    bn1 = (jax.random.normal(ks[3], (C,)) * 0.1 + 1.0,    # gamma
           jax.random.normal(ks[4], (C,)) * 0.1,           # beta
           jax.random.normal(ks[5], (C,)) * 0.1,           # running_mean
           jnp.abs(jax.random.normal(ks[6], (C,))) + 0.5)  # running_var
    bn2 = (jax.random.normal(ks[7], (C,)) * 0.1 + 1.0,
           jax.random.normal(ks[8], (C,)) * 0.1,
           jnp.zeros((C,), jnp.float32),
           jnp.ones((C,), jnp.float32))

    out = jax.block_until_ready(basic_block_forward(x, w1, bn1, w2, bn2))
    ref = _reference_forward(x, w1, bn1, w2, bn2)

    assert out.shape == (N, C, H, W), out.shape
    # bf16 MXU inputs / bf16 intermediate & output (f32 accumulation) vs f32 ref.
    assert jnp.allclose(out, ref, atol=3e-2, rtol=3e-2), (
        float(jnp.max(jnp.abs(out - ref))))

    print("KERNEL_OK")
</pallas_src>

<mosaic_0001>
module attributes {stable_mosaic.version = 11 : i64} {
  func.func @basic_block_kernel(%arg0: i32, %arg1: memref<1x18x24x128xbf16, #tpu.memory_space<vmem>>, %arg2: memref<384x384xbf16, #tpu.memory_space<vmem>>, %arg3: memref<1x128xf32, #tpu.memory_space<vmem>>, %arg4: memref<384x384xbf16, #tpu.memory_space<vmem>>, %arg5: memref<1x128xf32, #tpu.memory_space<vmem>>, %arg6: memref<1x16x24x128xbf16, #tpu.memory_space<vmem>>, %arg7: memref<1x18x24x128xbf16, #tpu.memory_space<vmem>>) attributes {dimension_semantics = [#tpu.dimension_semantics<parallel>], iteration_bounds = array<i64: 2>, scalar_prefetch = 0 : i64, scratch_operands = 1 : i64, tpu.core_type = #tpu.core_type<tc>, window_params = [{transform_indices = @transform_0, window_bounds = array<i64: 1, 18, 24, 128>}, {pipeline_mode = #tpu.pipeline_mode<synchronous>, transform_indices = @transform_1, window_bounds = array<i64: 384, 384>}, {pipeline_mode = #tpu.pipeline_mode<synchronous>, transform_indices = @transform_2, window_bounds = array<i64: 1, 128>}, {pipeline_mode = #tpu.pipeline_mode<synchronous>, transform_indices = @transform_3, window_bounds = array<i64: 384, 384>}, {pipeline_mode = #tpu.pipeline_mode<synchronous>, transform_indices = @transform_4, window_bounds = array<i64: 1, 128>}, {transform_indices = @transform_5, window_bounds = array<i64: 1, 16, 24, 128>}]} {
    %c0 = arith.constant 0 : index
    %c0_0 = arith.constant 0 : index
    %c0_1 = arith.constant 0 : index
    %c0_2 = arith.constant 0 : index
    %0 = vector.load %arg1[%c0, %c0_0, %c0_1, %c0_2] : memref<1x18x24x128xbf16, #tpu.memory_space<vmem>>, vector<1x16x24x128xbf16>
    %c0_3 = arith.constant 0 : index
    %c1 = arith.constant 1 : index
    %c0_4 = arith.constant 0 : index
    %c0_5 = arith.constant 0 : index
    %1 = vector.load %arg1[%c0_3, %c1, %c0_4, %c0_5] : memref<1x18x24x128xbf16, #tpu.memory_space<vmem>>, vector<1x16x24x128xbf16>
    %c0_6 = arith.constant 0 : index
    %c2 = arith.constant 2 : index
    %c0_7 = arith.constant 0 : index
    %c0_8 = arith.constant 0 : index
    %2 = vector.load %arg1[%c0_6, %c2, %c0_7, %c0_8] : memref<1x18x24x128xbf16, #tpu.memory_space<vmem>>, vector<1x16x24x128xbf16>
    %3 = tpu.concatenate %0, %1, %2 in 3 : vector<1x16x24x128xbf16>, vector<1x16x24x128xbf16>, vector<1x16x24x128xbf16> -> vector<1x16x24x384xbf16>
    %4 = vector.shape_cast %3 : vector<1x16x24x384xbf16> to vector<384x384xbf16>
    %c0_9 = arith.constant 0 : index
    %c0_10 = arith.constant 0 : index
    %5 = vector.load %arg2[%c0_9, %c0_10] : memref<384x384xbf16, #tpu.memory_space<vmem>>, vector<384x384xbf16>
    %cst = arith.constant dense<0.000000e+00> : vector<384x384xf32>
    %6 = tpu.matmul %4, %5, %cst {dimension_numbers = #tpu.dot_dimension_numbers<[1], [0], [0], [1], [0, 0, 1, 1], [], []>} : vector<384x384xbf16>, vector<384x384xbf16>, vector<384x384xf32> -> vector<384x384xf32>
    %7 = vector.extract_strided_slice %6 {offsets = [0, 0], sizes = [384, 128], strides = [1, 1]} : vector<384x384xf32> to vector<384x128xf32>
    %8 = vector.extract_strided_slice %6 {offsets = [0, 128], sizes = [384, 128], strides = [1, 1]} : vector<384x384xf32> to vector<384x128xf32>
    %9 = vector.extract_strided_slice %6 {offsets = [0, 256], sizes = [384, 128], strides = [1, 1]} : vector<384x384xf32> to vector<384x128xf32>
    %c1_i32 = arith.constant 1 : i32
    %10 = tpu.dynamic_rotate %7 by %c1_i32 dim 0 : vector<384x128xf32>, i32 -> vector<384x128xf32>
    %11 = arith.addf %10, %8 : vector<384x128xf32>
    %c383_i32 = arith.constant 383 : i32
    %12 = tpu.dynamic_rotate %9 by %c383_i32 dim 0 : vector<384x128xf32>, i32 -> vector<384x128xf32>
    %13 = arith.addf %11, %12 : vector<384x128xf32>
    %c0_11 = arith.constant 0 : index
    %c0_12 = arith.constant 0 : index
    %14 = vector.load %arg3[%c0_11, %c0_12] : memref<1x128xf32, #tpu.memory_space<vmem>>, vector<1x128xf32>
    %15 = vector.broadcast %14 : vector<1x128xf32> to vector<384x128xf32>
    %16 = arith.addf %13, %15 : vector<384x128xf32>
    %cst_13 = arith.constant 0.000000e+00 : f32
    %17 = vector.broadcast %cst_13 : f32 to vector<384x128xf32>
    %18 = arith.maximumf %16, %17 : vector<384x128xf32>
    %19 = tpu.iota {dimensions = array<i32: 2>} : vector<1x16x24x128xi32>
    %c16_i32 = arith.constant 16 : i32
    %20 = vector.broadcast %c16_i32 : i32 to vector<1x16x24x128xi32>
    %21 = arith.cmpi slt, %19, %20 : vector<1x16x24x128xi32>
    %22 = vector.shape_cast %18 : vector<384x128xf32> to vector<1x16x24x128xf32>
    %cst_14 = arith.constant 0.000000e+00 : f32
    %23 = vector.broadcast %cst_14 : f32 to vector<1x16x24x128xf32>
    %24 = arith.select %21, %22, %23 : vector<1x16x24x128xi1>, vector<1x16x24x128xf32>
    %cst_15 = arith.constant 0.000000e+00 : bf16
    %25 = vector.broadcast %cst_15 : bf16 to vector<1x1x24x128xbf16>
    %c0_16 = arith.constant 0 : index
    %c0_17 = arith.constant 0 : index
    %c0_18 = arith.constant 0 : index
    %c0_19 = arith.constant 0 : index
    %26 = vector.load %arg7[%c0_16, %c0_17, %c0_18, %c0_19] : memref<1x18x24x128xbf16, #tpu.memory_space<vmem>>, vector<1x1x24x128xbf16>
    tpu.vector_store %arg7[%c0_16, %c0_17, %c0_18, %c0_19], %25 {strides = array<i32>} : memref<1x18x24x128xbf16, #tpu.memory_space<vmem>>, vector<1x1x24x128xbf16>,
    %c0_20 = arith.constant 0 : index
    %c17 = arith.constant 17 : index
    %c0_21 = arith.constant 0 : index
    %c0_22 = arith.constant 0 : index
    %27 = vector.load %arg7[%c0_20, %c17, %c0_21, %c0_22] : memref<1x18x24x128xbf16, #tpu.memory_space<vmem>>, vector<1x1x24x128xbf16>
    tpu.vector_store %arg7[%c0_20, %c17, %c0_21, %c0_22], %25 {strides = array<i32>} : memref<1x18x24x128xbf16, #tpu.memory_space<vmem>>, vector<1x1x24x128xbf16>,
    %28 = arith.truncf %24 : vector<1x16x24x128xf32> to vector<1x16x24x128xbf16>
    %c0_23 = arith.constant 0 : index
    %c1_24 = arith.constant 1 : index
    %c0_25 = arith.constant 0 : index
    %c0_26 = arith.constant 0 : index
    %29 = vector.load %arg7[%c0_23, %c1_24, %c0_25, %c0_26] : memref<1x18x24x128xbf16, #tpu.memory_space<vmem>>, vector<1x16x24x128xbf16>
    tpu.vector_store %arg7[%c0_23, %c1_24, %c0_25, %c0_26], %28 {strides = array<i32>} : memref<1x18x24x128xbf16, #tpu.memory_space<vmem>>, vector<1x16x24x128xbf16>,
    %c0_27 = arith.constant 0 : index
    %c1_28 = arith.constant 1 : index
    %c0_29 = arith.constant 0 : index
    %c0_30 = arith.constant 0 : index
    %30 = vector.load %arg1[%c0_27, %c1_28, %c0_29, %c0_30] : memref<1x18x24x128xbf16, #tpu.memory_space<vmem>>, vector<1x16x24x128xbf16>
    %31 = arith.extf %30 : vector<1x16x24x128xbf16> to vector<1x16x24x128xf32>
    %32 = vector.shape_cast %31 : vector<1x16x24x128xf32> to vector<384x128xf32>
    %c0_31 = arith.constant 0 : index
    %c0_32 = arith.constant 0 : index
    %c0_33 = arith.constant 0 : index
    %c0_34 = arith.constant 0 : index
    %33 = vector.load %arg7[%c0_31, %c0_32, %c0_33, %c0_34] : memref<1x18x24x128xbf16, #tpu.memory_space<vmem>>, vector<1x16x24x128xbf16>
    %c0_35 = arith.constant 0 : index
    %c1_36 = arith.constant 1 : index
    %c0_37 = arith.constant 0 : index
    %c0_38 = arith.constant 0 : index
    %34 = vector.load %arg7[%c0_35, %c1_36, %c0_37, %c0_38] : memref<1x18x24x128xbf16, #tpu.memory_space<vmem>>, vector<1x16x24x128xbf16>
    %c0_39 = arith.constant 0 : index
    %c2_40 = arith.constant 2 : index
    %c0_41 = arith.constant 0 : index
    %c0_42 = arith.constant 0 : index
    %35 = vector.load %arg7[%c0_39, %c2_40, %c0_41, %c0_42] : memref<1x18x24x128xbf16, #tpu.memory_space<vmem>>, vector<1x16x24x128xbf16>
    %36 = tpu.concatenate %33, %34, %35 in 3 : vector<1x16x24x128xbf16>, vector<1x16x24x128xbf16>, vector<1x16x24x128xbf16> -> vector<1x16x24x384xbf16>
    %37 = vector.shape_cast %36 : vector<1x16x24x384xbf16> to vector<384x384xbf16>
    %c0_43 = arith.constant 0 : index
    %c0_44 = arith.constant 0 : index
    %38 = vector.load %arg4[%c0_43, %c0_44] : memref<384x384xbf16, #tpu.memory_space<vmem>>, vector<384x384xbf16>
    %cst_45 = arith.constant dense<0.000000e+00> : vector<384x384xf32>
    %39 = tpu.matmul %37, %38, %cst_45 {dimension_numbers = #tpu.dot_dimension_numbers<[1], [0], [0], [1], [0, 0, 1, 1], [], []>} : vector<384x384xbf16>, vector<384x384xbf16>, vector<384x384xf32> -> vector<384x384xf32>
    %40 = vector.extract_strided_slice %39 {offsets = [0, 0], sizes = [384, 128], strides = [1, 1]} : vector<384x384xf32> to vector<384x128xf32>
    %41 = vector.extract_strided_slice %39 {offsets = [0, 128], sizes = [384, 128], strides = [1, 1]} : vector<384x384xf32> to vector<384x128xf32>
    %42 = vector.extract_strided_slice %39 {offsets = [0, 256], sizes = [384, 128], strides = [1, 1]} : vector<384x384xf32> to vector<384x128xf32>
    %c1_i32_46 = arith.constant 1 : i32
    %43 = tpu.dynamic_rotate %40 by %c1_i32_46 dim 0 : vector<384x128xf32>, i32 -> vector<384x128xf32>
    %44 = arith.addf %43, %41 : vector<384x128xf32>
    %c383_i32_47 = arith.constant 383 : i32
    %45 = tpu.dynamic_rotate %42 by %c383_i32_47 dim 0 : vector<384x128xf32>, i32 -> vector<384x128xf32>
    %46 = arith.addf %44, %45 : vector<384x128xf32>
    %c0_48 = arith.constant 0 : index
    %c0_49 = arith.constant 0 : index
    %47 = vector.load %arg5[%c0_48, %c0_49] : memref<1x128xf32, #tpu.memory_space<vmem>>, vector<1x128xf32>
    %48 = vector.broadcast %47 : vector<1x128xf32> to vector<384x128xf32>
    %49 = arith.addf %46, %48 : vector<384x128xf32>
    %50 = arith.addf %49, %32 : vector<384x128xf32>
    %cst_50 = arith.constant 0.000000e+00 : f32
    %51 = vector.broadcast %cst_50 : f32 to vector<384x128xf32>
    %52 = arith.maximumf %50, %51 : vector<384x128xf32>
    %53 = vector.shape_cast %52 : vector<384x128xf32> to vector<1x16x24x128xf32>
    %54 = arith.truncf %53 : vector<1x16x24x128xf32> to vector<1x16x24x128xbf16>
    %c0_51 = arith.constant 0 : index
    %c0_52 = arith.constant 0 : index
    %c0_53 = arith.constant 0 : index
    %c0_54 = arith.constant 0 : index
    %55 = vector.load %arg6[%c0_51, %c0_52, %c0_53, %c0_54] : memref<1x16x24x128xbf16, #tpu.memory_space<vmem>>, vector<1x16x24x128xbf16>
    tpu.vector_store %arg6[%c0_51, %c0_52, %c0_53, %c0_54], %54 {strides = array<i32>} : memref<1x16x24x128xbf16, #tpu.memory_space<vmem>>, vector<1x16x24x128xbf16>,
    return
  }
  func.func @transform_0(%arg0: i32) -> (i32, i32, i32, i32) {
    %c0_i32 = arith.constant 0 : i32
    %c0_i32_0 = arith.constant 0 : i32
    %c0_i32_1 = arith.constant 0 : i32
    %c0_i32_2 = arith.constant 0 : i32
    return %arg0, %c0_i32, %c0_i32_0, %c0_i32_1 : i32, i32, i32, i32
  }
  func.func @transform_1(%arg0: i32) -> (i32, i32) {
    %c0_i32 = arith.constant 0 : i32
    %c0_i32_0 = arith.constant 0 : i32
    %c0_i32_1 = arith.constant 0 : i32
    return %c0_i32, %c0_i32_0 : i32, i32
  }
  func.func @transform_2(%arg0: i32) -> (i32, i32) {
    %c0_i32 = arith.constant 0 : i32
    %c0_i32_0 = arith.constant 0 : i32
    %c0_i32_1 = arith.constant 0 : i32
    return %c0_i32, %c0_i32_0 : i32, i32
  }
  func.func @transform_3(%arg0: i32) -> (i32, i32) {
    %c0_i32 = arith.constant 0 : i32
    %c0_i32_0 = arith.constant 0 : i32
    %c0_i32_1 = arith.constant 0 : i32
    return %c0_i32, %c0_i32_0 : i32, i32
  }
  func.func @transform_4(%arg0: i32) -> (i32, i32) {
    %c0_i32 = arith.constant 0 : i32
    %c0_i32_0 = arith.constant 0 : i32
    %c0_i32_1 = arith.constant 0 : i32
    return %c0_i32, %c0_i32_0 : i32, i32
  }
  func.func @transform_5(%arg0: i32) -> (i32, i32, i32, i32) {
    %c0_i32 = arith.constant 0 : i32
    %c0_i32_0 = arith.constant 0 : i32
    %c0_i32_1 = arith.constant 0 : i32
    %c0_i32_2 = arith.constant 0 : i32
    return %arg0, %c0_i32, %c0_i32_0, %c0_i32_1 : i32, i32, i32, i32
  }
}

</mosaic_0001>

<llo_original>
// kernel: tpu_custom_call.1
$region0: #{tpu_custom_call.1}
  #allocation0 [shape = 'u32[]', space=smem, size = 0x4, offset = 0x4, fixed_abs, tag = 'smem constant byte address 0x4 - core index']
  #allocation1 [shape = 'u32[144,128]{1,0:T(1,128)}', space=vmem, size = 0x12000, scoped, tag = 'internal scratch']
  #allocation2 [shape = 'bf16[1,18,24,128]{3,2,1,0:T(8,128)(2,1)}', space=vmem, size = 0x1b000, scoped, tag = 'scratch operand']
  %s0 = inlined_call_operand.hbm [shape: bf16[2,18,24,128], index: 0, kind: input, shape index: {}]
  %s1 = inlined_call_operand.hbm [shape: bf16[384,384], index: 1, kind: input, shape index: {}]
  %s2 = inlined_call_operand.vmem [shape: f32[1,128], index: 2, kind: input, shape index: {}]
  %s3 = inlined_call_operand.hbm [shape: bf16[384,384], index: 3, kind: input, shape index: {}]
  %s4 = inlined_call_operand.vmem [shape: f32[1,128], index: 4, kind: input, shape index: {}]
  %s5 = inlined_call_operand.hbm [shape: bf16[2,16,24,128], index: 5, kind: output, shape index: {}]
  %s6 = sld [smem:[#allocation0]]
  $region65: #{tpu_custom_call.1} parent=0
    _
  %s8 = ssub.s32 1, %s6
  %s9 = scalar_select 0, %s8, %s6
  $region1: #{tpu_custom_call.1} parent=0
    #allocation3 [shape = 'u8[221184]{0}', space=vmem, size = 0x36000, scoped, tag = 'input window, operand 0']
    #allocation4 [shape = 's32[2]{0}', space=sflag, size = 0x8, scoped, tag = 'scoped memory for tpu_custom_call.1']
    #allocation5 [shape = 's32[2]{0}', space=sflag, size = 0x8, scoped, tag = 'scoped memory for tpu_custom_call.1']
    #allocation6 [shape = 'u8[294912]{0}', space=vmem, size = 0x48000, scoped, tag = 'input window, operand 1, single buffered']
    #allocation7 [shape = 's32[1]{0}', space=sflag, size = 0x4, scoped, tag = 'scoped memory for tpu_custom_call.1']
    #allocation8 [shape = 'u8[294912]{0}', space=vmem, size = 0x48000, scoped, tag = 'input window, operand 3, single buffered']
    #allocation9 [shape = 'u8[196608]{0}', space=vmem, size = 0x30000, scoped, tag = 'output window, operand 0']
    %10 = vsyncpa [#allocation4], 0
    %s11 = scalar_lea.sflag [#allocation4], 1
    %12 = vsyncpa %s11, 0
    %13 = vsyncpa [#allocation7], 0
    %14 = vsyncpa [#allocation5], 0
    %s15 = scalar_lea.sflag [#allocation5], 1
    %16 = vsyncpa %s15, 0
    loop: start=0, step=1, limit=4
    $region2: #{tpu_custom_call.1} parent=1 // loop_pre_header
      _
    $region3: #{tpu_custom_call.1} parent=1 // loop_header
      %s18 = sphi 0, %s22
      %p19 = scmp.ge.s32.totalorder %s18, 4
      %s28 = sphi 0, %s30
      %s31 = sphi 0, %s28
      %s32 = sphi 0, %s31
      %s48 = sphi 0, %s32
      %s52 = sphi 0, %s52
      %s54 = sphi 0, %s52
      %s55 = sphi 0, %s54
      %s69 = sphi 0, %s55
      %s73 = sphi 0, %s73
      %s75 = sphi 0, %s73
      %s76 = sphi 0, %s75
      %s90 = sphi 0, %s76
      %s94 = sphi 0, %s94
      %s96 = sphi 0, %s94
      %s97 = sphi 0, %s96
      %s111 = sphi 0, %s97
      %s115 = sphi 0, %s115
      %s117 = sphi 0, %s115
      %s118 = sphi 0, %s117
      %s132 = sphi 0, %s118
      %s138 = sphi 0, %s140
      %s141 = sphi 0, %s138
      %s142 = sphi 0, %s141
      %s158 = sphi 0, %s142
    $region4: #{tpu_custom_call.1} parent=1 // loop_header_branch
      %21 = sbr.rel (%p19) target = $region8
    $region5: #{tpu_custom_call.1} parent=1 // loop_body
      %s23 = ssub.s32 %s18, 1
      %s24 = ssub.s32 %s18, 2
      %s25 = sadd.s32 %s18, 1
      %s26 = ssub.s32 %s18, %s25
      %p27 = scmp.eq.s32.totalorder %s26, 0
      %s29 = sadd.s32 %s28, 1
      %s30 = scalar_select %p27, %s28, %s29
      %p33 = pneg %p27
      %p34 = scmp.eq.s32.totalorder %s18, 1
      %p35 = por %p33, %p34
      %p36 = scmp.ne.s32.totalorder %s28, %s31
      %p37 = scmp.eq.s32.totalorder %s18, 0
      %p38 = por %p36, %p37
      %p39 = scmp.ne.s32.totalorder %s28, %s31
      %p40 = scmp.eq.s32.totalorder %s23, 1
      %p41 = por %p39, %p40
      %p42 = scmp.ne.s32.totalorder %s31, %s32
      %p43 = scmp.eq.s32.totalorder %s23, 0
      %p44 = por %p42, %p43
      %p45 = scmp.ne.s32.totalorder %s31, %s32
      %p46 = scmp.eq.s32.totalorder %s24, 1
      %p47 = por %p45, %p46
      %p49 = scmp.ne.s32.totalorder %s32, %s48
      %p50 = scmp.eq.s32.totalorder %s24, 0
      %p51 = por %p49, %p50
      %s53 = sadd.s32 %s52, 1
      %p56 = scmp.eq.s32.totalorder %s18, 1
      %p57 = scmp.ne.s32.totalorder %s52, %s54
      %p58 = scmp.eq.s32.totalorder %s18, 0
      %p59 = por %p57, %p58
      %p60 = scmp.ne.s32.totalorder %s52, %s54
      %p61 = scmp.eq.s32.totalorder %s23, 1
      %p62 = por %p60, %p61
      %p63 = scmp.ne.s32.totalorder %s54, %s55
      %p64 = scmp.eq.s32.totalorder %s23, 0
      %p65 = por %p63, %p64
      %p66 = scmp.ne.s32.totalorder %s54, %s55
      %p67 = scmp.eq.s32.totalorder %s24, 1
      %p68 = por %p66, %p67
      %p70 = scmp.ne.s32.totalorder %s55, %s69
      %p71 = scmp.eq.s32.totalorder %s24, 0
      %p72 = por %p70, %p71
      %s74 = sadd.s32 %s73, 1
      %p77 = scmp.eq.s32.totalorder %s18, 1
      %p78 = scmp.ne.s32.totalorder %s73, %s75
      %p79 = scmp.eq.s32.totalorder %s18, 0
      %p80 = por %p78, %p79
      %p81 = scmp.ne.s32.totalorder %s73, %s75
      %p82 = scmp.eq.s32.totalorder %s23, 1
      %p83 = por %p81, %p82
      %p84 = scmp.ne.s32.totalorder %s75, %s76
      %p85 = scmp.eq.s32.totalorder %s23, 0
      %p86 = por %p84, %p85
      %p87 = scmp.ne.s32.totalorder %s75, %s76
      %p88 = scmp.eq.s32.totalorder %s24, 1
      %p89 = por %p87, %p88
      %p91 = scmp.ne.s32.totalorder %s76, %s90
      %p92 = scmp.eq.s32.totalorder %s24, 0
      %p93 = por %p91, %p92
      %s95 = sadd.s32 %s94, 1
      %p98 = scmp.eq.s32.totalorder %s18, 1
      %p99 = scmp.ne.s32.totalorder %s94, %s96
      %p100 = scmp.eq.s32.totalorder %s18, 0
      %p101 = por %p99, %p100
      %p102 = scmp.ne.s32.totalorder %s94, %s96
      %p103 = scmp.eq.s32.totalorder %s23, 1
      %p104 = por %p102, %p103
      %p105 = scmp.ne.s32.totalorder %s96, %s97
      %p106 = scmp.eq.s32.totalorder %s23, 0
      %p107 = por %p105, %p106
      %p108 = scmp.ne.s32.totalorder %s96, %s97
      %p109 = scmp.eq.s32.totalorder %s24, 1
      %p110 = por %p108, %p109
      %p112 = scmp.ne.s32.totalorder %s97, %s111
      %p113 = scmp.eq.s32.totalorder %s24, 0
      %p114 = por %p112, %p113
      %s116 = sadd.s32 %s115, 1
      %p119 = scmp.eq.s32.totalorder %s18, 1
      %p120 = scmp.ne.s32.totalorder %s115, %s117
      %p121 = scmp.eq.s32.totalorder %s18, 0
      %p122 = por %p120, %p121
      %p123 = scmp.ne.s32.totalorder %s115, %s117
      %p124 = scmp.eq.s32.totalorder %s23, 1
      %p125 = por %p123, %p124
      %p126 = scmp.ne.s32.totalorder %s117, %s118
      %p127 = scmp.eq.s32.totalorder %s23, 0
      %p128 = por %p126, %p127
      %p129 = scmp.ne.s32.totalorder %s117, %s118
      %p130 = scmp.eq.s32.totalorder %s24, 1
      %p131 = por %p129, %p130
      %p133 = scmp.ne.s32.totalorder %s118, %s132
      %p134 = scmp.eq.s32.totalorder %s24, 0
      %p135 = por %p133, %p134
      %s136 = ssub.s32 %s18, %s25
      %p137 = scmp.eq.s32.totalorder %s136, 0
      %s139 = sadd.s32 %s138, 1
      %s140 = scalar_select %p137, %s138, %s139
      %p143 = pneg %p137
      %p144 = scmp.eq.s32.totalorder %s18, 1
      %p145 = por %p143, %p144
      %p146 = scmp.ne.s32.totalorder %s138, %s141
      %p147 = scmp.eq.s32.totalorder %s18, 0
      %p148 = por %p146, %p147
      %p149 = scmp.ne.s32.totalorder %s138, %s141
      %p150 = scmp.eq.s32.totalorder %s23, 1
      %p151 = por %p149, %p150
      %p152 = scmp.ne.s32.totalorder %s141, %s142
      %p153 = scmp.eq.s32.totalorder %s23, 0
      %p154 = por %p152, %p153
      %p155 = scmp.ne.s32.totalorder %s141, %s142
      %p156 = scmp.eq.s32.totalorder %s24, 1
      %p157 = por %p155, %p156
      %p159 = scmp.ne.s32.totalorder %s142, %s158
      %p160 = scmp.eq.s32.totalorder %s24, 0
      %p161 = por %p159, %p160
      %p162 = scmp.le.s32.totalorder 1, %s18
      %p163 = scmp.lt.s32.totalorder %s18, 3
      %p164 = pnand %p162, %p163
      %p165 = pneg %p164
      // Predicated region
      $region9: #{tpu_custom_call.1} parent=5 // pred_check
        _
      $region10: #{tpu_custom_call.1} parent=5 // pred_check_branch
        %167 = sbr.rel (%p164) target = $region12
      $region11: #{tpu_custom_call.1} parent=5 // pred_region
        %s168 = ssub.s32 %s18, 1
        // Predicated region
        $region13: #{tpu_custom_call.1} parent=11 // pred_check
          %p169 = pneg %p65
        $region14: #{tpu_custom_call.1} parent=11 // pred_check_branch
          %171 = sbr.rel (%p169) target = $region16
        $region15: #{tpu_custom_call.1} parent=11 // pred_region
          %s173 = ssub.s32 9216, 9216
          %174 = vsyncadd [#allocation7], %s173
          %s175 = sshll.u32 [#allocation6], 4
          %s176 = int_to_ptr.vmem [resolvable:$true] %s175
          %181 = dma.hbm_to_vmem [thread:$0]  %s1, 9216, %s176, [#allocation7], 192, 192, 12
        $region16: #{tpu_custom_call.1} parent=11 // pred_fallthru
          _
        // Predicated region
        $region17: #{tpu_custom_call.1} parent=11 // pred_check
          %p182 = pneg %p86
        $region18: #{tpu_custom_call.1} parent=11 // pred_check_branch
          %184 = sbr.rel (%p182) target = $region20
        $region19: #{tpu_custom_call.1} parent=11 // pred_region
          _
        $region20: #{tpu_custom_call.1} parent=11 // pred_fallthru
          _
        // Predicated region
        $region21: #{tpu_custom_call.1} parent=11 // pred_check
          %p185 = pneg %p107
        $region22: #{tpu_custom_call.1} parent=11 // pred_check_branch
          %187 = sbr.rel (%p185) target = $region24
        $region23: #{tpu_custom_call.1} parent=11 // pred_region
          %s189 = ssub.s32 9216, 9216
          %190 = vsyncadd [#allocation7], %s189
          %s191 = sshll.u32 [#allocation8], 4
          %s192 = int_to_ptr.vmem [resolvable:$true] %s191
          %197 = dma.hbm_to_vmem [thread:$0]  %s3, 9216, %s192, [#allocation7], 192, 192, 12
        $region24: #{tpu_custom_call.1} parent=11 // pred_fallthru
          _
        // Predicated region
        $region25: #{tpu_custom_call.1} parent=11 // pred_check
          %p198 = pneg %p128
        $region26: #{tpu_custom_call.1} parent=11 // pred_check_branch
          %200 = sbr.rel (%p198) target = $region28
        $region27: #{tpu_custom_call.1} parent=11 // pred_region
          _
        $region28: #{tpu_custom_call.1} parent=11 // pred_fallthru
          _
      $region12: #{tpu_custom_call.1} parent=5 // pred_fallthru
        _
      %p201 = scmp.lt.s32.totalorder %s18, 2
      // Predicated region
      $region29: #{tpu_custom_call.1} parent=5 // pred_check
        %p202 = pneg %p201
      $region30: #{tpu_custom_call.1} parent=5 // pred_check_branch
        %204 = sbr.rel (%p202) target = $region32
      $region31: #{tpu_custom_call.1} parent=5 // pred_region
        // Predicated region
        $region33: #{tpu_custom_call.1} parent=31 // pred_check
          %p205 = pneg %p38
        $region34: #{tpu_custom_call.1} parent=31 // pred_check_branch
          %207 = sbr.rel (%p205) target = $region36
        $region35: #{tpu_custom_call.1} parent=31 // pred_region
          %s208 = sand.u32 %s28, 1
          %s209 = scalar_lea.sflag [#allocation4], %s208
          %s210 = sand.u32 %s28, 1
          %s211 = smul.addr %s210, 216
          %s212 = scalar_lea.vmem [#allocation3], %s211
          %s214 = ssub.s32 3456, 3456
          %215 = vsyncadd %s209, %s214
          %s216 = smul.addr %s18, 54
          %s217 = smul.addr %s216, 64
          %s218 = scalar_lea.hbm %s0, %s217
          %s219 = sshll.u32 %s212, 4
          %s220 = int_to_ptr.vmem [resolvable:$true] %s219
          %225 = dma.hbm_to_vmem [thread:$0]  %s218, 3456, %s220, %s209, 64, 64, 4
        $region36: #{tpu_custom_call.1} parent=31 // pred_fallthru
          _
      $region32: #{tpu_custom_call.1} parent=5 // pred_fallthru
        _
      %p226 = scmp.le.s32.totalorder 1, %s18
      %p227 = scmp.lt.s32.totalorder %s18, 3
      %p228 = pnand %p226, %p227
      %p229 = pneg %p228
      // Predicated region
      $region37: #{tpu_custom_call.1} parent=5 // pred_check
        _
      $region38: #{tpu_custom_call.1} parent=5 // pred_check_branch
        %231 = sbr.rel (%p228) target = $region40
      $region39: #{tpu_custom_call.1} parent=5 // pred_region
        %s232 = ssub.s32 %s18, 1
        %s233 = sand.u32 %s31, 1
        %s234 = scalar_lea.sflag [#allocation4], %s233
        %s235 = sand.u32 %s31, 1
        %s236 = smul.addr %s235, 216
        %s237 = scalar_lea.vmem [#allocation3], %s236
        // Predicated region
        $region41: #{tpu_custom_call.1} parent=39 // pred_check
          %p238 = pneg %p44
        $region42: #{tpu_custom_call.1} parent=39 // pred_check_branch
          %240 = sbr.rel (%p238) target = $region44
        $region43: #{tpu_custom_call.1} parent=39 // pred_region
          %241 = dma.done %s234, 3456
        $region44: #{tpu_custom_call.1} parent=39 // pred_fallthru
          _
        // Predicated region
        $region45: #{tpu_custom_call.1} parent=39 // pred_check
          %p242 = pneg %p65
        $region46: #{tpu_custom_call.1} parent=39 // pred_check_branch
          %244 = sbr.rel (%p242) target = $region48
        $region47: #{tpu_custom_call.1} parent=39 // pred_region
          %245 = dma.done [#allocation7], 9216
        $region48: #{tpu_custom_call.1} parent=39 // pred_fallthru
          _
        // Predicated region
        $region49: #{tpu_custom_call.1} parent=39 // pred_check
          %p246 = pneg %p107
        $region50: #{tpu_custom_call.1} parent=39 // pred_check_branch
          %248 = sbr.rel (%p246) target = $region52
        $region51: #{tpu_custom_call.1} parent=39 // pred_region
          %249 = dma.done [#allocation7], 9216
        $region52: #{tpu_custom_call.1} parent=39 // pred_fallthru
          _
        %s250 = sand.u32 %s31, 1
        %s251 = scalar_lea.sflag [#allocation4], %s250
        %s252 = sand.u32 %s31, 1
        %s253 = smul.addr %s252, 216
        %s254 = scalar_lea.vmem [#allocation3], %s253
        %p255 = pneg %p44
        %p256 = pneg %p41
        %p257 = pneg %p65
        %p258 = pneg %p62
        %p259 = pneg %p86
        %p260 = pneg %p83
        %p261 = pneg %p107
        %p262 = pneg %p104
        %p263 = pneg %p128
        %p264 = pneg %p125
        %p265 = pneg %p154
        %p266 = pneg %p151
        %s267 = sand.u32 %s141, 1
        %s268 = scalar_lea.sflag [#allocation5], %s267
        %s269 = sand.u32 %s141, 1
        %s270 = smul.addr %s269, 192
        %s271 = scalar_lea.vmem [#allocation9], %s270
        %v273 = vld [vmem:[%s237] sm:$0xf]
        %v274 = vld [vmem:[%s237 + $0x4] sm:$0xf]
        %v275 = vld [vmem:[%s237 + $0x8] sm:$0xf]
        %v276 = vld [vmem:[%s237 + $0xc] sm:$0xf]
        %v277 = vld [vmem:[%s237 + $0x10] sm:$0xf]
        %v278 = vld [vmem:[%s237 + $0x14] sm:$0xf]
        %v279 = vld [vmem:[%s237 + $0x18] sm:$0xf]
        %v280 = vld [vmem:[%s237 + $0x1c] sm:$0xf]
        %v281 = vld [vmem:[%s237 + $0x20] sm:$0xf]
        %v282 = vld [vmem:[%s237 + $0x24] sm:$0xf]
        %v283 = vld [vmem:[%s237 + $0x28] sm:$0xf]
        %v284 = vld [vmem:[%s237 + $0x2c] sm:$0xf]
        %v285 = vld [vmem:[%s237 + $0x30] sm:$0xf]
        %v286 = vld [vmem:[%s237 + $0x34] sm:$0xf]
        %v287 = vld [vmem:[%s237 + $0x38] sm:$0xf]
        %v288 = vld [vmem:[%s237 + $0x3c] sm:$0xf]
        %v289 = vld [vmem:[%s237 + $0x40] sm:$0xf]
        %v290 = vld [vmem:[%s237 + $0x44] sm:$0xf]
        %v291 = vld [vmem:[%s237 + $0x48] sm:$0xf]
        %v292 = vld [vmem:[%s237 + $0x4c] sm:$0xf]
        %v293 = vld [vmem:[%s237 + $0x50] sm:$0xf]
        %v294 = vld [vmem:[%s237 + $0x54] sm:$0xf]
        %v295 = vld [vmem:[%s237 + $0x58] sm:$0xf]
        %v296 = vld [vmem:[%s237 + $0x5c] sm:$0xf]
        %v297 = vld [vmem:[%s237 + $0x60] sm:$0xf]
        %v298 = vld [vmem:[%s237 + $0x64] sm:$0xf]
        %v299 = vld [vmem:[%s237 + $0x68] sm:$0xf]
        %v300 = vld [vmem:[%s237 + $0x6c] sm:$0xf]
        %v301 = vld [vmem:[%s237 + $0x70] sm:$0xf]
        %v302 = vld [vmem:[%s237 + $0x74] sm:$0xf]
        %v303 = vld [vmem:[%s237 + $0x78] sm:$0xf]
        %v304 = vld [vmem:[%s237 + $0x7c] sm:$0xf]
        %v305 = vld [vmem:[%s237 + $0x80] sm:$0xf]
        %v306 = vld [vmem:[%s237 + $0x84] sm:$0xf]
        %v307 = vld [vmem:[%s237 + $0x88] sm:$0xf]
        %v308 = vld [vmem:[%s237 + $0x8c] sm:$0xf]
        %v309 = vld [vmem:[%s237 + $0x90] sm:$0xf]
        %v310 = vld [vmem:[%s237 + $0x94] sm:$0xf]
        %v311 = vld [vmem:[%s237 + $0x98] sm:$0xf]
        %v312 = vld [vmem:[%s237 + $0x9c] sm:$0xf]
        %v313 = vld [vmem:[%s237 + $0xa0] sm:$0xf]
        %v314 = vld [vmem:[%s237 + $0xa4] sm:$0xf]
        %v315 = vld [vmem:[%s237 + $0xa8] sm:$0xf]
        %v316 = vld [vmem:[%s237 + $0xac] sm:$0xf]
        %v317 = vld [vmem:[%s237 + $0xb0] sm:$0xf]
        %v318 = vld [vmem:[%s237 + $0xb4] sm:$0xf]
        %v319 = vld [vmem:[%s237 + $0xb8] sm:$0xf]
        %v320 = vld [vmem:[%s237 + $0xbc] sm:$0xf]
        %s321 = scalar_lea.vmem %s237, 12 [#allocation3]
        %v322 = vld [vmem:[%s321] sm:$0xf]
        %v323 = vld [vmem:[%s321 + $0x4] sm:$0xf]
        %v324 = vld [vmem:[%s321 + $0x8] sm:$0xf]
        %v325 = vld [vmem:[%s321 + $0xc] sm:$0xf]
        %v326 = vld [vmem:[%s321 + $0x10] sm:$0xf]
        %v327 = vld [vmem:[%s321 + $0x14] sm:$0xf]
        %v328 = vld [vmem:[%s321 + $0x18] sm:$0xf]
        %v329 = vld [vmem:[%s321 + $0x1c] sm:$0xf]
        %v330 = vld [vmem:[%s321 + $0x20] sm:$0xf]
        %v331 = vld [vmem:[%s321 + $0x24] sm:$0xf]
        %v332 = vld [vmem:[%s321 + $0x28] sm:$0xf]
        %v333 = vld [vmem:[%s321 + $0x2c] sm:$0xf]
        %v334 = vld [vmem:[%s321 + $0x30] sm:$0xf]
        %v335 = vld [vmem:[%s321 + $0x34] sm:$0xf]
        %v336 = vld [vmem:[%s321 + $0x38] sm:$0xf]
        %v337 = vld [vmem:[%s321 + $0x3c] sm:$0xf]
        %v338 = vld [vmem:[%s321 + $0x40] sm:$0xf]
        %v339 = vld [vmem:[%s321 + $0x44] sm:$0xf]
        %v340 = vld [vmem:[%s321 + $0x48] sm:$0xf]
        %v341 = vld [vmem:[%s321 + $0x4c] sm:$0xf]
        %v342 = vld [vmem:[%s321 + $0x50] sm:$0xf]
        %v343 = vld [vmem:[%s321 + $0x54] sm:$0xf]
        %v344 = vld [vmem:[%s321 + $0x58] sm:$0xf]
        %v345 = vld [vmem:[%s321 + $0x5c] sm:$0xf]
        %v346 = vld [vmem:[%s321 + $0x60] sm:$0xf]
        %v347 = vld [vmem:[%s321 + $0x64] sm:$0xf]
        %v348 = vld [vmem:[%s321 + $0x68] sm:$0xf]
        %v349 = vld [vmem:[%s321 + $0x6c] sm:$0xf]
        %v350 = vld [vmem:[%s321 + $0x70] sm:$0xf]
        %v351 = vld [vmem:[%s321 + $0x74] sm:$0xf]
        %v352 = vld [vmem:[%s321 + $0x78] sm:$0xf]
        %v353 = vld [vmem:[%s321 + $0x7c] sm:$0xf]
        %v354 = vld [vmem:[%s321 + $0x80] sm:$0xf]
        %v355 = vld [vmem:[%s321 + $0x84] sm:$0xf]
        %v356 = vld [vmem:[%s321 + $0x88] sm:$0xf]
        %v357 = vld [vmem:[%s321 + $0x8c] sm:$0xf]
        %v358 = vld [vmem:[%s321 + $0x90] sm:$0xf]
        %v359 = vld [vmem:[%s321 + $0x94] sm:$0xf]
        %v360 = vld [vmem:[%s321 + $0x98] sm:$0xf]
        %v361 = vld [vmem:[%s321 + $0x9c] sm:$0xf]
        %v362 = vld [vmem:[%s321 + $0xa0] sm:$0xf]
        %v363 = vld [vmem:[%s321 + $0xa4] sm:$0xf]
        %v364 = vld [vmem:[%s321 + $0xa8] sm:$0xf]
        %v365 = vld [vmem:[%s321 + $0xac] sm:$0xf]
        %v366 = vld [vmem:[%s321 + $0xb0] sm:$0xf]
        %v367 = vld [vmem:[%s321 + $0xb4] sm:$0xf]
        %v368 = vld [vmem:[%s321 + $0xb8] sm:$0xf]
        %v369 = vld [vmem:[%s321 + $0xbc] sm:$0xf]
        %s370 = scalar_lea.vmem %s237, 24 [#allocation3]
        %v371 = vld [vmem:[%s370] sm:$0xf]
        %v372 = vld [vmem:[%s370 + $0x4] sm:$0xf]
        %v373 = vld [vmem:[%s370 + $0x8] sm:$0xf]
        %v374 = vld [vmem:[%s370 + $0xc] sm:$0xf]
        %v375 = vld [vmem:[%s370 + $0x10] sm:$0xf]
        %v376 = vld [vmem:[%s370 + $0x14] sm:$0xf]
        %v377 = vld [vmem:[%s370 + $0x18] sm:$0xf]
        %v378 = vld [vmem:[%s370 + $0x1c] sm:$0xf]
        %v379 = vld [vmem:[%s370 + $0x20] sm:$0xf]
        %v380 = vld [vmem:[%s370 + $0x24] sm:$0xf]
        %v381 = vld [vmem:[%s370 + $0x28] sm:$0xf]
        %v382 = vld [vmem:[%s370 + $0x2c] sm:$0xf]
        %v383 = vld [vmem:[%s370 + $0x30] sm:$0xf]
        %v384 = vld [vmem:[%s370 + $0x34] sm:$0xf]
        %v385 = vld [vmem:[%s370 + $0x38] sm:$0xf]
        %v386 = vld [vmem:[%s370 + $0x3c] sm:$0xf]
        %v387 = vld [vmem:[%s370 + $0x40] sm:$0xf]
        %v388 = vld [vmem:[%s370 + $0x44] sm:$0xf]
        %v389 = vld [vmem:[%s370 + $0x48] sm:$0xf]
        %v390 = vld [vmem:[%s370 + $0x4c] sm:$0xf]
        %v391 = vld [vmem:[%s370 + $0x50] sm:$0xf]
        %v392 = vld [vmem:[%s370 + $0x54] sm:$0xf]
        %v393 = vld [vmem:[%s370 + $0x58] sm:$0xf]
        %v394 = vld [vmem:[%s370 + $0x5c] sm:$0xf]
        %v395 = vld [vmem:[%s370 + $0x60] sm:$0xf]
        %v396 = vld [vmem:[%s370 + $0x64] sm:$0xf]
        %v397 = vld [vmem:[%s370 + $0x68] sm:$0xf]
        %v398 = vld [vmem:[%s370 + $0x6c] sm:$0xf]
        %v399 = vld [vmem:[%s370 + $0x70] sm:$0xf]
        %v400 = vld [vmem:[%s370 + $0x74] sm:$0xf]
        %v401 = vld [vmem:[%s370 + $0x78] sm:$0xf]
        %v402 = vld [vmem:[%s370 + $0x7c] sm:$0xf]
        %v403 = vld [vmem:[%s370 + $0x80] sm:$0xf]
        %v404 = vld [vmem:[%s370 + $0x84] sm:$0xf]
        %v405 = vld [vmem:[%s370 + $0x88] sm:$0xf]
        %v406 = vld [vmem:[%s370 + $0x8c] sm:$0xf]
        %v407 = vld [vmem:[%s370 + $0x90] sm:$0xf]
        %v408 = vld [vmem:[%s370 + $0x94] sm:$0xf]
        %v409 = vld [vmem:[%s370 + $0x98] sm:$0xf]
        %v410 = vld [vmem:[%s370 + $0x9c] sm:$0xf]
        %v411 = vld [vmem:[%s370 + $0xa0] sm:$0xf]
        %v412 = vld [vmem:[%s370 + $0xa4] sm:$0xf]
        %v413 = vld [vmem:[%s370 + $0xa8] sm:$0xf]
        %v414 = vld [vmem:[%s370 + $0xac] sm:$0xf]
        %v415 = vld [vmem:[%s370 + $0xb0] sm:$0xf]
        %v416 = vld [vmem:[%s370 + $0xb4] sm:$0xf]
        %v417 = vld [vmem:[%s370 + $0xb8] sm:$0xf]
        %v418 = vld [vmem:[%s370 + $0xbc] sm:$0xf]
        %v467 = vunpack.c.l.b16 %v273
        %v468 = vunpack.c.l.b16 %v274
        %v469 = vunpack.c.l.b16 %v275
        %v470 = vunpack.c.l.b16 %v276
        %v471 = vunpack.c.l.b16 %v277
        %v472 = vunpack.c.l.b16 %v278
        %v473 = vunpack.c.l.b16 %v279
        %v474 = vunpack.c.l.b16 %v280
        %v475 = vunpack.c.l.b16 %v281
        %v476 = vunpack.c.l.b16 %v282
        %v477 = vunpack.c.l.b16 %v283
        %v478 = vunpack.c.l.b16 %v284
        %v479 = vunpack.c.l.b16 %v285
        %v480 = vunpack.c.l.b16 %v286
        %v481 = vunpack.c.l.b16 %v287
        %v482 = vunpack.c.l.b16 %v288
        %v483 = vunpack.c.l.b16 %v289
        %v484 = vunpack.c.l.b16 %v290
        %v485 = vunpack.c.l.b16 %v291
        %v486 = vunpack.c.l.b16 %v292
        %v487 = vunpack.c.l.b16 %v293
        %v488 = vunpack.c.l.b16 %v294
        %v489 = vunpack.c.l.b16 %v295
        %v490 = vunpack.c.l.b16 %v296
        %v491 = vunpack.c.l.b16 %v297
        %v492 = vunpack.c.l.b16 %v298
        %v493 = vunpack.c.l.b16 %v299
        %v494 = vunpack.c.l.b16 %v300
        %v495 = vunpack.c.l.b16 %v301
        %v496 = vunpack.c.l.b16 %v302
        %v497 = vunpack.c.l.b16 %v303
        %v498 = vunpack.c.l.b16 %v304
        %v499 = vunpack.c.l.b16 %v305
        %v500 = vunpack.c.l.b16 %v306
        %v501 = vunpack.c.l.b16 %v307
        %v502 = vunpack.c.l.b16 %v308
        %v503 = vunpack.c.l.b16 %v309
        %v504 = vunpack.c.l.b16 %v310
        %v505 = vunpack.c.l.b16 %v311
        %v506 = vunpack.c.l.b16 %v312
        %v507 = vunpack.c.l.b16 %v313
        %v508 = vunpack.c.l.b16 %v314
        %v509 = vunpack.c.l.b16 %v315
        %v510 = vunpack.c.l.b16 %v316
        %v511 = vunpack.c.l.b16 %v317
        %v512 = vunpack.c.l.b16 %v318
        %v513 = vunpack.c.l.b16 %v319
        %v514 = vunpack.c.l.b16 %v320
        %v563 = vunpack.c.l.b16 %v322
        %v564 = vunpack.c.l.b16 %v323
        %v565 = vunpack.c.l.b16 %v324
        %v566 = vunpack.c.l.b16 %v325
        %v567 = vunpack.c.l.b16 %v326
        %v568 = vunpack.c.l.b16 %v327
        %v569 = vunpack.c.l.b16 %v328
        %v570 = vunpack.c.l.b16 %v329
        %v571 = vunpack.c.l.b16 %v330
        %v572 = vunpack.c.l.b16 %v331
        %v573 = vunpack.c.l.b16 %v332
        %v574 = vunpack.c.l.b16 %v333
        %v575 = vunpack.c.l.b16 %v334
        %v576 = vunpack.c.l.b16 %v335
        %v577 = vunpack.c.l.b16 %v336
        %v578 = vunpack.c.l.b16 %v337
        %v579 = vunpack.c.l.b16 %v338
        %v580 = vunpack.c.l.b16 %v339
        %v581 = vunpack.c.l.b16 %v340
        %v582 = vunpack.c.l.b16 %v341
        %v583 = vunpack.c.l.b16 %v342
        %v584 = vunpack.c.l.b16 %v343
        %v585 = vunpack.c.l.b16 %v344
        %v586 = vunpack.c.l.b16 %v345
        %v587 = vunpack.c.l.b16 %v346
        %v588 = vunpack.c.l.b16 %v347
        %v589 = vunpack.c.l.b16 %v348
        %v590 = vunpack.c.l.b16 %v349
        %v591 = vunpack.c.l.b16 %v350
        %v592 = vunpack.c.l.b16 %v351
        %v593 = vunpack.c.l.b16 %v352
        %v594 = vunpack.c.l.b16 %v353
        %v595 = vunpack.c.l.b16 %v354
        %v596 = vunpack.c.l.b16 %v355
        %v597 = vunpack.c.l.b16 %v356
        %v598 = vunpack.c.l.b16 %v357
        %v599 = vunpack.c.l.b16 %v358
        %v600 = vunpack.c.l.b16 %v359
        %v601 = vunpack.c.l.b16 %v360
        %v602 = vunpack.c.l.b16 %v361
        %v603 = vunpack.c.l.b16 %v362
        %v604 = vunpack.c.l.b16 %v363
        %v605 = vunpack.c.l.b16 %v364
        %v606 = vunpack.c.l.b16 %v365
        %v607 = vunpack.c.l.b16 %v366
        %v608 = vunpack.c.l.b16 %v367
        %v609 = vunpack.c.l.b16 %v368
        %v610 = vunpack.c.l.b16 %v369
        %v659 = vunpack.c.l.b16 %v371
        %v660 = vunpack.c.l.b16 %v372
        %v661 = vunpack.c.l.b16 %v373
        %v662 = vunpack.c.l.b16 %v374
        %v663 = vunpack.c.l.b16 %v375
        %v664 = vunpack.c.l.b16 %v376
        %v665 = vunpack.c.l.b16 %v377
        %v666 = vunpack.c.l.b16 %v378
        %v667 = vunpack.c.l.b16 %v379
        %v668 = vunpack.c.l.b16 %v380
        %v669 = vunpack.c.l.b16 %v381
        %v670 = vunpack.c.l.b16 %v382
        %v671 = vunpack.c.l.b16 %v383
        %v672 = vunpack.c.l.b16 %v384
        %v673 = vunpack.c.l.b16 %v385
        %v674 = vunpack.c.l.b16 %v386
        %v675 = vunpack.c.l.b16 %v387
        %v676 = vunpack.c.l.b16 %v388
        %v677 = vunpack.c.l.b16 %v389
        %v678 = vunpack.c.l.b16 %v390
        %v679 = vunpack.c.l.b16 %v391
        %v680 = vunpack.c.l.b16 %v392
        %v681 = vunpack.c.l.b16 %v393
        %v682 = vunpack.c.l.b16 %v394
        %v683 = vunpack.c.l.b16 %v395
        %v684 = vunpack.c.l.b16 %v396
        %v685 = vunpack.c.l.b16 %v397
        %v686 = vunpack.c.l.b16 %v398
        %v687 = vunpack.c.l.b16 %v399
        %v688 = vunpack.c.l.b16 %v400
        %v689 = vunpack.c.l.b16 %v401
        %v690 = vunpack.c.l.b16 %v402
        %v691 = vunpack.c.l.b16 %v403
        %v692 = vunpack.c.l.b16 %v404
        %v693 = vunpack.c.l.b16 %v405
        %v694 = vunpack.c.l.b16 %v406
        %v695 = vunpack.c.l.b16 %v407
        %v696 = vunpack.c.l.b16 %v408
        %v697 = vunpack.c.l.b16 %v409
        %v698 = vunpack.c.l.b16 %v410
        %v699 = vunpack.c.l.b16 %v411
        %v700 = vunpack.c.l.b16 %v412
        %v701 = vunpack.c.l.b16 %v413
        %v702 = vunpack.c.l.b16 %v414
        %v703 = vunpack.c.l.b16 %v415
        %v704 = vunpack.c.l.b16 %v416
        %v705 = vunpack.c.l.b16 %v417
        %v706 = vunpack.c.l.b16 %v418
        %v707 = vld [vmem:[#allocation6] sm:$0xff]
        %v708 = vld [vmem:[#allocation6 + $0x8] sm:$0xf]
        %v709 = vld [vmem:[#allocation6 + $0xc] sm:$0xff]
        %v710 = vld [vmem:[#allocation6 + $0x14] sm:$0xf]
        %v711 = vld [vmem:[#allocation6 + $0x18] sm:$0xff]
        %v712 = vld [vmem:[#allocation6 + $0x20] sm:$0xf]
        %v713 = vld [vmem:[#allocation6 + $0x24] sm:$0xff]
        %v714 = vld [vmem:[#allocation6 + $0x2c] sm:$0xf]
        %v715 = vld [vmem:[#allocation6 + $0x30] sm:$0xff]
        %v716 = vld [vmem:[#allocation6 + $0x38] sm:$0xf]
        %v717 = vld [vmem:[#allocation6 + $0x3c] sm:$0xff]
        %v718 = vld [vmem:[#allocation6 + $0x44] sm:$0xf]
        %v719 = vld [vmem:[#allocation6 + $0x48] sm:$0xff]
        %v720 = vld [vmem:[#allocation6 + $0x50] sm:$0xf]
        %v721 = vld [vmem:[#allocation6 + $0x54] sm:$0xff]
        %v722 = vld [vmem:[#allocation6 + $0x5c] sm:$0xf]
        %v723 = vld [vmem:[#allocation6 + $0x60] sm:$0xff]
        %v724 = vld [vmem:[#allocation6 + $0x68] sm:$0xf]
        %v725 = vld [vmem:[#allocation6 + $0x6c] sm:$0xff]
        %v726 = vld [vmem:[#allocation6 + $0x74] sm:$0xf]
        %v727 = vld [vmem:[#allocation6 + $0x78] sm:$0xff]
        %v728 = vld [vmem:[#allocation6 + $0x80] sm:$0xf]
        %v729 = vld [vmem:[#allocation6 + $0x84] sm:$0xff]
        %v730 = vld [vmem:[#allocation6 + $0x8c] sm:$0xf]
        %v731 = vld [vmem:[#allocation6 + $0x90] sm:$0xff]
        %v732 = vld [vmem:[#allocation6 + $0x98] sm:$0xf]
        %v733 = vld [vmem:[#allocation6 + $0x9c] sm:$0xff]
        %v734 = vld [vmem:[#allocation6 + $0xa4] sm:$0xf]
        %v735 = vld [vmem:[#allocation6 + $0xa8] sm:$0xff]
        %v736 = vld [vmem:[#allocation6 + $0xb0] sm:$0xf]
        %v737 = vld [vmem:[#allocation6 + $0xb4] sm:$0xff]
        %v738 = vld [vmem:[#allocation6 + $0xbc] sm:$0xf]
        %v739 = vld [vmem:[#allocation6 + $0xc0] sm:$0xff]
        %v740 = vld [vmem:[#allocation6 + $0xc8] sm:$0xf]
        %v741 = vld [vmem:[#allocation6 + $0xcc] sm:$0xff]
        %v742 = vld [vmem:[#allocation6 + $0xd4] sm:$0xf]
        %v743 = vld [vmem:[#allocation6 + $0xd8] sm:$0xff]
        %v744 = vld [vmem:[#allocation6 + $0xe0] sm:$0xf]
        %v745 = vld [vmem:[#allocation6 + $0xe4] sm:$0xff]
        %v746 = vld [vmem:[#allocation6 + $0xec] sm:$0xf]
        %v747 = vld [vmem:[#allocation6 + $0xf0] sm:$0xff]
        %v748 = vld [vmem:[#allocation6 + $0xf8] sm:$0xf]
        %v749 = vld [vmem:[#allocation6 + $0xfc] sm:$0xff]
        %v750 = vld [vmem:[#allocation6 + $0x104] sm:$0xf]
        %v751 = vld [vmem:[#allocation6 + $0x108] sm:$0xff]
        %v752 = vld [vmem:[#allocation6 + $0x110] sm:$0xf]
        %v753 = vld [vmem:[#allocation6 + $0x114] sm:$0xff]
        %v754 = vld [vmem:[#allocation6 + $0x11c] sm:$0xf]
        %v755 = vld [vmem:[#allocation6 + $0x120] sm:$0xff]
        %v756 = vld [vmem:[#allocation6 + $0x128] sm:$0xf]
        %v757 = vld [vmem:[#allocation6 + $0x12c] sm:$0xff]
        %v758 = vld [vmem:[#allocation6 + $0x134] sm:$0xf]
        %v759 = vld [vmem:[#allocation6 + $0x138] sm:$0xff]
        %v760 = vld [vmem:[#allocation6 + $0x140] sm:$0xf]
        %v761 = vld [vmem:[#allocation6 + $0x144] sm:$0xff]
        %v762 = vld [vmem:[#allocation6 + $0x14c] sm:$0xf]
        %v763 = vld [vmem:[#allocation6 + $0x150] sm:$0xff]
        %v764 = vld [vmem:[#allocation6 + $0x158] sm:$0xf]
        %v765 = vld [vmem:[#allocation6 + $0x15c] sm:$0xff]
        %v766 = vld [vmem:[#allocation6 + $0x164] sm:$0xf]
        %v767 = vld [vmem:[#allocation6 + $0x168] sm:$0xff]
        %v768 = vld [vmem:[#allocation6 + $0x170] sm:$0xf]
        %v769 = vld [vmem:[#allocation6 + $0x174] sm:$0xff]
        %v770 = vld [vmem:[#allocation6 + $0x17c] sm:$0xf]
        %v771 = vld [vmem:[#allocation6 + $0x180] sm:$0xff]
        %v772 = vld [vmem:[#allocation6 + $0x188] sm:$0xf]
        %v773 = vld [vmem:[#allocation6 + $0x18c] sm:$0xff]
        %v774 = vld [vmem:[#allocation6 + $0x194] sm:$0xf]
        %v775 = vld [vmem:[#allocation6 + $0x198] sm:$0xff]
        %v776 = vld [vmem:[#allocation6 + $0x1a0] sm:$0xf]
        %v777 = vld [vmem:[#allocation6 + $0x1a4] sm:$0xff]
        %v778 = vld [vmem:[#allocation6 + $0x1ac] sm:$0xf]
        %v779 = vld [vmem:[#allocation6 + $0x1b0] sm:$0xff]
        %v780 = vld [vmem:[#allocation6 + $0x1b8] sm:$0xf]
        %v781 = vld [vmem:[#allocation6 + $0x1bc] sm:$0xff]
        %v782 = vld [vmem:[#allocation6 + $0x1c4] sm:$0xf]
        %v783 = vld [vmem:[#allocation6 + $0x1c8] sm:$0xff]
        %v784 = vld [vmem:[#allocation6 + $0x1d0] sm:$0xf]
        %v785 = vld [vmem:[#allocation6 + $0x1d4] sm:$0xff]
        %v786 = vld [vmem:[#allocation6 + $0x1dc] sm:$0xf]
        %v787 = vld [vmem:[#allocation6 + $0x1e0] sm:$0xff]
        %v788 = vld [vmem:[#allocation6 + $0x1e8] sm:$0xf]
        %v789 = vld [vmem:[#allocation6 + $0x1ec] sm:$0xff]
        %v790 = vld [vmem:[#allocation6 + $0x1f4] sm:$0xf]
        %v791 = vld [vmem:[#allocation6 + $0x1f8] sm:$0xff]
        %v792 = vld [vmem:[#allocation6 + $0x200] sm:$0xf]
        %v793 = vld [vmem:[#allocation6 + $0x204] sm:$0xff]
        %v794 = vld [vmem:[#allocation6 + $0x20c] sm:$0xf]
        %v795 = vld [vmem:[#allocation6 + $0x210] sm:$0xff]
        %v796 = vld [vmem:[#allocation6 + $0x218] sm:$0xf]
        %v797 = vld [vmem:[#allocation6 + $0x21c] sm:$0xff]
        %v798 = vld [vmem:[#allocation6 + $0x224] sm:$0xf]
        %v799 = vld [vmem:[#allocation6 + $0x228] sm:$0xff]
        %v800 = vld [vmem:[#allocation6 + $0x230] sm:$0xf]
        %v801 = vld [vmem:[#allocation6 + $0x234] sm:$0xff]
        %v802 = vld [vmem:[#allocation6 + $0x23c] sm:$0xf]
        %v803 = vpack.c.b16 %v468, %v467
        %v804 = vpack.c.b16 %v564, %v563
        %v805 = vpack.c.b16 %v660, %v659
        %v806 = vpack.c.b16 %v470, %v469
        %v807 = vpack.c.b16 %v566, %v565
        %v808 = vpack.c.b16 %v662, %v661
        %v809 = vpack.c.b16 %v472, %v471
        %v810 = vpack.c.b16 %v568, %v567
        %v811 = vpack.c.b16 %v664, %v663
        %v812 = vpack.c.b16 %v474, %v473
        %v813 = vpack.c.b16 %v570, %v569
        %v814 = vpack.c.b16 %v666, %v665
        %v815 = vpack.c.b16 %v476, %v475
        %v816 = vpack.c.b16 %v572, %v571
        %v817 = vpack.c.b16 %v668, %v667
        %v818 = vpack.c.b16 %v478, %v477
        %v819 = vpack.c.b16 %v574, %v573
        %v820 = vpack.c.b16 %v670, %v669
        %v821 = vpack.c.b16 %v480, %v479
        %v822 = vpack.c.b16 %v576, %v575
        %v823 = vpack.c.b16 %v672, %v671
        %v824 = vpack.c.b16 %v482, %v481
        %v825 = vpack.c.b16 %v578, %v577
        %v826 = vpack.c.b16 %v674, %v673
        %v827 = vpack.c.b16 %v484, %v483
        %v828 = vpack.c.b16 %v580, %v579
        %v829 = vpack.c.b16 %v676, %v675
        %v830 = vpack.c.b16 %v486, %v485
        %v831 = vpack.c.b16 %v582, %v581
        %v832 = vpack.c.b16 %v678, %v677
        %v833 = vpack.c.b16 %v488, %v487
        %v834 = vpack.c.b16 %v584, %v583
        %v835 = vpack.c.b16 %v680, %v679
        %v836 = vpack.c.b16 %v490, %v489
        %v837 = vpack.c.b16 %v586, %v585
        %v838 = vpack.c.b16 %v682, %v681
        %v839 = vpack.c.b16 %v492, %v491
        %v840 = vpack.c.b16 %v588, %v587
        %v841 = vpack.c.b16 %v684, %v683
        %v842 = vpack.c.b16 %v494, %v493
        %v843 = vpack.c.b16 %v590, %v589
        %v844 = vpack.c.b16 %v686, %v685
        %v845 = vpack.c.b16 %v496, %v495
        %v846 = vpack.c.b16 %v592, %v591
        %v847 = vpack.c.b16 %v688, %v687
        %v848 = vpack.c.b16 %v498, %v497
        %v849 = vpack.c.b16 %v594, %v593
        %v850 = vpack.c.b16 %v690, %v689
        %v851 = vpack.c.b16 %v500, %v499
        %v852 = vpack.c.b16 %v596, %v595
        %v853 = vpack.c.b16 %v692, %v691
        %v854 = vpack.c.b16 %v502, %v501
        %v855 = vpack.c.b16 %v598, %v597
        %v856 = vpack.c.b16 %v694, %v693
        %v857 = vpack.c.b16 %v504, %v503
        %v858 = vpack.c.b16 %v600, %v599
        %v859 = vpack.c.b16 %v696, %v695
        %v860 = vpack.c.b16 %v506, %v505
        %v861 = vpack.c.b16 %v602, %v601
        %v862 = vpack.c.b16 %v698, %v697
        %v863 = vpack.c.b16 %v508, %v507
        %v864 = vpack.c.b16 %v604, %v603
        %v865 = vpack.c.b16 %v700, %v699
        %v866 = vpack.c.b16 %v510, %v509
        %v867 = vpack.c.b16 %v606, %v605
        %v868 = vpack.c.b16 %v702, %v701
        %v869 = vpack.c.b16 %v512, %v511
        %v870 = vpack.c.b16 %v608, %v607
        %v871 = vpack.c.b16 %v704, %v703
        %v872 = vpack.c.b16 %v514, %v513
        %v873 = vpack.c.b16 %v610, %v609
        %v874 = vpack.c.b16 %v706, %v705
        %v1043 = vunpack.c.l.b16 %v707
        %v1044 = vunpack.c.h.b16 %v707
        %v1045 = vunpack.c.l.b16 %v708
        %v1046 = vunpack.c.l.b16 %v709
        %v1047 = vunpack.c.h.b16 %v709
        %v1048 = vunpack.c.l.b16 %v710
        %v1049 = vunpack.c.l.b16 %v711
        %v1050 = vunpack.c.h.b16 %v711
        %v1051 = vunpack.c.l.b16 %v712
        %v1052 = vunpack.c.l.b16 %v713
        %v1053 = vunpack.c.h.b16 %v713
        %v1054 = vunpack.c.l.b16 %v714
        %v1055 = vunpack.c.l.b16 %v715
        %v1056 = vunpack.c.h.b16 %v715
        %v1057 = vunpack.c.l.b16 %v716
        %v1058 = vunpack.c.l.b16 %v717
        %v1059 = vunpack.c.h.b16 %v717
        %v1060 = vunpack.c.l.b16 %v718
        %v1061 = vunpack.c.l.b16 %v719
        %v1062 = vunpack.c.h.b16 %v719
        %v1063 = vunpack.c.l.b16 %v720
        %v1064 = vunpack.c.l.b16 %v721
        %v1065 = vunpack.c.h.b16 %v721
        %v1066 = vunpack.c.l.b16 %v722
        %v1067 = vunpack.c.l.b16 %v723
        %v1068 = vunpack.c.h.b16 %v723
        %v1069 = vunpack.c.l.b16 %v724
        %v1070 = vunpack.c.l.b16 %v725
        %v1071 = vunpack.c.h.b16 %v725
        %v1072 = vunpack.c.l.b16 %v726
        %v1073 = vunpack.c.l.b16 %v727
        %v1074 = vunpack.c.h.b16 %v727
        %v1075 = vunpack.c.l.b16 %v728
        %v1076 = vunpack.c.l.b16 %v729
        %v1077 = vunpack.c.h.b16 %v729
        %v1078 = vunpack.c.l.b16 %v730
        %v1079 = vunpack.c.l.b16 %v731
        %v1080 = vunpack.c.h.b16 %v731
        %v1081 = vunpack.c.l.b16 %v732
        %v1082 = vunpack.c.l.b16 %v733
        %v1083 = vunpack.c.h.b16 %v733
        %v1084 = vunpack.c.l.b16 %v734
        %v1085 = vunpack.c.l.b16 %v735
        %v1086 = vunpack.c.h.b16 %v735
        %v1087 = vunpack.c.l.b16 %v736
        %v1088 = vunpack.c.l.b16 %v737
        %v1089 = vunpack.c.h.b16 %v737
        %v1090 = vunpack.c.l.b16 %v738
        %v1091 = vunpack.c.l.b16 %v739
        %v1092 = vunpack.c.h.b16 %v739
        %v1093 = vunpack.c.l.b16 %v740
        %v1094 = vunpack.c.l.b16 %v741
        %v1095 = vunpack.c.h.b16 %v741
        %v1096 = vunpack.c.l.b16 %v742
        %v1097 = vunpack.c.l.b16 %v743
        %v1098 = vunpack.c.h.b16 %v743
        %v1099 = vunpack.c.l.b16 %v744
        %v1100 = vunpack.c.l.b16 %v745
        %v1101 = vunpack.c.h.b16 %v745
        %v1102 = vunpack.c.l.b16 %v746
        %v1103 = vunpack.c.l.b16 %v747
        %v1104 = vunpack.c.h.b16 %v747
        %v1105 = vunpack.c.l.b16 %v748
        %v1106 = vunpack.c.l.b16 %v749
        %v1107 = vunpack.c.h.b16 %v749
        %v1108 = vunpack.c.l.b16 %v750
        %v1109 = vunpack.c.l.b16 %v751
        %v1110 = vunpack.c.h.b16 %v751
        %v1111 = vunpack.c.l.b16 %v752
        %v1112 = vunpack.c.l.b16 %v753
        %v1113 = vunpack.c.h.b16 %v753
        %v1114 = vunpack.c.l.b16 %v754
        %v1115 = vunpack.c.l.b16 %v755
        %v1116 = vunpack.c.h.b16 %v755
        %v1117 = vunpack.c.l.b16 %v756
        %v1118 = vunpack.c.l.b16 %v757
        %v1119 = vunpack.c.h.b16 %v757
        %v1120 = vunpack.c.l.b16 %v758
        %v1121 = vunpack.c.l.b16 %v759
        %v1122 = vunpack.c.h.b16 %v759
        %v1123 = vunpack.c.l.b16 %v760
        %v1124 = vunpack.c.l.b16 %v761
        %v1125 = vunpack.c.h.b16 %v761
        %v1126 = vunpack.c.l.b16 %v762
        %v1127 = vunpack.c.l.b16 %v763
        %v1128 = vunpack.c.h.b16 %v763
        %v1129 = vunpack.c.l.b16 %v764
        %v1130 = vunpack.c.l.b16 %v765
        %v1131 = vunpack.c.h.b16 %v765
        %v1132 = vunpack.c.l.b16 %v766
        %v1133 = vunpack.c.l.b16 %v767
        %v1134 = vunpack.c.h.b16 %v767
        %v1135 = vunpack.c.l.b16 %v768
        %v1136 = vunpack.c.l.b16 %v769
        %v1137 = vunpack.c.h.b16 %v769
        %v1138 = vunpack.c.l.b16 %v770
        %v1139 = vunpack.c.l.b16 %v771
        %v1140 = vunpack.c.h.b16 %v771
        %v1141 = vunpack.c.l.b16 %v772
        %v1142 = vunpack.c.l.b16 %v773
        %v1143 = vunpack.c.h.b16 %v773
        %v1144 = vunpack.c.l.b16 %v774
        %v1145 = vunpack.c.l.b16 %v775
        %v1146 = vunpack.c.h.b16 %v775
        %v1147 = vunpack.c.l.b16 %v776
        %v1148 = vunpack.c.l.b16 %v777
        %v1149 = vunpack.c.h.b16 %v777
        %v1150 = vunpack.c.l.b16 %v778
        %v1151 = vunpack.c.l.b16 %v779
        %v1152 = vunpack.c.h.b16 %v779
        %v1153 = vunpack.c.l.b16 %v780
        %v1154 = vunpack.c.l.b16 %v781
        %v1155 = vunpack.c.h.b16 %v781
        %v1156 = vunpack.c.l.b16 %v782
        %v1157 = vunpack.c.l.b16 %v783
        %v1158 = vunpack.c.h.b16 %v783
        %v1159 = vunpack.c.l.b16 %v784
        %v1160 = vunpack.c.l.b16 %v785
        %v1161 = vunpack.c.h.b16 %v785
        %v1162 = vunpack.c.l.b16 %v786
        %v1163 = vunpack.c.l.b16 %v787
        %v1164 = vunpack.c.h.b16 %v787
        %v1165 = vunpack.c.l.b16 %v788
        %v1166 = vunpack.c.l.b16 %v789
        %v1167 = vunpack.c.h.b16 %v789
        %v1168 = vunpack.c.l.b16 %v790
        %v1169 = vunpack.c.l.b16 %v791
        %v1170 = vunpack.c.h.b16 %v791
        %v1171 = vunpack.c.l.b16 %v792
        %v1172 = vunpack.c.l.b16 %v793
        %v1173 = vunpack.c.h.b16 %v793
        %v1174 = vunpack.c.l.b16 %v794
        %v1175 = vunpack.c.l.b16 %v795
        %v1176 = vunpack.c.h.b16 %v795
        %v1177 = vunpack.c.l.b16 %v796
        %v1178 = vunpack.c.l.b16 %v797
        %v1179 = vunpack.c.h.b16 %v797
        %v1180 = vunpack.c.l.b16 %v798
        %v1181 = vunpack.c.l.b16 %v799
        %v1182 = vunpack.c.h.b16 %v799
        %v1183 = vunpack.c.l.b16 %v800
        %v1184 = vunpack.c.l.b16 %v801
        %v1185 = vunpack.c.h.b16 %v801
        %v1186 = vunpack.c.l.b16 %v802
        %v1187 = vpack.c.b16 %v1046, %v1043
        %v1188 = vpack.c.b16 %v1047, %v1044
        %v1189 = vpack.c.b16 %v1048, %v1045
        %v1190 = vpack.c.b16 %v1052, %v1049
        %v1191 = vpack.c.b16 %v1053, %v1050
        %v1192 = vpack.c.b16 %v1054, %v1051
        %v1193 = vpack.c.b16 %v1058, %v1055
        %v1194 = vpack.c.b16 %v1059, %v1056
        %v1195 = vpack.c.b16 %v1060, %v1057
        %v1196 = vpack.c.b16 %v1064, %v1061
        %v1197 = vpack.c.b16 %v1065, %v1062
        %v1198 = vpack.c.b16 %v1066, %v1063
        %v1199 = vpack.c.b16 %v1070, %v1067
        %v1200 = vpack.c.b16 %v1071, %v1068
        %v1201 = vpack.c.b16 %v1072, %v1069
        %v1202 = vpack.c.b16 %v1076, %v1073
        %v1203 = vpack.c.b16 %v1077, %v1074
        %v1204 = vpack.c.b16 %v1078, %v1075
        %v1205 = vpack.c.b16 %v1082, %v1079
        %v1206 = vpack.c.b16 %v1083, %v1080
        %v1207 = vpack.c.b16 %v1084, %v1081
        %v1208 = vpack.c.b16 %v1088, %v1085
        %v1209 = vpack.c.b16 %v1089, %v1086
        %v1210 = vpack.c.b16 %v1090, %v1087
        %v1211 = vpack.c.b16 %v1094, %v1091
        %v1212 = vpack.c.b16 %v1095, %v1092
        %v1213 = vpack.c.b16 %v1096, %v1093
        %v1214 = vpack.c.b16 %v1100, %v1097
        %v1215 = vpack.c.b16 %v1101, %v1098
        %v1216 = vpack.c.b16 %v1102, %v1099
        %v1217 = vpack.c.b16 %v1106, %v1103
        %v1218 = vpack.c.b16 %v1107, %v1104
        %v1219 = vpack.c.b16 %v1108, %v1105
        %v1220 = vpack.c.b16 %v1112, %v1109
        %v1221 = vpack.c.b16 %v1113, %v1110
        %v1222 = vpack.c.b16 %v1114, %v1111
        %v1223 = vpack.c.b16 %v1118, %v1115
        %v1224 = vpack.c.b16 %v1119, %v1116
        %v1225 = vpack.c.b16 %v1120, %v1117
        %v1226 = vpack.c.b16 %v1124, %v1121
        %v1227 = vpack.c.b16 %v1125, %v1122
        %v1228 = vpack.c.b16 %v1126, %v1123
        %v1229 = vpack.c.b16 %v1130, %v1127
        %v1230 = vpack.c.b16 %v1131, %v1128
        %v1231 = vpack.c.b16 %v1132, %v1129
        %v1232 = vpack.c.b16 %v1136, %v1133
        %v1233 = vpack.c.b16 %v1137, %v1134
        %v1234 = vpack.c.b16 %v1138, %v1135
        %v1235 = vpack.c.b16 %v1142, %v1139
        %v1236 = vpack.c.b16 %v1143, %v1140
        %v1237 = vpack.c.b16 %v1144, %v1141
        %v1238 = vpack.c.b16 %v1148, %v1145
        %v1239 = vpack.c.b16 %v1149, %v1146
        %v1240 = vpack.c.b16 %v1150, %v1147
        %v1241 = vpack.c.b16 %v1154, %v1151
        %v1242 = vpack.c.b16 %v1155, %v1152
        %v1243 = vpack.c.b16 %v1156, %v1153
        %v1244 = vpack.c.b16 %v1160, %v1157
        %v1245 = vpack.c.b16 %v1161, %v1158
        %v1246 = vpack.c.b16 %v1162, %v1159
        %v1247 = vpack.c.b16 %v1166, %v1163
        %v1248 = vpack.c.b16 %v1167, %v1164
        %v1249 = vpack.c.b16 %v1168, %v1165
        %v1250 = vpack.c.b16 %v1172, %v1169
        %v1251 = vpack.c.b16 %v1173, %v1170
        %v1252 = vpack.c.b16 %v1174, %v1171
        %v1253 = vpack.c.b16 %v1178, %v1175
        %v1254 = vpack.c.b16 %v1179, %v1176
        %v1255 = vpack.c.b16 %v1180, %v1177
        %v1256 = vpack.c.b16 %v1184, %v1181
        %v1257 = vpack.c.b16 %v1185, %v1182
        %v1258 = vpack.c.b16 %v1186, %v1183
        %1331 = vmatprep.subr.bf16.mxu0 %v1188
        %1332 = vmatpush1.bf16.msra.mxu0 %v1187
        %1333 = vmatprep.subr.bf16.mxu0 %v1191
        %1334 = vmatpush1.bf16.msra.mxu0 %v1190
        %1335 = vmatprep.subr.bf16.mxu0 %v1194
        %1336 = vmatpush1.bf16.msra.mxu0 %v1193
        %1337 = vmatprep.subr.bf16.mxu0 %v1197
        %1338 = vmatpush1.bf16.msra.mxu0 %v1196
        %1339 = vmatprep.subr.bf16.mxu0 %v1200
        %1340 = vmatpush1.bf16.msra.mxu0 %v1199
        %1341 = vmatprep.subr.bf16.mxu0 %v1203
        %1342 = vmatpush1.bf16.msra.mxu0 %v1202
        %1343 = vmatprep.subr.bf16.mxu0 %v1206
        %1344 = vmatpush1.bf16.msra.mxu0 %v1205
        %1345 = vmatprep.subr.bf16.mxu0 %v1209
        %1346 = vmatpush1.bf16.msra.mxu0 %v1208
        %1347 = vmatprep.subr.bf16.mxu0 %v1212
        %1348 = vmatpush1.bf16.msra.mxu0 %v1211
        %1349 = vmatprep.subr.bf16.mxu0 %v1215
        %1350 = vmatpush1.bf16.msra.mxu0 %v1214
        %1351 = vmatprep.subr.bf16.mxu0 %v1218
        %1352 = vmatpush1.bf16.msra.mxu0 %v1217
        %1353 = vmatprep.subr.bf16.mxu0 %v1221
        %1354 = vmatpush1.bf16.msra.mxu0 %v1220
        %1355 = vmatprep.subr.bf16.mxu0 %v1224
        %1356 = vmatpush1.bf16.msra.mxu0 %v1223
        %1357 = vmatprep.subr.bf16.mxu0 %v1227
        %1358 = vmatpush1.bf16.msra.mxu0 %v1226
        %1359 = vmatprep.subr.bf16.mxu0 %v1230
        %1360 = vmatpush1.bf16.msra.mxu0 %v1229
        %1361 = vmatprep.subr.bf16.mxu0 %v1233
        %1362 = vmatpush1.bf16.msra.mxu0 %v1232
        %1363 = vmatprep.mubr.bf16.mxu0 %v804
        %1364 = vmatmul.mubr.bf16.gmra.mrb[0].mxu0 %v803
        %v1365 = vpop.f32.mrb[0].mxu0
        %v1366 = vadd.f32 0.0, %v1365
        %v1367 = vpop.f32.mrb[0].mxu0
        %v1368 = vadd.f32 0.0, %v1367
        %v1369 = vpop.f32.mrb[0].mxu0
        %v1370 = vadd.f32 0.0, %v1369
        %v1371 = vpop.f32.mrb[0].mxu0
        %v1372 = vadd.f32 0.0, %v1371
        %1373 = vmatprep.mubr.bf16.mxu0 %v807
        %1374 = vmatmul.mubr.bf16.gmra.mrb[0].mxu0 %v806
        %v1375 = vpop.f32.mrb[0].mxu0
        %v1376 = vadd.f32 0.0, %v1375
        %v1377 = vpop.f32.mrb[0].mxu0
        %v1378 = vadd.f32 0.0, %v1377
        %v1379 = vpop.f32.mrb[0].mxu0
        %v1380 = vadd.f32 0.0, %v1379
        %v1381 = vpop.f32.mrb[0].mxu0
        %v1382 = vadd.f32 0.0, %v1381
        %1383 = vmatprep.mubr.bf16.mxu0 %v810
        %1384 = vmatmul.mubr.bf16.gmra.mrb[0].mxu0 %v809
        %v1385 = vpop.f32.mrb[0].mxu0
        %v1386 = vadd.f32 0.0, %v1385
        %v1387 = vpop.f32.mrb[0].mxu0
        %v1388 = vadd.f32 0.0, %v1387
        %v1389 = vpop.f32.mrb[0].mxu0
        %v1390 = vadd.f32 0.0, %v1389
        %v1391 = vpop.f32.mrb[0].mxu0
        %v1392 = vadd.f32 0.0, %v1391
        %1393 = vmatprep.mubr.bf16.mxu0 %v813
        %1394 = vmatmul.mubr.bf16.gmra.mrb[0].mxu0 %v812
        %v1395 = vpop.f32.mrb[0].mxu0
        %v1396 = vadd.f32 0.0, %v1395
        %v1397 = vpop.f32.mrb[0].mxu0
        %v1398 = vadd.f32 0.0, %v1397
        %v1399 = vpop.f32.mrb[0].mxu0
        %v1400 = vadd.f32 0.0, %v1399
        %v1401 = vpop.f32.mrb[0].mxu0
        %v1402 = vadd.f32 0.0, %v1401
        %1403 = vmatprep.mubr.bf16.mxu0 %v816
        %1404 = vmatmul.mubr.bf16.gmra.mrb[0].mxu0 %v815
        %v1405 = vpop.f32.mrb[0].mxu0
        %v1406 = vadd.f32 0.0, %v1405
        %v1407 = vpop.f32.mrb[0].mxu0
        %v1408 = vadd.f32 0.0, %v1407
        %v1409 = vpop.f32.mrb[0].mxu0
        %v1410 = vadd.f32 0.0, %v1409
        %v1411 = vpop.f32.mrb[0].mxu0
        %v1412 = vadd.f32 0.0, %v1411
        %1413 = vmatprep.mubr.bf16.mxu0 %v819
        %1414 = vmatmul.mubr.bf16.gmra.mrb[0].mxu0 %v818
        %v1415 = vpop.f32.mrb[0].mxu0
        %v1416 = vadd.f32 0.0, %v1415
        %v1417 = vpop.f32.mrb[0].mxu0
        %v1418 = vadd.f32 0.0, %v1417
        %v1419 = vpop.f32.mrb[0].mxu0
        %v1420 = vadd.f32 0.0, %v1419
        %v1421 = vpop.f32.mrb[0].mxu0
        %v1422 = vadd.f32 0.0, %v1421
        %1423 = vmatprep.mubr.bf16.mxu0 %v822
        %1424 = vmatmul.mubr.bf16.gmra.mrb[0].mxu0 %v821
        %v1425 = vpop.f32.mrb[0].mxu0
        %v1426 = vadd.f32 0.0, %v1425
        %v1427 = vpop.f32.mrb[0].mxu0
        %v1428 = vadd.f32 0.0, %v1427
        %v1429 = vpop.f32.mrb[0].mxu0
        %v1430 = vadd.f32 0.0, %v1429
        %v1431 = vpop.f32.mrb[0].mxu0
        %v1432 = vadd.f32 0.0, %v1431
        %1433 = vmatprep.mubr.bf16.mxu0 %v825
        %1434 = vmatmul.mubr.bf16.gmra.mrb[0].mxu0 %v824
        %v1435 = vpop.f32.mrb[0].mxu0
        %v1436 = vadd.f32 0.0, %v1435
        %v1437 = vpop.f32.mrb[0].mxu0
        %v1438 = vadd.f32 0.0, %v1437
        %v1439 = vpop.f32.mrb[0].mxu0
        %v1440 = vadd.f32 0.0, %v1439
        %v1441 = vpop.f32.mrb[0].mxu0
        %v1442 = vadd.f32 0.0, %v1441
        %1443 = vmatprep.mubr.bf16.mxu0 %v828
        %1444 = vmatmul.mubr.bf16.gmra.mrb[0].mxu0 %v827
        %v1445 = vpop.f32.mrb[0].mxu0
        %v1446 = vadd.f32 0.0, %v1445
        %v1447 = vpop.f32.mrb[0].mxu0
        %v1448 = vadd.f32 0.0, %v1447
        %v1449 = vpop.f32.mrb[0].mxu0
        %v1450 = vadd.f32 0.0, %v1449
        %v1451 = vpop.f32.mrb[0].mxu0
        %v1452 = vadd.f32 0.0, %v1451
        %1453 = vmatprep.mubr.bf16.mxu0 %v831
        %1454 = vmatmul.mubr.bf16.gmra.mrb[0].mxu0 %v830
        %v1455 = vpop.f32.mrb[0].mxu0
        %v1456 = vadd.f32 0.0, %v1455
        %v1457 = vpop.f32.mrb[0].mxu0
        %v1458 = vadd.f32 0.0, %v1457
        %v1459 = vpop.f32.mrb[0].mxu0
        %v1460 = vadd.f32 0.0, %v1459
        %v1461 = vpop.f32.mrb[0].mxu0
        %v1462 = vadd.f32 0.0, %v1461
        %1463 = vmatprep.mubr.bf16.mxu0 %v834
        %1464 = vmatmul.mubr.bf16.gmra.mrb[0].mxu0 %v833
        %v1465 = vpop.f32.mrb[0].mxu0
        %v1466 = vadd.f32 0.0, %v1465
        %v1467 = vpop.f32.mrb[0].mxu0
        %v1468 = vadd.f32 0.0, %v1467
        %v1469 = vpop.f32.mrb[0].mxu0
        %v1470 = vadd.f32 0.0, %v1469
        %v1471 = vpop.f32.mrb[0].mxu0
        %v1472 = vadd.f32 0.0, %v1471
        %1473 = vmatprep.mubr.bf16.mxu0 %v837
        %1474 = vmatmul.mubr.bf16.gmra.mrb[0].mxu0 %v836
        %v1475 = vpop.f32.mrb[0].mxu0
        %v1476 = vadd.f32 0.0, %v1475
        %v1477 = vpop.f32.mrb[0].mxu0
        %v1478 = vadd.f32 0.0, %v1477
        %v1479 = vpop.f32.mrb[0].mxu0
        %v1480 = vadd.f32 0.0, %v1479
        %v1481 = vpop.f32.mrb[0].mxu0
        %v1482 = vadd.f32 0.0, %v1481
        %1483 = vmatprep.mubr.bf16.mxu0 %v840
        %1484 = vmatmul.mubr.bf16.gmra.mrb[0].mxu0 %v839
        %v1485 = vpop.f32.mrb[0].mxu0
        %v1486 = vadd.f32 0.0, %v1485
        %v1487 = vpop.f32.mrb[0].mxu0
        %v1488 = vadd.f32 0.0, %v1487
        %v1489 = vpop.f32.mrb[0].mxu0
        %v1490 = vadd.f32 0.0, %v1489
        %v1491 = vpop.f32.mrb[0].mxu0
        %v1492 = vadd.f32 0.0, %v1491
        %1493 = vmatprep.mubr.bf16.mxu0 %v843
        %1494 = vmatmul.mubr.bf16.gmra.mrb[0].mxu0 %v842
        %v1495 = vpop.f32.mrb[0].mxu0
        %v1496 = vadd.f32 0.0, %v1495
        %v1497 = vpop.f32.mrb[0].mxu0
        %v1498 = vadd.f32 0.0, %v1497
        %v1499 = vpop.f32.mrb[0].mxu0
        %v1500 = vadd.f32 0.0, %v1499
        %v1501 = vpop.f32.mrb[0].mxu0
        %v1502 = vadd.f32 0.0, %v1501
        %1503 = vmatprep.mubr.bf16.mxu0 %v846
        %1504 = vmatmul.mubr.bf16.gmra.mrb[0].mxu0 %v845
        %v1505 = vpop.f32.mrb[0].mxu0
        %v1506 = vadd.f32 0.0, %v1505
        %v1507 = vpop.f32.mrb[0].mxu0
        %v1508 = vadd.f32 0.0, %v1507
        %v1509 = vpop.f32.mrb[0].mxu0
        %v1510 = vadd.f32 0.0, %v1509
        %v1511 = vpop.f32.mrb[0].mxu0
        %v1512 = vadd.f32 0.0, %v1511
        %1513 = vmatprep.mubr.bf16.mxu0 %v849
        %1514 = vmatmul.mubr.bf16.gmra.mrb[0].mxu0 %v848
        %v1515 = vpop.f32.mrb[0].mxu0
        %v1516 = vadd.f32 0.0, %v1515
        %v1517 = vpop.f32.mrb[0].mxu0
        %v1518 = vadd.f32 0.0, %v1517
        %v1519 = vpop.f32.mrb[0].mxu0
        %v1520 = vadd.f32 0.0, %v1519
        %v1521 = vpop.f32.mrb[0].mxu0
        %v1522 = vadd.f32 0.0, %v1521
        %1523 = vmatprep.mubr.bf16.mxu0 %v852
        %1524 = vmatmul.mubr.bf16.gmra.mrb[0].mxu0 %v851
        %v1525 = vpop.f32.mrb[0].mxu0
        %v1526 = vadd.f32 0.0, %v1525
        %v1527 = vpop.f32.mrb[0].mxu0
        %v1528 = vadd.f32 0.0, %v1527
        %v1529 = vpop.f32.mrb[0].mxu0
        %v1530 = vadd.f32 0.0, %v1529
        %v1531 = vpop.f32.mrb[0].mxu0
        %v1532 = vadd.f32 0.0, %v1531
        %1533 = vmatprep.mubr.bf16.mxu0 %v855
        %1534 = vmatmul.mubr.bf16.gmra.mrb[0].mxu0 %v854
        %v1535 = vpop.f32.mrb[0].mxu0
        %v1536 = vadd.f32 0.0, %v1535
        %v1537 = vpop.f32.mrb[0].mxu0
        %v1538 = vadd.f32 0.0, %v1537
        %v1539 = vpop.f32.mrb[0].mxu0
        %v1540 = vadd.f32 0.0, %v1539
        %v1541 = vpop.f32.mrb[0].mxu0
        %v1542 = vadd.f32 0.0, %v1541
        %1543 = vmatprep.mubr.bf16.mxu0 %v858
        %1544 = vmatmul.mubr.bf16.gmra.mrb[0].mxu0 %v857
        %v1545 = vpop.f32.mrb[0].mxu0
        %v1546 = vadd.f32 0.0, %v1545
        %v1547 = vpop.f32.mrb[0].mxu0
        %v1548 = vadd.f32 0.0, %v1547
        %v1549 = vpop.f32.mrb[0].mxu0
        %v1550 = vadd.f32 0.0, %v1549
        %v1551 = vpop.f32.mrb[0].mxu0
        %v1552 = vadd.f32 0.0, %v1551
        %1553 = vmatprep.mubr.bf16.mxu0 %v861
        %1554 = vmatmul.mubr.bf16.gmra.mrb[0].mxu0 %v860
        %v1555 = vpop.f32.mrb[0].mxu0
        %v1556 = vadd.f32 0.0, %v1555
        %v1557 = vpop.f32.mrb[0].mxu0
        %v1558 = vadd.f32 0.0, %v1557
        %v1559 = vpop.f32.mrb[0].mxu0
        %v1560 = vadd.f32 0.0, %v1559
        %v1561 = vpop.f32.mrb[0].mxu0
        %v1562 = vadd.f32 0.0, %v1561
        %1563 = vmatprep.mubr.bf16.mxu0 %v864
        %1564 = vmatmul.mubr.bf16.gmra.mrb[0].mxu0 %v863
        %v1565 = vpop.f32.mrb[0].mxu0
        %v1566 = vadd.f32 0.0, %v1565
        %v1567 = vpop.f32.mrb[0].mxu0
        %v1568 = vadd.f32 0.0, %v1567
        %v1569 = vpop.f32.mrb[0].mxu0
        %v1570 = vadd.f32 0.0, %v1569
        %v1571 = vpop.f32.mrb[0].mxu0
        %v1572 = vadd.f32 0.0, %v1571
        %1573 = vmatprep.mubr.bf16.mxu0 %v867
        %1574 = vmatmul.mubr.bf16.gmra.mrb[0].mxu0 %v866
        %v1575 = vpop.f32.mrb[0].mxu0
        %v1576 = vadd.f32 0.0, %v1575
        %v1577 = vpop.f32.mrb[0].mxu0
        %v1578 = vadd.f32 0.0, %v1577
        %v1579 = vpop.f32.mrb[0].mxu0
        %v1580 = vadd.f32 0.0, %v1579
        %v1581 = vpop.f32.mrb[0].mxu0
        %v1582 = vadd.f32 0.0, %v1581
        %1583 = vmatprep.mubr.bf16.mxu0 %v870
        %1584 = vmatmul.mubr.bf16.gmra.mrb[0].mxu0 %v869
        %v1585 = vpop.f32.mrb[0].mxu0
        %v1586 = vadd.f32 0.0, %v1585
        %v1587 = vpop.f32.mrb[0].mxu0
        %v1588 = vadd.f32 0.0, %v1587
        %v1589 = vpop.f32.mrb[0].mxu0
        %v1590 = vadd.f32 0.0, %v1589
        %v1591 = vpop.f32.mrb[0].mxu0
        %v1592 = vadd.f32 0.0, %v1591
        %1593 = vmatprep.mubr.bf16.mxu0 %v873
        %1594 = vmatmul.mubr.bf16.gmra.mrb[0].mxu0 %v872
        %v1595 = vpop.f32.mrb[0].mxu0
        %v1596 = vadd.f32 0.0, %v1595
        %v1597 = vpop.f32.mrb[0].mxu0
        %v1598 = vadd.f32 0.0, %v1597
        %v1599 = vpop.f32.mrb[0].mxu0
        %v1600 = vadd.f32 0.0, %v1599
        %v1601 = vpop.f32.mrb[0].mxu0
        %v1602 = vadd.f32 0.0, %v1601
        %1603 = vdwg.mxu0
        %1604 = vmatprep.subr.bf16.mxu0 %v1236
        %1605 = vmatpush1.bf16.msra.mxu0 %v1235
        %1606 = vmatprep.subr.bf16.mxu0 %v1239
        %1607 = vmatpush1.bf16.msra.mxu0 %v1238
        %1608 = vmatprep.subr.bf16.mxu0 %v1242
        %1609 = vmatpush1.bf16.msra.mxu0 %v1241
        %1610 = vmatprep.subr.bf16.mxu0 %v1245
        %1611 = vmatpush1.bf16.msra.mxu0 %v1244
        %1612 = vmatprep.subr.bf16.mxu0 %v1248
        %1613 = vmatpush1.bf16.msra.mxu0 %v1247
        %1614 = vmatprep.subr.bf16.mxu0 %v1251
        %1615 = vmatpush1.bf16.msra.mxu0 %v1250
        %1616 = vmatprep.subr.bf16.mxu0 %v1254
        %1617 = vmatpush1.bf16.msra.mxu0 %v1253
        %1618 = vmatprep.subr.bf16.mxu0 %v1257
        %1619 = vmatpush1.bf16.msra.mxu0 %v1256
        %1620 = vmatprep.subr.bf16.mxu0 0
        %1621 = vmatpush1.bf16.msra.mxu0 0
        %1622 = vmatprep.subr.bf16.mxu0 0
        %1623 = vmatpush1.bf16.msra.mxu0 0
        %1624 = vmatprep.subr.bf16.mxu0 0
        %1625 = vmatpush1.bf16.msra.mxu0 0
        %1626 = vmatprep.subr.bf16.mxu0 0
        %1627 = vmatpush1.bf16.msra.mxu0 0
        %1628 = vmatprep.subr.bf16.mxu0 0
        %1629 = vmatpush1.bf16.msra.mxu0 0
        %1630 = vmatprep.subr.bf16.mxu0 0
        %1631 = vmatpush1.bf16.msra.mxu0 0
        %1632 = vmatprep.subr.bf16.mxu0 0
        %1633 = vmatpush1.bf16.msra.mxu0 0
        %1634 = vmatprep.subr.bf16.mxu0 0
        %1635 = vmatpush1.bf16.msra.mxu0 0
        %1636 = vmatprep.mubr.bf16.mxu0 0
        %1637 = vmatmul.mubr.bf16.gmra.mrb[0].mxu0 %v805
        %v1638 = vpop.f32.mrb[0].mxu0
        %v1639 = vadd.f32 %v1366, %v1638
        %v1640 = vpop.f32.mrb[0].mxu0
        %v1641 = vadd.f32 %v1368, %v1640
        %v1642 = vpop.f32.mrb[0].mxu0
        %v1643 = vadd.f32 %v1370, %v1642
        %v1644 = vpop.f32.mrb[0].mxu0
        %v1645 = vadd.f32 %v1372, %v1644
        %1646 = vmatprep.mubr.bf16.mxu0 0
        %1647 = vmatmul.mubr.bf16.gmra.mrb[0].mxu0 %v808
        %v1648 = vpop.f32.mrb[0].mxu0
        %v1649 = vadd.f32 %v1376, %v1648
        %v1650 = vpop.f32.mrb[0].mxu0
        %v1651 = vadd.f32 %v1378, %v1650
        %v1652 = vpop.f32.mrb[0].mxu0
        %v1653 = vadd.f32 %v1380, %v1652
        %v1654 = vpop.f32.mrb[0].mxu0
        %v1655 = vadd.f32 %v1382, %v1654
        %1656 = vmatprep.mubr.bf16.mxu0 0
        %1657 = vmatmul.mubr.bf16.gmra.mrb[0].mxu0 %v811
        %v1658 = vpop.f32.mrb[0].mxu0
        %v1659 = vadd.f32 %v1386, %v1658
        %v1660 = vpop.f32.mrb[0].mxu0
        %v1661 = vadd.f32 %v1388, %v1660
        %v1662 = vpop.f32.mrb[0].mxu0
        %v1663 = vadd.f32 %v1390, %v1662
        %v1664 = vpop.f32.mrb[0].mxu0
        %v1665 = vadd.f32 %v1392, %v1664
        %1666 = vmatprep.mubr.bf16.mxu0 0
        %1667 = vmatmul.mubr.bf16.gmra.mrb[0].mxu0 %v814
        %v1668 = vpop.f32.mrb[0].mxu0
        %v1669 = vadd.f32 %v1396, %v1668
        %v1670 = vpop.f32.mrb[0].mxu0
        %v1671 = vadd.f32 %v1398, %v1670
        %v1672 = vpop.f32.mrb[0].mxu0
        %v1673 = vadd.f32 %v1400, %v1672
        %v1674 = vpop.f32.mrb[0].mxu0
        %v1675 = vadd.f32 %v1402, %v1674
        %1676 = vmatprep.mubr.bf16.mxu0 0
        %1677 = vmatmul.mubr.bf16.gmra.mrb[0].mxu0 %v817
        %v1678 = vpop.f32.mrb[0].mxu0
        %v1679 = vadd.f32 %v1406, %v1678
        %v1680 = vpop.f32.mrb[0].mxu0
        %v1681 = vadd.f32 %v1408, %v1680
        %v1682 = vpop.f32.mrb[0].mxu0
        %v1683 = vadd.f32 %v1410, %v1682
        %v1684 = vpop.f32.mrb[0].mxu0
        %v1685 = vadd.f32 %v1412, %v1684
        %1686 = vmatprep.mubr.bf16.mxu0 0
        %1687 = vmatmul.mubr.bf16.gmra.mrb[0].mxu0 %v820
        %v1688 = vpop.f32.mrb[0].mxu0
        %v1689 = vadd.f32 %v1416, %v1688
        %v1690 = vpop.f32.mrb[0].mxu0
        %v1691 = vadd.f32 %v1418, %v1690
        %v1692 = vpop.f32.mrb[0].mxu0
        %v1693 = vadd.f32 %v1420, %v1692
        %v1694 = vpop.f32.mrb[0].mxu0
        %v1695 = vadd.f32 %v1422, %v1694
        %1696 = vmatprep.mubr.bf16.mxu0 0
        %1697 = vmatmul.mubr.bf16.gmra.mrb[0].mxu0 %v823
        %v1698 = vpop.f32.mrb[0].mxu0
        %v1699 = vadd.f32 %v1426, %v1698
        %v1700 = vpop.f32.mrb[0].mxu0
        %v1701 = vadd.f32 %v1428, %v1700
        %v1702 = vpop.f32.mrb[0].mxu0
        %v1703 = vadd.f32 %v1430, %v1702
        %v1704 = vpop.f32.mrb[0].mxu0
        %v1705 = vadd.f32 %v1432, %v1704
        %1706 = vmatprep.mubr.bf16.mxu0 0
        %1707 = vmatmul.mubr.bf16.gmra.mrb[0].mxu0 %v826
        %v1708 = vpop.f32.mrb[0].mxu0
        %v1709 = vadd.f32 %v1436, %v1708
        %v1710 = vpop.f32.mrb[0].mxu0
        %v1711 = vadd.f32 %v1438, %v1710
        %v1712 = vpop.f32.mrb[0].mxu0
        %v1713 = vadd.f32 %v1440, %v1712
        %v1714 = vpop.f32.mrb[0].mxu0
        %v1715 = vadd.f32 %v1442, %v1714
        %1716 = vmatprep.mubr.bf16.mxu0 0
        %1717 = vmatmul.mubr.bf16.gmra.mrb[0].mxu0 %v829
        %v1718 = vpop.f32.mrb[0].mxu0
        %v1719 = vadd.f32 %v1446, %v1718
        %v1720 = vpop.f32.mrb[0].mxu0
        %v1721 = vadd.f32 %v1448, %v1720
        %v1722 = vpop.f32.mrb[0].mxu0
        %v1723 = vadd.f32 %v1450, %v1722
        %v1724 = vpop.f32.mrb[0].mxu0
        %v1725 = vadd.f32 %v1452, %v1724
        %1726 = vmatprep.mubr.bf16.mxu0 0
        %1727 = vmatmul.mubr.bf16.gmra.mrb[0].mxu0 %v832
        %v1728 = vpop.f32.mrb[0].mxu0
        %v1729 = vadd.f32 %v1456, %v1728
        %v1730 = vpop.f32.mrb[0].mxu0
        %v1731 = vadd.f32 %v1458, %v1730
        %v1732 = vpop.f32.mrb[0].mxu0
        %v1733 = vadd.f32 %v1460, %v1732
        %v1734 = vpop.f32.mrb[0].mxu0
        %v1735 = vadd.f32 %v1462, %v1734
        %1736 = vmatprep.mubr.bf16.mxu0 0
        %1737 = vmatmul.mubr.bf16.gmra.mrb[0].mxu0 %v835
        %v1738 = vpop.f32.mrb[0].mxu0
        %v1739 = vadd.f32 %v1466, %v1738
        %v1740 = vpop.f32.mrb[0].mxu0
        %v1741 = vadd.f32 %v1468, %v1740
        %v1742 = vpop.f32.mrb[0].mxu0
        %v1743 = vadd.f32 %v1470, %v1742
        %v1744 = vpop.f32.mrb[0].mxu0
        %v1745 = vadd.f32 %v1472, %v1744
        %1746 = vmatprep.mubr.bf16.mxu0 0
        %1747 = vmatmul.mubr.bf16.gmra.mrb[0].mxu0 %v838
        %v1748 = vpop.f32.mrb[0].mxu0
        %v1749 = vadd.f32 %v1476, %v1748
        %v1750 = vpop.f32.mrb[0].mxu0
        %v1751 = vadd.f32 %v1478, %v1750
        %v1752 = vpop.f32.mrb[0].mxu0
        %v1753 = vadd.f32 %v1480, %v1752
        %v1754 = vpop.f32.mrb[0].mxu0
        %v1755 = vadd.f32 %v1482, %v1754
        %1756 = vmatprep.mubr.bf16.mxu0 0
        %1757 = vmatmul.mubr.bf16.gmra.mrb[0].mxu0 %v841
        %v1758 = vpop.f32.mrb[0].mxu0
        %v1759 = vadd.f32 %v1486, %v1758
        %v1760 = vpop.f32.mrb[0].mxu0
        %v1761 = vadd.f32 %v1488, %v1760
        %v1762 = vpop.f32.mrb[0].mxu0
        %v1763 = vadd.f32 %v1490, %v1762
        %v1764 = vpop.f32.mrb[0].mxu0
        %v1765 = vadd.f32 %v1492, %v1764
        %1766 = vmatprep.mubr.bf16.mxu0 0
        %1767 = vmatmul.mubr.bf16.gmra.mrb[0].mxu0 %v844
        %v1768 = vpop.f32.mrb[0].mxu0
        %v1769 = vadd.f32 %v1496, %v1768
        %v1770 = vpop.f32.mrb[0].mxu0
        %v1771 = vadd.f32 %v1498, %v1770
        %v1772 = vpop.f32.mrb[0].mxu0
        %v1773 = vadd.f32 %v1500, %v1772
        %v1774 = vpop.f32.mrb[0].mxu0
        %v1775 = vadd.f32 %v1502, %v1774
        %1776 = vmatprep.mubr.bf16.mxu0 0
        %1777 = vmatmul.mubr.bf16.gmra.mrb[0].mxu0 %v847
        %v1778 = vpop.f32.mrb[0].mxu0
        %v1779 = vadd.f32 %v1506, %v1778
        %v1780 = vpop.f32.mrb[0].mxu0
        %v1781 = vadd.f32 %v1508, %v1780
        %v1782 = vpop.f32.mrb[0].mxu0
        %v1783 = vadd.f32 %v1510, %v1782
        %v1784 = vpop.f32.mrb[0].mxu0
        %v1785 = vadd.f32 %v1512, %v1784
        %1786 = vmatprep.mubr.bf16.mxu0 0
        %1787 = vmatmul.mubr.bf16.gmra.mrb[0].mxu0 %v850
        %v1788 = vpop.f32.mrb[0].mxu0
        %v1789 = vadd.f32 %v1516, %v1788
        %v1790 = vpop.f32.mrb[0].mxu0
        %v1791 = vadd.f32 %v1518, %v1790
        %v1792 = vpop.f32.mrb[0].mxu0
        %v1793 = vadd.f32 %v1520, %v1792
        %v1794 = vpop.f32.mrb[0].mxu0
        %v1795 = vadd.f32 %v1522, %v1794
        %1796 = vmatprep.mubr.bf16.mxu0 0
        %1797 = vmatmul.mubr.bf16.gmra.mrb[0].mxu0 %v853
        %v1798 = vpop.f32.mrb[0].mxu0
        %v1799 = vadd.f32 %v1526, %v1798
        %v1800 = vpop.f32.mrb[0].mxu0
        %v1801 = vadd.f32 %v1528, %v1800
        %v1802 = vpop.f32.mrb[0].mxu0
        %v1803 = vadd.f32 %v1530, %v1802
        %v1804 = vpop.f32.mrb[0].mxu0
        %v1805 = vadd.f32 %v1532, %v1804
        %1806 = vmatprep.mubr.bf16.mxu0 0
        %1807 = vmatmul.mubr.bf16.gmra.mrb[0].mxu0 %v856
        %v1808 = vpop.f32.mrb[0].mxu0
        %v1809 = vadd.f32 %v1536, %v1808
        %v1810 = vpop.f32.mrb[0].mxu0
        %v1811 = vadd.f32 %v1538, %v1810
        %v1812 = vpop.f32.mrb[0].mxu0
        %v1813 = vadd.f32 %v1540, %v1812
        %v1814 = vpop.f32.mrb[0].mxu0
        %v1815 = vadd.f32 %v1542, %v1814
        %1816 = vmatprep.mubr.bf16.mxu0 0
        %1817 = vmatmul.mubr.bf16.gmra.mrb[0].mxu0 %v859
        %v1818 = vpop.f32.mrb[0].mxu0
        %v1819 = vadd.f32 %v1546, %v1818
        %v1820 = vpop.f32.mrb[0].mxu0
        %v1821 = vadd.f32 %v1548, %v1820
        %v1822 = vpop.f32.mrb[0].mxu0
        %v1823 = vadd.f32 %v1550, %v1822
        %v1824 = vpop.f32.mrb[0].mxu0
        %v1825 = vadd.f32 %v1552, %v1824
        %1826 = vmatprep.mubr.bf16.mxu0 0
        %1827 = vmatmul.mubr.bf16.gmra.mrb[0].mxu0 %v862
        %v1828 = vpop.f32.mrb[0].mxu0
        %v1829 = vadd.f32 %v1556, %v1828
        %v1830 = vpop.f32.mrb[0].mxu0
        %v1831 = vadd.f32 %v1558, %v1830
        %v1832 = vpop.f32.mrb[0].mxu0
        %v1833 = vadd.f32 %v1560, %v1832
        %v1834 = vpop.f32.mrb[0].mxu0
        %v1835 = vadd.f32 %v1562, %v1834
        %1836 = vmatprep.mubr.bf16.mxu0 0
        %1837 = vmatmul.mubr.bf16.gmra.mrb[0].mxu0 %v865
        %v1838 = vpop.f32.mrb[0].mxu0
        %v1839 = vadd.f32 %v1566, %v1838
        %v1840 = vpop.f32.mrb[0].mxu0
        %v1841 = vadd.f32 %v1568, %v1840
        %v1842 = vpop.f32.mrb[0].mxu0
        %v1843 = vadd.f32 %v1570, %v1842
        %v1844 = vpop.f32.mrb[0].mxu0
        %v1845 = vadd.f32 %v1572, %v1844
        %1846 = vmatprep.mubr.bf16.mxu0 0
        %1847 = vmatmul.mubr.bf16.gmra.mrb[0].mxu0 %v868
        %v1848 = vpop.f32.mrb[0].mxu0
        %v1849 = vadd.f32 %v1576, %v1848
        %v1850 = vpop.f32.mrb[0].mxu0
        %v1851 = vadd.f32 %v1578, %v1850
        %v1852 = vpop.f32.mrb[0].mxu0
        %v1853 = vadd.f32 %v1580, %v1852
        %v1854 = vpop.f32.mrb[0].mxu0
        %v1855 = vadd.f32 %v1582, %v1854
        %1856 = vmatprep.mubr.bf16.mxu0 0
        %1857 = vmatmul.mubr.bf16.gmra.mrb[0].mxu0 %v871
        %v1858 = vpop.f32.mrb[0].mxu0
        %v1859 = vadd.f32 %v1586, %v1858
        %v1860 = vpop.f32.mrb[0].mxu0
        %v1861 = vadd.f32 %v1588, %v1860
        %v1862 = vpop.f32.mrb[0].mxu0
        %v1863 = vadd.f32 %v1590, %v1862
        %v1864 = vpop.f32.mrb[0].mxu0
        %v1865 = vadd.f32 %v1592, %v1864
        %1866 = vmatprep.mubr.bf16.mxu0 0
        %1867 = vmatmul.mubr.bf16.gmra.mrb[0].mxu0 %v874
        %v1868 = vpop.f32.mrb[0].mxu0
        %v1869 = vadd.f32 %v1596, %v1868
        %v1870 = vpop.f32.mrb[0].mxu0
        %v1871 = vadd.f32 %v1598, %v1870
        %v1872 = vpop.f32.mrb[0].mxu0
        %v1873 = vadd.f32 %v1600, %v1872
        %v1874 = vpop.f32.mrb[0].mxu0
        %v1875 = vadd.f32 %v1602, %v1874
        %1876 = vdwg.mxu0
        %1877 = vmatprep.subr.bf16.mxu0 0
        %1878 = vmatpush1.bf16.msra.mxu0 %v1189
        %1879 = vmatprep.subr.bf16.mxu0 0
        %1880 = vmatpush1.bf16.msra.mxu0 %v1192
        %1881 = vmatprep.subr.bf16.mxu0 0
        %1882 = vmatpush1.bf16.msra.mxu0 %v1195
        %1883 = vmatprep.subr.bf16.mxu0 0
        %1884 = vmatpush1.bf16.msra.mxu0 %v1198
        %1885 = vmatprep.subr.bf16.mxu0 0
        %1886 = vmatpush1.bf16.msra.mxu0 %v1201
        %1887 = vmatprep.subr.bf16.mxu0 0
        %1888 = vmatpush1.bf16.msra.mxu0 %v1204
        %1889 = vmatprep.subr.bf16.mxu0 0
        %1890 = vmatpush1.bf16.msra.mxu0 %v1207
        %1891 = vmatprep.subr.bf16.mxu0 0
        %1892 = vmatpush1.bf16.msra.mxu0 %v1210
        %1893 = vmatprep.subr.bf16.mxu0 0
        %1894 = vmatpush1.bf16.msra.mxu0 %v1213
        %1895 = vmatprep.subr.bf16.mxu0 0
        %1896 = vmatpush1.bf16.msra.mxu0 %v1216
        %1897 = vmatprep.subr.bf16.mxu0 0
        %1898 = vmatpush1.bf16.msra.mxu0 %v1219
        %1899 = vmatprep.subr.bf16.mxu0 0
        %1900 = vmatpush1.bf16.msra.mxu0 %v1222
        %1901 = vmatprep.subr.bf16.mxu0 0
        %1902 = vmatpush1.bf16.msra.mxu0 %v1225
        %1903 = vmatprep.subr.bf16.mxu0 0
        %1904 = vmatpush1.bf16.msra.mxu0 %v1228
        %1905 = vmatprep.subr.bf16.mxu0 0
        %1906 = vmatpush1.bf16.msra.mxu0 %v1231
        %1907 = vmatprep.subr.bf16.mxu0 0
        %1908 = vmatpush1.bf16.msra.mxu0 %v1234
        %1909 = vmatprep.mubr.bf16.mxu0 %v804
        %1910 = vmatmul.mubr.bf16.gmra.mrb[0].mxu0 %v803
        %v1911 = vpop.f32.mrb[0].mxu0
        %v1912 = vadd.f32 0.0, %v1911
        %v1913 = vpop.f32.mrb[0].mxu0
        %v1914 = vpop.f32.mrb[0].mxu0
        %v1915 = vadd.f32 0.0, %v1914
        %v1916 = vpop.f32.mrb[0].mxu0
        %1917 = vmatprep.mubr.bf16.mxu0 %v807
        %1918 = vmatmul.mubr.bf16.gmra.mrb[0].mxu0 %v806
        %v1919 = vpop.f32.mrb[0].mxu0
        %v1920 = vadd.f32 0.0, %v1919
        %v1921 = vpop.f32.mrb[0].mxu0
        %v1922 = vpop.f32.mrb[0].mxu0
        %v1923 = vadd.f32 0.0, %v1922
        %v1924 = vpop.f32.mrb[0].mxu0
        %1925 = vmatprep.mubr.bf16.mxu0 %v810
        %1926 = vmatmul.mubr.bf16.gmra.mrb[0].mxu0 %v809
        %v1927 = vpop.f32.mrb[0].mxu0
        %v1928 = vadd.f32 0.0, %v1927
        %v1929 = vpop.f32.mrb[0].mxu0
        %v1930 = vpop.f32.mrb[0].mxu0
        %v1931 = vadd.f32 0.0, %v1930
        %v1932 = vpop.f32.mrb[0].mxu0
        %1933 = vmatprep.mubr.bf16.mxu0 %v813
        %1934 = vmatmul.mubr.bf16.gmra.mrb[0].mxu0 %v812
        %v1935 = vpop.f32.mrb[0].mxu0
        %v1936 = vadd.f32 0.0, %v1935
        %v1937 = vpop.f32.mrb[0].mxu0
        %v1938 = vpop.f32.mrb[0].mxu0
        %v1939 = vadd.f32 0.0, %v1938
        %v1940 = vpop.f32.mrb[0].mxu0
        %1941 = vmatprep.mubr.bf16.mxu0 %v816
        %1942 = vmatmul.mubr.bf16.gmra.mrb[0].mxu0 %v815
        %v1943 = vpop.f32.mrb[0].mxu0
        %v1944 = vadd.f32 0.0, %v1943
        %v1945 = vpop.f32.mrb[0].mxu0
        %v1946 = vpop.f32.mrb[0].mxu0
        %v1947 = vadd.f32 0.0, %v1946
        %v1948 = vpop.f32.mrb[0].mxu0
        %1949 = vmatprep.mubr.bf16.mxu0 %v819
        %1950 = vmatmul.mubr.bf16.gmra.mrb[0].mxu0 %v818
        %v1951 = vpop.f32.mrb[0].mxu0
        %v1952 = vadd.f32 0.0, %v1951
        %v1953 = vpop.f32.mrb[0].mxu0
        %v1954 = vpop.f32.mrb[0].mxu0
        %v1955 = vadd.f32 0.0, %v1954
        %v1956 = vpop.f32.mrb[0].mxu0
        %1957 = vmatprep.mubr.bf16.mxu0 %v822
        %1958 = vmatmul.mubr.bf16.gmra.mrb[0].mxu0 %v821
        %v1959 = vpop.f32.mrb[0].mxu0
        %v1960 = vadd.f32 0.0, %v1959
        %v1961 = vpop.f32.mrb[0].mxu0
        %v1962 = vpop.f32.mrb[0].mxu0
        %v1963 = vadd.f32 0.0, %v1962
        %v1964 = vpop.f32.mrb[0].mxu0
        %1965 = vmatprep.mubr.bf16.mxu0 %v825
        %1966 = vmatmul.mubr.bf16.gmra.mrb[0].mxu0 %v824
        %v1967 = vpop.f32.mrb[0].mxu0
        %v1968 = vadd.f32 0.0, %v1967
        %v1969 = vpop.f32.mrb[0].mxu0
        %v1970 = vpop.f32.mrb[0].mxu0
        %v1971 = vadd.f32 0.0, %v1970
        %v1972 = vpop.f32.mrb[0].mxu0
        %1973 = vmatprep.mubr.bf16.mxu0 %v828
        %1974 = vmatmul.mubr.bf16.gmra.mrb[0].mxu0 %v827
        %v1975 = vpop.f32.mrb[0].mxu0
        %v1976 = vadd.f32 0.0, %v1975
        %v1977 = vpop.f32.mrb[0].mxu0
        %v1978 = vpop.f32.mrb[0].mxu0
        %v1979 = vadd.f32 0.0, %v1978
        %v1980 = vpop.f32.mrb[0].mxu0
        %1981 = vmatprep.mubr.bf16.mxu0 %v831
        %1982 = vmatmul.mubr.bf16.gmra.mrb[0].mxu0 %v830
        %v1983 = vpop.f32.mrb[0].mxu0
        %v1984 = vadd.f32 0.0, %v1983
        %v1985 = vpop.f32.mrb[0].mxu0
        %v1986 = vpop.f32.mrb[0].mxu0
        %v1987 = vadd.f32 0.0, %v1986
        %v1988 = vpop.f32.mrb[0].mxu0
        %1989 = vmatprep.mubr.bf16.mxu0 %v834
        %1990 = vmatmul.mubr.bf16.gmra.mrb[0].mxu0 %v833
        %v1991 = vpop.f32.mrb[0].mxu0
        %v1992 = vadd.f32 0.0, %v1991
        %v1993 = vpop.f32.mrb[0].mxu0
        %v1994 = vpop.f32.mrb[0].mxu0
        %v1995 = vadd.f32 0.0, %v1994
        %v1996 = vpop.f32.mrb[0].mxu0
        %1997 = vmatprep.mubr.bf16.mxu0 %v837
        %1998 = vmatmul.mubr.bf16.gmra.mrb[0].mxu0 %v836
        %v1999 = vpop.f32.mrb[0].mxu0
        %v2000 = vadd.f32 0.0, %v1999
        %v2001 = vpop.f32.mrb[0].mxu0
        %v2002 = vpop.f32.mrb[0].mxu0
        %v2003 = vadd.f32 0.0, %v2002
        %v2004 = vpop.f32.mrb[0].mxu0
        %2005 = vmatprep.mubr.bf16.mxu0 %v840
        %2006 = vmatmul.mubr.bf16.gmra.mrb[0].mxu0 %v839
        %v2007 = vpop.f32.mrb[0].mxu0
        %v2008 = vadd.f32 0.0, %v2007
        %v2009 = vpop.f32.mrb[0].mxu0
        %v2010 = vpop.f32.mrb[0].mxu0
        %v2011 = vadd.f32 0.0, %v2010
        %v2012 = vpop.f32.mrb[0].mxu0
        %2013 = vmatprep.mubr.bf16.mxu0 %v843
        %2014 = vmatmul.mubr.bf16.gmra.mrb[0].mxu0 %v842
        %v2015 = vpop.f32.mrb[0].mxu0
        %v2016 = vadd.f32 0.0, %v2015
        %v2017 = vpop.f32.mrb[0].mxu0
        %v2018 = vpop.f32.mrb[0].mxu0
        %v2019 = vadd.f32 0.0, %v2018
        %v2020 = vpop.f32.mrb[0].mxu0
        %2021 = vmatprep.mubr.bf16.mxu0 %v846
        %2022 = vmatmul.mubr.bf16.gmra.mrb[0].mxu0 %v845
        %v2023 = vpop.f32.mrb[0].mxu0
        %v2024 = vadd.f32 0.0, %v2023
        %v2025 = vpop.f32.mrb[0].mxu0
        %v2026 = vpop.f32.mrb[0].mxu0
        %v2027 = vadd.f32 0.0, %v2026
        %v2028 = vpop.f32.mrb[0].mxu0
        %2029 = vmatprep.mubr.bf16.mxu0 %v849
        %2030 = vmatmul.mubr.bf16.gmra.mrb[0].mxu0 %v848
        %v2031 = vpop.f32.mrb[0].mxu0
        %v2032 = vadd.f32 0.0, %v2031
        %v2033 = vpop.f32.mrb[0].mxu0
        %v2034 = vpop.f32.mrb[0].mxu0
        %v2035 = vadd.f32 0.0, %v2034
        %v2036 = vpop.f32.mrb[0].mxu0
        %2037 = vmatprep.mubr.bf16.mxu0 %v852
        %2038 = vmatmul.mubr.bf16.gmra.mrb[0].mxu0 %v851
        %v2039 = vpop.f32.mrb[0].mxu0
        %v2040 = vadd.f32 0.0, %v2039
        %v2041 = vpop.f32.mrb[0].mxu0
        %v2042 = vpop.f32.mrb[0].mxu0
        %v2043 = vadd.f32 0.0, %v2042
        %v2044 = vpop.f32.mrb[0].mxu0
        %2045 = vmatprep.mubr.bf16.mxu0 %v855
        %2046 = vmatmul.mubr.bf16.gmra.mrb[0].mxu0 %v854
        %v2047 = vpop.f32.mrb[0].mxu0
        %v2048 = vadd.f32 0.0, %v2047
        %v2049 = vpop.f32.mrb[0].mxu0
        %v2050 = vpop.f32.mrb[0].mxu0
        %v2051 = vadd.f32 0.0, %v2050
        %v2052 = vpop.f32.mrb[0].mxu0
        %2053 = vmatprep.mubr.bf16.mxu0 %v858
        %2054 = vmatmul.mubr.bf16.gmra.mrb[0].mxu0 %v857
        %v2055 = vpop.f32.mrb[0].mxu0
        %v2056 = vadd.f32 0.0, %v2055
        %v2057 = vpop.f32.mrb[0].mxu0
        %v2058 = vpop.f32.mrb[0].mxu0
        %v2059 = vadd.f32 0.0, %v2058
        %v2060 = vpop.f32.mrb[0].mxu0
        %2061 = vmatprep.mubr.bf16.mxu0 %v861
        %2062 = vmatmul.mubr.bf16.gmra.mrb[0].mxu0 %v860
        %v2063 = vpop.f32.mrb[0].mxu0
        %v2064 = vadd.f32 0.0, %v2063
        %v2065 = vpop.f32.mrb[0].mxu0
        %v2066 = vpop.f32.mrb[0].mxu0
        %v2067 = vadd.f32 0.0, %v2066
        %v2068 = vpop.f32.mrb[0].mxu0
        %2069 = vmatprep.mubr.bf16.mxu0 %v864
        %2070 = vmatmul.mubr.bf16.gmra.mrb[0].mxu0 %v863
        %v2071 = vpop.f32.mrb[0].mxu0
        %v2072 = vadd.f32 0.0, %v2071
        %v2073 = vpop.f32.mrb[0].mxu0
        %v2074 = vpop.f32.mrb[0].mxu0
        %v2075 = vadd.f32 0.0, %v2074
        %v2076 = vpop.f32.mrb[0].mxu0
        %2077 = vmatprep.mubr.bf16.mxu0 %v867
        %2078 = vmatmul.mubr.bf16.gmra.mrb[0].mxu0 %v866
        %v2079 = vpop.f32.mrb[0].mxu0
        %v2080 = vadd.f32 0.0, %v2079
        %v2081 = vpop.f32.mrb[0].mxu0
        %v2082 = vpop.f32.mrb[0].mxu0
        %v2083 = vadd.f32 0.0, %v2082
        %v2084 = vpop.f32.mrb[0].mxu0
        %2085 = vmatprep.mubr.bf16.mxu0 %v870
        %2086 = vmatmul.mubr.bf16.gmra.mrb[0].mxu0 %v869
        %v2087 = vpop.f32.mrb[0].mxu0
        %v2088 = vadd.f32 0.0, %v2087
        %v2089 = vpop.f32.mrb[0].mxu0
        %v2090 = vpop.f32.mrb[0].mxu0
        %v2091 = vadd.f32 0.0, %v2090
        %v2092 = vpop.f32.mrb[0].mxu0
        %2093 = vmatprep.mubr.bf16.mxu0 %v873
        %2094 = vmatmul.mubr.bf16.gmra.mrb[0].mxu0 %v872
        %v2095 = vpop.f32.mrb[0].mxu0
        %v2096 = vadd.f32 0.0, %v2095
        %v2097 = vpop.f32.mrb[0].mxu0
        %v2098 = vpop.f32.mrb[0].mxu0
        %v2099 = vadd.f32 0.0, %v2098
        %v2100 = vpop.f32.mrb[0].mxu0
        %2101 = vdwg.mxu0
        %2102 = vmatprep.subr.bf16.mxu0 0
        %2103 = vmatpush1.bf16.msra.mxu0 %v1237
        %2104 = vmatprep.subr.bf16.mxu0 0
        %2105 = vmatpush1.bf16.msra.mxu0 %v1240
        %2106 = vmatprep.subr.bf16.mxu0 0
        %2107 = vmatpush1.bf16.msra.mxu0 %v1243
        %2108 = vmatprep.subr.bf16.mxu0 0
        %2109 = vmatpush1.bf16.msra.mxu0 %v1246
        %2110 = vmatprep.subr.bf16.mxu0 0
        %2111 = vmatpush1.bf16.msra.mxu0 %v1249
        %2112 = vmatprep.subr.bf16.mxu0 0
        %2113 = vmatpush1.bf16.msra.mxu0 %v1252
        %2114 = vmatprep.subr.bf16.mxu0 0
        %2115 = vmatpush1.bf16.msra.mxu0 %v1255
        %2116 = vmatprep.subr.bf16.mxu0 0
        %2117 = vmatpush1.bf16.msra.mxu0 %v1258
        %2118 = vmatprep.subr.bf16.mxu0 0
        %2119 = vmatpush1.bf16.msra.mxu0 0
        %2120 = vmatprep.subr.bf16.mxu0 0
        %2121 = vmatpush1.bf16.msra.mxu0 0
        %2122 = vmatprep.subr.bf16.mxu0 0
        %2123 = vmatpush1.bf16.msra.mxu0 0
        %2124 = vmatprep.subr.bf16.mxu0 0
        %2125 = vmatpush1.bf16.msra.mxu0 0
        %2126 = vmatprep.subr.bf16.mxu0 0
        %2127 = vmatpush1.bf16.msra.mxu0 0
        %2128 = vmatprep.subr.bf16.mxu0 0
        %2129 = vmatpush1.bf16.msra.mxu0 0
        %2130 = vmatprep.subr.bf16.mxu0 0
        %2131 = vmatpush1.bf16.msra.mxu0 0
        %2132 = vmatprep.subr.bf16.mxu0 0
        %2133 = vmatpush1.bf16.msra.mxu0 0
        %2134 = vmatprep.mubr.bf16.mxu0 0
        %2135 = vmatmul.mubr.bf16.gmra.mrb[0].mxu0 %v805
        %v2136 = vpop.f32.mrb[0].mxu0
        %v2137 = vadd.f32 %v1912, %v2136
        %v2138 = vpop.f32.mrb[0].mxu0
        %v2139 = vpop.f32.mrb[0].mxu0
        %v2140 = vadd.f32 %v1915, %v2139
        %v2141 = vpop.f32.mrb[0].mxu0
        %2142 = vmatprep.mubr.bf16.mxu0 0
        %2143 = vmatmul.mubr.bf16.gmra.mrb[0].mxu0 %v808
        %v2144 = vpop.f32.mrb[0].mxu0
        %v2145 = vadd.f32 %v1920, %v2144
        %v2146 = vpop.f32.mrb[0].mxu0
        %v2147 = vpop.f32.mrb[0].mxu0
        %v2148 = vadd.f32 %v1923, %v2147
        %v2149 = vpop.f32.mrb[0].mxu0
        %2150 = vmatprep.mubr.bf16.mxu0 0
        %2151 = vmatmul.mubr.bf16.gmra.mrb[0].mxu0 %v811
        %v2152 = vpop.f32.mrb[0].mxu0
        %v2153 = vadd.f32 %v1928, %v2152
        %v2154 = vpop.f32.mrb[0].mxu0
        %v2155 = vpop.f32.mrb[0].mxu0
        %v2156 = vadd.f32 %v1931, %v2155
        %v2157 = vpop.f32.mrb[0].mxu0
        %2158 = vmatprep.mubr.bf16.mxu0 0
        %2159 = vmatmul.mubr.bf16.gmra.mrb[0].mxu0 %v814
        %v2160 = vpop.f32.mrb[0].mxu0
        %v2161 = vadd.f32 %v1936, %v2160
        %v2162 = vpop.f32.mrb[0].mxu0
        %v2163 = vpop.f32.mrb[0].mxu0
        %v2164 = vadd.f32 %v1939, %v2163
        %v2165 = vpop.f32.mrb[0].mxu0
        %2166 = vmatprep.mubr.bf16.mxu0 0
        %2167 = vmatmul.mubr.bf16.gmra.mrb[0].mxu0 %v817
        %v2168 = vpop.f32.mrb[0].mxu0
        %v2169 = vadd.f32 %v1944, %v2168
        %v2170 = vpop.f32.mrb[0].mxu0
        %v2171 = vpop.f32.mrb[0].mxu0
        %v2172 = vadd.f32 %v1947, %v2171
        %v2173 = vpop.f32.mrb[0].mxu0
        %2174 = vmatprep.mubr.bf16.mxu0 0
        %2175 = vmatmul.mubr.bf16.gmra.mrb[0].mxu0 %v820
        %v2176 = vpop.f32.mrb[0].mxu0
        %v2177 = vadd.f32 %v1952, %v2176
        %v2178 = vpop.f32.mrb[0].mxu0
        %v2179 = vpop.f32.mrb[0].mxu0
        %v2180 = vadd.f32 %v1955, %v2179
        %v2181 = vpop.f32.mrb[0].mxu0
        %2182 = vmatprep.mubr.bf16.mxu0 0
        %2183 = vmatmul.mubr.bf16.gmra.mrb[0].mxu0 %v823
        %v2184 = vpop.f32.mrb[0].mxu0
        %v2185 = vadd.f32 %v1960, %v2184
        %v2186 = vpop.f32.mrb[0].mxu0
        %v2187 = vpop.f32.mrb[0].mxu0
        %v2188 = vadd.f32 %v1963, %v2187
        %v2189 = vpop.f32.mrb[0].mxu0
        %2190 = vmatprep.mubr.bf16.mxu0 0
        %2191 = vmatmul.mubr.bf16.gmra.mrb[0].mxu0 %v826
        %v2192 = vpop.f32.mrb[0].mxu0
        %v2193 = vadd.f32 %v1968, %v2192
        %v2194 = vpop.f32.mrb[0].mxu0
        %v2195 = vpop.f32.mrb[0].mxu0
        %v2196 = vadd.f32 %v1971, %v2195
        %v2197 = vpop.f32.mrb[0].mxu0
        %2198 = vmatprep.mubr.bf16.mxu0 0
        %2199 = vmatmul.mubr.bf16.gmra.mrb[0].mxu0 %v829
        %v2200 = vpop.f32.mrb[0].mxu0
        %v2201 = vadd.f32 %v1976, %v2200
        %v2202 = vpop.f32.mrb[0].mxu0
        %v2203 = vpop.f32.mrb[0].mxu0
        %v2204 = vadd.f32 %v1979, %v2203
        %v2205 = vpop.f32.mrb[0].mxu0
        %2206 = vmatprep.mubr.bf16.mxu0 0
        %2207 = vmatmul.mubr.bf16.gmra.mrb[0].mxu0 %v832
        %v2208 = vpop.f32.mrb[0].mxu0
        %v2209 = vadd.f32 %v1984, %v2208
        %v2210 = vpop.f32.mrb[0].mxu0
        %v2211 = vpop.f32.mrb[0].mxu0
        %v2212 = vadd.f32 %v1987, %v2211
        %v2213 = vpop.f32.mrb[0].mxu0
        %2214 = vmatprep.mubr.bf16.mxu0 0
        %2215 = vmatmul.mubr.bf16.gmra.mrb[0].mxu0 %v835
        %v2216 = vpop.f32.mrb[0].mxu0
        %v2217 = vadd.f32 %v1992, %v2216
        %v2218 = vpop.f32.mrb[0].mxu0
        %v2219 = vpop.f32.mrb[0].mxu0
        %v2220 = vadd.f32 %v1995, %v2219
        %v2221 = vpop.f32.mrb[0].mxu0
        %2222 = vmatprep.mubr.bf16.mxu0 0
        %2223 = vmatmul.mubr.bf16.gmra.mrb[0].mxu0 %v838
        %v2224 = vpop.f32.mrb[0].mxu0
        %v2225 = vadd.f32 %v2000, %v2224
        %v2226 = vpop.f32.mrb[0].mxu0
        %v2227 = vpop.f32.mrb[0].mxu0
        %v2228 = vadd.f32 %v2003, %v2227
        %v2229 = vpop.f32.mrb[0].mxu0
        %2230 = vmatprep.mubr.bf16.mxu0 0
        %2231 = vmatmul.mubr.bf16.gmra.mrb[0].mxu0 %v841
        %v2232 = vpop.f32.mrb[0].mxu0
        %v2233 = vadd.f32 %v2008, %v2232
        %v2234 = vpop.f32.mrb[0].mxu0
        %v2235 = vpop.f32.mrb[0].mxu0
        %v2236 = vadd.f32 %v2011, %v2235
        %v2237 = vpop.f32.mrb[0].mxu0
        %2238 = vmatprep.mubr.bf16.mxu0 0
        %2239 = vmatmul.mubr.bf16.gmra.mrb[0].mxu0 %v844
        %v2240 = vpop.f32.mrb[0].mxu0
        %v2241 = vadd.f32 %v2016, %v2240
        %v2242 = vpop.f32.mrb[0].mxu0
        %v2243 = vpop.f32.mrb[0].mxu0
        %v2244 = vadd.f32 %v2019, %v2243
        %v2245 = vpop.f32.mrb[0].mxu0
        %2246 = vmatprep.mubr.bf16.mxu0 0
        %2247 = vmatmul.mubr.bf16.gmra.mrb[0].mxu0 %v847
        %v2248 = vpop.f32.mrb[0].mxu0
        %v2249 = vadd.f32 %v2024, %v2248
        %v2250 = vpop.f32.mrb[0].mxu0
        %v2251 = vpop.f32.mrb[0].mxu0
        %v2252 = vadd.f32 %v2027, %v2251
        %v2253 = vpop.f32.mrb[0].mxu0
        %2254 = vmatprep.mubr.bf16.mxu0 0
        %2255 = vmatmul.mubr.bf16.gmra.mrb[0].mxu0 %v850
        %v2256 = vpop.f32.mrb[0].mxu0
        %v2257 = vadd.f32 %v2032, %v2256
        %v2258 = vpop.f32.mrb[0].mxu0
        %v2259 = vpop.f32.mrb[0].mxu0
        %v2260 = vadd.f32 %v2035, %v2259
        %v2261 = vpop.f32.mrb[0].mxu0
        %2262 = vmatprep.mubr.bf16.mxu0 0
        %2263 = vmatmul.mubr.bf16.gmra.mrb[0].mxu0 %v853
        %v2264 = vpop.f32.mrb[0].mxu0
        %v2265 = vadd.f32 %v2040, %v2264
        %v2266 = vpop.f32.mrb[0].mxu0
        %v2267 = vpop.f32.mrb[0].mxu0
        %v2268 = vadd.f32 %v2043, %v2267
        %v2269 = vpop.f32.mrb[0].mxu0
        %2270 = vmatprep.mubr.bf16.mxu0 0
        %2271 = vmatmul.mubr.bf16.gmra.mrb[0].mxu0 %v856
        %v2272 = vpop.f32.mrb[0].mxu0
        %v2273 = vadd.f32 %v2048, %v2272
        %v2274 = vpop.f32.mrb[0].mxu0
        %v2275 = vpop.f32.mrb[0].mxu0
        %v2276 = vadd.f32 %v2051, %v2275
        %v2277 = vpop.f32.mrb[0].mxu0
        %2278 = vmatprep.mubr.bf16.mxu0 0
        %2279 = vmatmul.mubr.bf16.gmra.mrb[0].mxu0 %v859
        %v2280 = vpop.f32.mrb[0].mxu0
        %v2281 = vadd.f32 %v2056, %v2280
        %v2282 = vpop.f32.mrb[0].mxu0
        %v2283 = vpop.f32.mrb[0].mxu0
        %v2284 = vadd.f32 %v2059, %v2283
        %v2285 = vpop.f32.mrb[0].mxu0
        %2286 = vmatprep.mubr.bf16.mxu0 0
        %2287 = vmatmul.mubr.bf16.gmra.mrb[0].mxu0 %v862
        %v2288 = vpop.f32.mrb[0].mxu0
        %v2289 = vadd.f32 %v2064, %v2288
        %v2290 = vpop.f32.mrb[0].mxu0
        %v2291 = vpop.f32.mrb[0].mxu0
        %v2292 = vadd.f32 %v2067, %v2291
        %v2293 = vpop.f32.mrb[0].mxu0
        %2294 = vmatprep.mubr.bf16.mxu0 0
        %2295 = vmatmul.mubr.bf16.gmra.mrb[0].mxu0 %v865
        %v2296 = vpop.f32.mrb[0].mxu0
        %v2297 = vadd.f32 %v2072, %v2296
        %v2298 = vpop.f32.mrb[0].mxu0
        %v2299 = vpop.f32.mrb[0].mxu0
        %v2300 = vadd.f32 %v2075, %v2299
        %v2301 = vpop.f32.mrb[0].mxu0
        %2302 = vmatprep.mubr.bf16.mxu0 0
        %2303 = vmatmul.mubr.bf16.gmra.mrb[0].mxu0 %v868
        %v2304 = vpop.f32.mrb[0].mxu0
        %v2305 = vadd.f32 %v2080, %v2304
        %v2306 = vpop.f32.mrb[0].mxu0
        %v2307 = vpop.f32.mrb[0].mxu0
        %v2308 = vadd.f32 %v2083, %v2307
        %v2309 = vpop.f32.mrb[0].mxu0
        %2310 = vmatprep.mubr.bf16.mxu0 0
        %2311 = vmatmul.mubr.bf16.gmra.mrb[0].mxu0 %v871
        %v2312 = vpop.f32.mrb[0].mxu0
        %v2313 = vadd.f32 %v2088, %v2312
        %v2314 = vpop.f32.mrb[0].mxu0
        %v2315 = vpop.f32.mrb[0].mxu0
        %v2316 = vadd.f32 %v2091, %v2315
        %v2317 = vpop.f32.mrb[0].mxu0
        %2318 = vmatprep.mubr.bf16.mxu0 0
        %2319 = vmatmul.mubr.bf16.gmra.mrb[0].mxu0 %v874
        %v2320 = vpop.f32.mrb[0].mxu0
        %v2321 = vadd.f32 %v2096, %v2320
        %v2322 = vpop.f32.mrb[0].mxu0
        %v2323 = vpop.f32.mrb[0].mxu0
        %v2324 = vadd.f32 %v2099, %v2323
        %v2325 = vpop.f32.mrb[0].mxu0
        %2326 = vdwg.mxu0
        %v2327 = vrot.slane %v1639, 7
        %v2328 = vrot.slane %v1643, 7
        %v2329 = vrot.slane %v1649, 7
        %v2330 = vrot.slane %v1653, 7
        %v2331 = vrot.slane %v1659, 7
        %v2332 = vrot.slane %v1663, 7
        %v2333 = vrot.slane %v1669, 7
        %v2334 = vrot.slane %v1673, 7
        %v2335 = vrot.slane %v1679, 7
        %v2336 = vrot.slane %v1683, 7
        %v2337 = vrot.slane %v1689, 7
        %v2338 = vrot.slane %v1693, 7
        %v2339 = vrot.slane %v1699, 7
        %v2340 = vrot.slane %v1703, 7
        %v2341 = vrot.slane %v1709, 7
        %v2342 = vrot.slane %v1713, 7
        %v2343 = vrot.slane %v1719, 7
        %v2344 = vrot.slane %v1723, 7
        %v2345 = vrot.slane %v1729, 7
        %v2346 = vrot.slane %v1733, 7
        %v2347 = vrot.slane %v1739, 7
        %v2348 = vrot.slane %v1743, 7
        %v2349 = vrot.slane %v1749, 7
        %v2350 = vrot.slane %v1753, 7
        %v2351 = vrot.slane %v1759, 7
        %v2352 = vrot.slane %v1763, 7
        %v2353 = vrot.slane %v1769, 7
        %v2354 = vrot.slane %v1773, 7
        %v2355 = vrot.slane %v1779, 7
        %v2356 = vrot.slane %v1783, 7
        %v2357 = vrot.slane %v1789, 7
        %v2358 = vrot.slane %v1793, 7
        %v2359 = vrot.slane %v1799, 7
        %v2360 = vrot.slane %v1803, 7
        %v2361 = vrot.slane %v1809, 7
        %v2362 = vrot.slane %v1813, 7
        %v2363 = vrot.slane %v1819, 7
        %v2364 = vrot.slane %v1823, 7
        %v2365 = vrot.slane %v1829, 7
        %v2366 = vrot.slane %v1833, 7
        %v2367 = vrot.slane %v1839, 7
        %v2368 = vrot.slane %v1843, 7
        %v2369 = vrot.slane %v1849, 7
        %v2370 = vrot.slane %v1853, 7
        %v2371 = vrot.slane %v1859, 7
        %v2372 = vrot.slane %v1863, 7
        %v2373 = vrot.slane %v1869, 7
        %v2374 = vrot.slane %v1873, 7
        %v2375 = vlaneseq
        %v2376 = vshrl.u32 %v2375, 7
        %vm2377 = vcmp.lt.s32.totalorder %v2376, 1
        %v2378 = vsel %vm2377, %v2373, %v2374
        %v2379 = vsel %vm2377, %v2372, %v2373
        %v2380 = vsel %vm2377, %v2371, %v2372
        %v2381 = vsel %vm2377, %v2370, %v2371
        %v2382 = vsel %vm2377, %v2369, %v2370
        %v2383 = vsel %vm2377, %v2368, %v2369
        %v2384 = vsel %vm2377, %v2367, %v2368
        %v2385 = vsel %vm2377, %v2366, %v2367
        %v2386 = vsel %vm2377, %v2365, %v2366
        %v2387 = vsel %vm2377, %v2364, %v2365
        %v2388 = vsel %vm2377, %v2363, %v2364
        %v2389 = vsel %vm2377, %v2362, %v2363
        %v2390 = vsel %vm2377, %v2361, %v2362
        %v2391 = vsel %vm2377, %v2360, %v2361
        %v2392 = vsel %vm2377, %v2359, %v2360
        %v2393 = vsel %vm2377, %v2358, %v2359
        %v2394 = vsel %vm2377, %v2357, %v2358
        %v2395 = vsel %vm2377, %v2356, %v2357
        %v2396 = vsel %vm2377, %v2355, %v2356
        %v2397 = vsel %vm2377, %v2354, %v2355
        %v2398 = vsel %vm2377, %v2353, %v2354
        %v2399 = vsel %vm2377, %v2352, %v2353
        %v2400 = vsel %vm2377, %v2351, %v2352
        %v2401 = vsel %vm2377, %v2350, %v2351
        %v2402 = vsel %vm2377, %v2349, %v2350
        %v2403 = vsel %vm2377, %v2348, %v2349
        %v2404 = vsel %vm2377, %v2347, %v2348
        %v2405 = vsel %vm2377, %v2346, %v2347
        %v2406 = vsel %vm2377, %v2345, %v2346
        %v2407 = vsel %vm2377, %v2344, %v2345
        %v2408 = vsel %vm2377, %v2343, %v2344
        %v2409 = vsel %vm2377, %v2342, %v2343
        %v2410 = vsel %vm2377, %v2341, %v2342
        %v2411 = vsel %vm2377, %v2340, %v2341
        %v2412 = vsel %vm2377, %v2339, %v2340
        %v2413 = vsel %vm2377, %v2338, %v2339
        %v2414 = vsel %vm2377, %v2337, %v2338
        %v2415 = vsel %vm2377, %v2336, %v2337
        %v2416 = vsel %vm2377, %v2335, %v2336
        %v2417 = vsel %vm2377, %v2334, %v2335
        %v2418 = vsel %vm2377, %v2333, %v2334
        %v2419 = vsel %vm2377, %v2332, %v2333
        %v2420 = vsel %vm2377, %v2331, %v2332
        %v2421 = vsel %vm2377, %v2330, %v2331
        %v2422 = vsel %vm2377, %v2329, %v2330
        %v2423 = vsel %vm2377, %v2328, %v2329
        %v2424 = vsel %vm2377, %v2327, %v2328
        %v2425 = vsel %vm2377, %v2374, %v2327
        %v2426 = vadd.f32 %v2425, %v1641
        %v2427 = vadd.f32 %v2424, %v1645
        %v2428 = vadd.f32 %v2423, %v1651
        %v2429 = vadd.f32 %v2422, %v1655
        %v2430 = vadd.f32 %v2421, %v1661
        %v2431 = vadd.f32 %v2420, %v1665
        %v2432 = vadd.f32 %v2419, %v1671
        %v2433 = vadd.f32 %v2418, %v1675
        %v2434 = vadd.f32 %v2417, %v1681
        %v2435 = vadd.f32 %v2416, %v1685
        %v2436 = vadd.f32 %v2415, %v1691
        %v2437 = vadd.f32 %v2414, %v1695
        %v2438 = vadd.f32 %v2413, %v1701
        %v2439 = vadd.f32 %v2412, %v1705
        %v2440 = vadd.f32 %v2411, %v1711
        %v2441 = vadd.f32 %v2410, %v1715
        %v2442 = vadd.f32 %v2409, %v1721
        %v2443 = vadd.f32 %v2408, %v1725
        %v2444 = vadd.f32 %v2407, %v1731
        %v2445 = vadd.f32 %v2406, %v1735
        %v2446 = vadd.f32 %v2405, %v1741
        %v2447 = vadd.f32 %v2404, %v1745
        %v2448 = vadd.f32 %v2403, %v1751
        %v2449 = vadd.f32 %v2402, %v1755
        %v2450 = vadd.f32 %v2401, %v1761
        %v2451 = vadd.f32 %v2400, %v1765
        %v2452 = vadd.f32 %v2399, %v1771
        %v2453 = vadd.f32 %v2398, %v1775
        %v2454 = vadd.f32 %v2397, %v1781
        %v2455 = vadd.f32 %v2396, %v1785
        %v2456 = vadd.f32 %v2395, %v1791
        %v2457 = vadd.f32 %v2394, %v1795
        %v2458 = vadd.f32 %v2393, %v1801
        %v2459 = vadd.f32 %v2392, %v1805
        %v2460 = vadd.f32 %v2391, %v1811
        %v2461 = vadd.f32 %v2390, %v1815
        %v2462 = vadd.f32 %v2389, %v1821
        %v2463 = vadd.f32 %v2388, %v1825
        %v2464 = vadd.f32 %v2387, %v1831
        %v2465 = vadd.f32 %v2386, %v1835
        %v2466 = vadd.f32 %v2385, %v1841
        %v2467 = vadd.f32 %v2384, %v1845
        %v2468 = vadd.f32 %v2383, %v1851
        %v2469 = vadd.f32 %v2382, %v1855
        %v2470 = vadd.f32 %v2381, %v1861
        %v2471 = vadd.f32 %v2380, %v1865
        %v2472 = vadd.f32 %v2379, %v1871
        %v2473 = vadd.f32 %v2378, %v1875
        %v2474 = vrot.slane %v2137, 1
        %v2475 = vrot.slane %v2140, 1
        %v2476 = vrot.slane %v2145, 1
        %v2477 = vrot.slane %v2148, 1
        %v2478 = vrot.slane %v2153, 1
        %v2479 = vrot.slane %v2156, 1
        %v2480 = vrot.slane %v2161, 1
        %v2481 = vrot.slane %v2164, 1
        %v2482 = vrot.slane %v2169, 1
        %v2483 = vrot.slane %v2172, 1
        %v2484 = vrot.slane %v2177, 1
        %v2485 = vrot.slane %v2180, 1
        %v2486 = vrot.slane %v2185, 1
        %v2487 = vrot.slane %v2188, 1
        %v2488 = vrot.slane %v2193, 1
        %v2489 = vrot.slane %v2196, 1
        %v2490 = vrot.slane %v2201, 1
        %v2491 = vrot.slane %v2204, 1
        %v2492 = vrot.slane %v2209, 1
        %v2493 = vrot.slane %v2212, 1
        %v2494 = vrot.slane %v2217, 1
        %v2495 = vrot.slane %v2220, 1
        %v2496 = vrot.slane %v2225, 1
        %v2497 = vrot.slane %v2228, 1
        %v2498 = vrot.slane %v2233, 1
        %v2499 = vrot.slane %v2236, 1
        %v2500 = vrot.slane %v2241, 1
        %v2501 = vrot.slane %v2244, 1
        %v2502 = vrot.slane %v2249, 1
        %v2503 = vrot.slane %v2252, 1
        %v2504 = vrot.slane %v2257, 1
        %v2505 = vrot.slane %v2260, 1
        %v2506 = vrot.slane %v2265, 1
        %v2507 = vrot.slane %v2268, 1
        %v2508 = vrot.slane %v2273, 1
        %v2509 = vrot.slane %v2276, 1
        %v2510 = vrot.slane %v2281, 1
        %v2511 = vrot.slane %v2284, 1
        %v2512 = vrot.slane %v2289, 1
        %v2513 = vrot.slane %v2292, 1
        %v2514 = vrot.slane %v2297, 1
        %v2515 = vrot.slane %v2300, 1
        %v2516 = vrot.slane %v2305, 1
        %v2517 = vrot.slane %v2308, 1
        %v2518 = vrot.slane %v2313, 1
        %v2519 = vrot.slane %v2316, 1
        %v2520 = vrot.slane %v2321, 1
        %v2521 = vrot.slane %v2324, 1
        %vm2522 = vcmp.lt.s32.totalorder %v2376, 7
        %v2523 = vsel %vm2522, %v2520, %v2521
        %v2524 = vsel %vm2522, %v2519, %v2520
        %v2525 = vsel %vm2522, %v2518, %v2519
        %v2526 = vsel %vm2522, %v2517, %v2518
        %v2527 = vsel %vm2522, %v2516, %v2517
        %v2528 = vsel %vm2522, %v2515, %v2516
        %v2529 = vsel %vm2522, %v2514, %v2515
        %v2530 = vsel %vm2522, %v2513, %v2514
        %v2531 = vsel %vm2522, %v2512, %v2513
        %v2532 = vsel %vm2522, %v2511, %v2512
        %v2533 = vsel %vm2522, %v2510, %v2511
        %v2534 = vsel %vm2522, %v2509, %v2510
        %v2535 = vsel %vm2522, %v2508, %v2509
        %v2536 = vsel %vm2522, %v2507, %v2508
        %v2537 = vsel %vm2522, %v2506, %v2507
        %v2538 = vsel %vm2522, %v2505, %v2506
        %v2539 = vsel %vm2522, %v2504, %v2505
        %v2540 = vsel %vm2522, %v2503, %v2504
        %v2541 = vsel %vm2522, %v2502, %v2503
        %v2542 = vsel %vm2522, %v2501, %v2502
        %v2543 = vsel %vm2522, %v2500, %v2501
        %v2544 = vsel %vm2522, %v2499, %v2500
        %v2545 = vsel %vm2522, %v2498, %v2499
        %v2546 = vsel %vm2522, %v2497, %v2498
        %v2547 = vsel %vm2522, %v2496, %v2497
        %v2548 = vsel %vm2522, %v2495, %v2496
        %v2549 = vsel %vm2522, %v2494, %v2495
        %v2550 = vsel %vm2522, %v2493, %v2494
        %v2551 = vsel %vm2522, %v2492, %v2493
        %v2552 = vsel %vm2522, %v2491, %v2492
        %v2553 = vsel %vm2522, %v2490, %v2491
        %v2554 = vsel %vm2522, %v2489, %v2490
        %v2555 = vsel %vm2522, %v2488, %v2489
        %v2556 = vsel %vm2522, %v2487, %v2488
        %v2557 = vsel %vm2522, %v2486, %v2487
        %v2558 = vsel %vm2522, %v2485, %v2486
        %v2559 = vsel %vm2522, %v2484, %v2485
        %v2560 = vsel %vm2522, %v2483, %v2484
        %v2561 = vsel %vm2522, %v2482, %v2483
        %v2562 = vsel %vm2522, %v2481, %v2482
        %v2563 = vsel %vm2522, %v2480, %v2481
        %v2564 = vsel %vm2522, %v2479, %v2480
        %v2565 = vsel %vm2522, %v2478, %v2479
        %v2566 = vsel %vm2522, %v2477, %v2478
        %v2567 = vsel %vm2522, %v2476, %v2477
        %v2568 = vsel %vm2522, %v2475, %v2476
        %v2569 = vsel %vm2522, %v2474, %v2475
        %v2570 = vsel %vm2522, %v2521, %v2474
        %v2571 = vadd.f32 %v2426, %v2569
        %v2572 = vadd.f32 %v2427, %v2568
        %v2573 = vadd.f32 %v2428, %v2567
        %v2574 = vadd.f32 %v2429, %v2566
        %v2575 = vadd.f32 %v2430, %v2565
        %v2576 = vadd.f32 %v2431, %v2564
        %v2577 = vadd.f32 %v2432, %v2563
        %v2578 = vadd.f32 %v2433, %v2562
        %v2579 = vadd.f32 %v2434, %v2561
        %v2580 = vadd.f32 %v2435, %v2560
        %v2581 = vadd.f32 %v2436, %v2559
        %v2582 = vadd.f32 %v2437, %v2558
        %v2583 = vadd.f32 %v2438, %v2557
        %v2584 = vadd.f32 %v2439, %v2556
        %v2585 = vadd.f32 %v2440, %v2555
        %v2586 = vadd.f32 %v2441, %v2554
        %v2587 = vadd.f32 %v2442, %v2553
        %v2588 = vadd.f32 %v2443, %v2552
        %v2589 = vadd.f32 %v2444, %v2551
        %v2590 = vadd.f32 %v2445, %v2550
        %v2591 = vadd.f32 %v2446, %v2549
        %v2592 = vadd.f32 %v2447, %v2548
        %v2593 = vadd.f32 %v2448, %v2547
        %v2594 = vadd.f32 %v2449, %v2546
        %v2595 = vadd.f32 %v2450, %v2545
        %v2596 = vadd.f32 %v2451, %v2544
        %v2597 = vadd.f32 %v2452, %v2543
        %v2598 = vadd.f32 %v2453, %v2542
        %v2599 = vadd.f32 %v2454, %v2541
        %v2600 = vadd.f32 %v2455, %v2540
        %v2601 = vadd.f32 %v2456, %v2539
        %v2602 = vadd.f32 %v2457, %v2538
        %v2603 = vadd.f32 %v2458, %v2537
        %v2604 = vadd.f32 %v2459, %v2536
        %v2605 = vadd.f32 %v2460, %v2535
        %v2606 = vadd.f32 %v2461, %v2534
        %v2607 = vadd.f32 %v2462, %v2533
        %v2608 = vadd.f32 %v2463, %v2532
        %v2609 = vadd.f32 %v2464, %v2531
        %v2610 = vadd.f32 %v2465, %v2530
        %v2611 = vadd.f32 %v2466, %v2529
        %v2612 = vadd.f32 %v2467, %v2528
        %v2613 = vadd.f32 %v2468, %v2527
        %v2614 = vadd.f32 %v2469, %v2526
        %v2615 = vadd.f32 %v2470, %v2525
        %v2616 = vadd.f32 %v2471, %v2524
        %v2617 = vadd.f32 %v2472, %v2523
        %v2618 = vadd.f32 %v2473, %v2570
        %v2619 = vld [vmem:[%s2] sm:$0x1]
        %v2621 = vlaneseq
        %v2622 = vshrl.u32 %v2621, 7
        %v2623 = vsub.s32 0, %v2622
        %v2624 = vrot.slane %v2619, %v2623
        %v2626 = vadd.f32 %v2571, %v2624
        %v2627 = vadd.f32 %v2572, %v2624
        %v2628 = vadd.f32 %v2573, %v2624
        %v2629 = vadd.f32 %v2574, %v2624
        %v2630 = vadd.f32 %v2575, %v2624
        %v2631 = vadd.f32 %v2576, %v2624
        %v2632 = vadd.f32 %v2577, %v2624
        %v2633 = vadd.f32 %v2578, %v2624
        %v2634 = vadd.f32 %v2579, %v2624
        %v2635 = vadd.f32 %v2580, %v2624
        %v2636 = vadd.f32 %v2581, %v2624
        %v2637 = vadd.f32 %v2582, %v2624
        %v2638 = vadd.f32 %v2583, %v2624
        %v2639 = vadd.f32 %v2584, %v2624
        %v2640 = vadd.f32 %v2585, %v2624
        %v2641 = vadd.f32 %v2586, %v2624
        %v2642 = vadd.f32 %v2587, %v2624
        %v2643 = vadd.f32 %v2588, %v2624
        %v2644 = vadd.f32 %v2589, %v2624
        %v2645 = vadd.f32 %v2590, %v2624
        %v2646 = vadd.f32 %v2591, %v2624
        %v2647 = vadd.f32 %v2592, %v2624
        %v2648 = vadd.f32 %v2593, %v2624
        %v2649 = vadd.f32 %v2594, %v2624
        %v2650 = vadd.f32 %v2595, %v2624
        %v2651 = vadd.f32 %v2596, %v2624
        %v2652 = vadd.f32 %v2597, %v2624
        %v2653 = vadd.f32 %v2598, %v2624
        %v2654 = vadd.f32 %v2599, %v2624
        %v2655 = vadd.f32 %v2600, %v2624
        %v2656 = vadd.f32 %v2601, %v2624
        %v2657 = vadd.f32 %v2602, %v2624
        %v2658 = vadd.f32 %v2603, %v2624
        %v2659 = vadd.f32 %v2604, %v2624
        %v2660 = vadd.f32 %v2605, %v2624
        %v2661 = vadd.f32 %v2606, %v2624
        %v2662 = vadd.f32 %v2607, %v2624
        %v2663 = vadd.f32 %v2608, %v2624
        %v2664 = vadd.f32 %v2609, %v2624
        %v2665 = vadd.f32 %v2610, %v2624
        %v2666 = vadd.f32 %v2611, %v2624
        %v2667 = vadd.f32 %v2612, %v2624
        %v2668 = vadd.f32 %v2613, %v2624
        %v2669 = vadd.f32 %v2614, %v2624
        %v2670 = vadd.f32 %v2615, %v2624
        %v2671 = vadd.f32 %v2616, %v2624
        %v2672 = vadd.f32 %v2617, %v2624
        %v2673 = vadd.f32 %v2618, %v2624
        %v2674 = vmax.f32 %v2626, 0.0
        %v2675 = vmax.f32 %v2627, 0.0
        %v2676 = vmax.f32 %v2628, 0.0
        %v2677 = vmax.f32 %v2629, 0.0
        %v2678 = vmax.f32 %v2630, 0.0
        %v2679 = vmax.f32 %v2631, 0.0
        %v2680 = vmax.f32 %v2632, 0.0
        %v2681 = vmax.f32 %v2633, 0.0
        %v2682 = vmax.f32 %v2634, 0.0
        %v2683 = vmax.f32 %v2635, 0.0
        %v2684 = vmax.f32 %v2636, 0.0
        %v2685 = vmax.f32 %v2637, 0.0
        %v2686 = vmax.f32 %v2638, 0.0
        %v2687 = vmax.f32 %v2639, 0.0
        %v2688 = vmax.f32 %v2640, 0.0
        %v2689 = vmax.f32 %v2641, 0.0
        %v2690 = vmax.f32 %v2642, 0.0
        %v2691 = vmax.f32 %v2643, 0.0
        %v2692 = vmax.f32 %v2644, 0.0
        %v2693 = vmax.f32 %v2645, 0.0
        %v2694 = vmax.f32 %v2646, 0.0
        %v2695 = vmax.f32 %v2647, 0.0
        %v2696 = vmax.f32 %v2648, 0.0
        %v2697 = vmax.f32 %v2649, 0.0
        %v2698 = vmax.f32 %v2650, 0.0
        %v2699 = vmax.f32 %v2651, 0.0
        %v2700 = vmax.f32 %v2652, 0.0
        %v2701 = vmax.f32 %v2653, 0.0
        %v2702 = vmax.f32 %v2654, 0.0
        %v2703 = vmax.f32 %v2655, 0.0
        %v2704 = vmax.f32 %v2656, 0.0
        %v2705 = vmax.f32 %v2657, 0.0
        %v2706 = vmax.f32 %v2658, 0.0
        %v2707 = vmax.f32 %v2659, 0.0
        %v2708 = vmax.f32 %v2660, 0.0
        %v2709 = vmax.f32 %v2661, 0.0
        %v2710 = vmax.f32 %v2662, 0.0
        %v2711 = vmax.f32 %v2663, 0.0
        %v2712 = vmax.f32 %v2664, 0.0
        %v2713 = vmax.f32 %v2665, 0.0
        %v2714 = vmax.f32 %v2666, 0.0
        %v2715 = vmax.f32 %v2667, 0.0
        %v2716 = vmax.f32 %v2668, 0.0
        %v2717 = vmax.f32 %v2669, 0.0
        %v2718 = vmax.f32 %v2670, 0.0
        %v2719 = vmax.f32 %v2671, 0.0
        %v2720 = vmax.f32 %v2672, 0.0
        %v2721 = vmax.f32 %v2673, 0.0
        %v2722 = vadd.s32 %v2376, 8
        %v2723 = vadd.s32 %v2376, 16
        %vm2724 = vcmp.lt.s32.totalorder %v2376, 16
        %vm2725 = vcmp.lt.s32.totalorder %v2722, 16
        %vm2726 = vcmp.lt.s32.totalorder %v2723, 16
        %v2727 = vsel %vm2724, %v2674, 0.0
        %v2728 = vsel %vm2725, %v2675, 0.0
        %v2729 = vsel %vm2726, %v2676, 0.0
        %v2730 = vsel %vm2724, %v2677, 0.0
        %v2731 = vsel %vm2725, %v2678, 0.0
        %v2732 = vsel %vm2726, %v2679, 0.0
        %v2733 = vsel %vm2724, %v2680, 0.0
        %v2734 = vsel %vm2725, %v2681, 0.0
        %v2735 = vsel %vm2726, %v2682, 0.0
        %v2736 = vsel %vm2724, %v2683, 0.0
        %v2737 = vsel %vm2725, %v2684, 0.0
        %v2738 = vsel %vm2726, %v2685, 0.0
        %v2739 = vsel %vm2724, %v2686, 0.0
        %v2740 = vsel %vm2725, %v2687, 0.0
        %v2741 = vsel %vm2726, %v2688, 0.0
        %v2742 = vsel %vm2724, %v2689, 0.0
        %v2743 = vsel %vm2725, %v2690, 0.0
        %v2744 = vsel %vm2726, %v2691, 0.0
        %v2745 = vsel %vm2724, %v2692, 0.0
        %v2746 = vsel %vm2725, %v2693, 0.0
        %v2747 = vsel %vm2726, %v2694, 0.0
        %v2748 = vsel %vm2724, %v2695, 0.0
        %v2749 = vsel %vm2725, %v2696, 0.0
        %v2750 = vsel %vm2726, %v2697, 0.0
        %v2751 = vsel %vm2724, %v2698, 0.0
        %v2752 = vsel %vm2725, %v2699, 0.0
        %v2753 = vsel %vm2726, %v2700, 0.0
        %v2754 = vsel %vm2724, %v2701, 0.0
        %v2755 = vsel %vm2725, %v2702, 0.0
        %v2756 = vsel %vm2726, %v2703, 0.0
        %v2757 = vsel %vm2724, %v2704, 0.0
        %v2758 = vsel %vm2725, %v2705, 0.0
        %v2759 = vsel %vm2726, %v2706, 0.0
        %v2760 = vsel %vm2724, %v2707, 0.0
        %v2761 = vsel %vm2725, %v2708, 0.0
        %v2762 = vsel %vm2726, %v2709, 0.0
        %v2763 = vsel %vm2724, %v2710, 0.0
        %v2764 = vsel %vm2725, %v2711, 0.0
        %v2765 = vsel %vm2726, %v2712, 0.0
        %v2766 = vsel %vm2724, %v2713, 0.0
        %v2767 = vsel %vm2725, %v2714, 0.0
        %v2768 = vsel %vm2726, %v2715, 0.0
        %v2769 = vsel %vm2724, %v2716, 0.0
        %v2770 = vsel %vm2725, %v2717, 0.0
        %v2771 = vsel %vm2726, %v2718, 0.0
        %v2772 = vsel %vm2724, %v2719, 0.0
        %v2773 = vsel %vm2725, %v2720, 0.0
        %v2774 = vsel %vm2726, %v2721, 0.0
        %2775 = vst [vmem:[#allocation2] sm:$0xf] 0
        %2776 = vst [vmem:[#allocation2 + $0x4] sm:$0xf] 0
        %2777 = vst [vmem:[#allocation2 + $0x8] sm:$0xf] 0
        %s2778 = scalar_lea.vmem [#allocation2], 204
        %2779 = vst [vmem:[%s2778] sm:$0xf] 0
        %2780 = vst [vmem:[%s2778 + $0x4] sm:$0xf] 0
        %2781 = vst [vmem:[%s2778 + $0x8] sm:$0xf] 0
        %v2782 = vpack.c.bf16 %v2728, %v2727
        %v2783 = vpack.c.bf16 %v2729, %v2729
        %v2784 = vpack.c.bf16 %v2731, %v2730
        %v2785 = vpack.c.bf16 %v2732, %v2732
        %v2786 = vpack.c.bf16 %v2734, %v2733
        %v2787 = vpack.c.bf16 %v2735, %v2735
        %v2788 = vpack.c.bf16 %v2737, %v2736
        %v2789 = vpack.c.bf16 %v2738, %v2738
        %v2790 = vpack.c.bf16 %v2740, %v2739
        %v2791 = vpack.c.bf16 %v2741, %v2741
        %v2792 = vpack.c.bf16 %v2743, %v2742
        %v2793 = vpack.c.bf16 %v2744, %v2744
        %v2794 = vpack.c.bf16 %v2746, %v2745
        %v2795 = vpack.c.bf16 %v2747, %v2747
        %v2796 = vpack.c.bf16 %v2749, %v2748
        %v2797 = vpack.c.bf16 %v2750, %v2750
        %v2798 = vpack.c.bf16 %v2752, %v2751
        %v2799 = vpack.c.bf16 %v2753, %v2753
        %v2800 = vpack.c.bf16 %v2755, %v2754
        %v2801 = vpack.c.bf16 %v2756, %v2756
        %v2802 = vpack.c.bf16 %v2758, %v2757
        %v2803 = vpack.c.bf16 %v2759, %v2759
        %v2804 = vpack.c.bf16 %v2761, %v2760
        %v2805 = vpack.c.bf16 %v2762, %v2762
        %v2806 = vpack.c.bf16 %v2764, %v2763
        %v2807 = vpack.c.bf16 %v2765, %v2765
        %v2808 = vpack.c.bf16 %v2767, %v2766
        %v2809 = vpack.c.bf16 %v2768, %v2768
        %v2810 = vpack.c.bf16 %v2770, %v2769
        %v2811 = vpack.c.bf16 %v2771, %v2771
        %v2812 = vpack.c.bf16 %v2773, %v2772
        %v2813 = vpack.c.bf16 %v2774, %v2774
        %v2846 = vunpack.c.l.b16 %v2782
        %v2847 = vunpack.c.h.b16 %v2782
        %v2848 = vunpack.c.l.b16 %v2783
        %v2849 = vunpack.c.l.b16 %v2784
        %v2850 = vunpack.c.h.b16 %v2784
        %v2851 = vunpack.c.l.b16 %v2785
        %v2852 = vunpack.c.l.b16 %v2786
        %v2853 = vunpack.c.h.b16 %v2786
        %v2854 = vunpack.c.l.b16 %v2787
        %v2855 = vunpack.c.l.b16 %v2788
        %v2856 = vunpack.c.h.b16 %v2788
        %v2857 = vunpack.c.l.b16 %v2789
        %v2858 = vunpack.c.l.b16 %v2790
        %v2859 = vunpack.c.h.b16 %v2790
        %v2860 = vunpack.c.l.b16 %v2791
        %v2861 = vunpack.c.l.b16 %v2792
        %v2862 = vunpack.c.h.b16 %v2792
        %v2863 = vunpack.c.l.b16 %v2793
        %v2864 = vunpack.c.l.b16 %v2794
        %v2865 = vunpack.c.h.b16 %v2794
        %v2866 = vunpack.c.l.b16 %v2795
        %v2867 = vunpack.c.l.b16 %v2796
        %v2868 = vunpack.c.h.b16 %v2796
        %v2869 = vunpack.c.l.b16 %v2797
        %v2870 = vunpack.c.l.b16 %v2798
        %v2871 = vunpack.c.h.b16 %v2798
        %v2872 = vunpack.c.l.b16 %v2799
        %v2873 = vunpack.c.l.b16 %v2800
        %v2874 = vunpack.c.h.b16 %v2800
        %v2875 = vunpack.c.l.b16 %v2801
        %v2876 = vunpack.c.l.b16 %v2802
        %v2877 = vunpack.c.h.b16 %v2802
        %v2878 = vunpack.c.l.b16 %v2803
        %v2879 = vunpack.c.l.b16 %v2804
        %v2880 = vunpack.c.h.b16 %v2804
        %v2881 = vunpack.c.l.b16 %v2805
        %v2882 = vunpack.c.l.b16 %v2806
        %v2883 = vunpack.c.h.b16 %v2806
        %v2884 = vunpack.c.l.b16 %v2807
        %v2885 = vunpack.c.l.b16 %v2808
        %v2886 = vunpack.c.h.b16 %v2808
        %v2887 = vunpack.c.l.b16 %v2809
        %v2888 = vunpack.c.l.b16 %v2810
        %v2889 = vunpack.c.h.b16 %v2810
        %v2890 = vunpack.c.l.b16 %v2811
        %v2891 = vunpack.c.l.b16 %v2812
        %v2892 = vunpack.c.h.b16 %v2812
        %v2893 = vunpack.c.l.b16 %v2813
        %v2894 = vpack.c.b16 %v2846, %v2846
        %v2895 = vpack.c.b16 %v2847, %v2847
        %v2896 = vpack.c.b16 %v2848, %v2848
        %v2897 = vpack.c.b16 %v2849, %v2849
        %v2898 = vpack.c.b16 %v2850, %v2850
        %v2899 = vpack.c.b16 %v2851, %v2851
        %v2900 = vpack.c.b16 %v2852, %v2852
        %v2901 = vpack.c.b16 %v2853, %v2853
        %v2902 = vpack.c.b16 %v2854, %v2854
        %v2903 = vpack.c.b16 %v2855, %v2855
        %v2904 = vpack.c.b16 %v2856, %v2856
        %v2905 = vpack.c.b16 %v2857, %v2857
        %v2906 = vpack.c.b16 %v2858, %v2858
        %v2907 = vpack.c.b16 %v2859, %v2859
        %v2908 = vpack.c.b16 %v2860, %v2860
        %v2909 = vpack.c.b16 %v2861, %v2861
        %v2910 = vpack.c.b16 %v2862, %v2862
        %v2911 = vpack.c.b16 %v2863, %v2863
        %v2912 = vpack.c.b16 %v2864, %v2864
        %v2913 = vpack.c.b16 %v2865, %v2865
        %v2914 = vpack.c.b16 %v2866, %v2866
        %v2915 = vpack.c.b16 %v2867, %v2867
        %v2916 = vpack.c.b16 %v2868, %v2868
        %v2917 = vpack.c.b16 %v2869, %v2869
        %v2918 = vpack.c.b16 %v2870, %v2870
        %v2919 = vpack.c.b16 %v2871, %v2871
        %v2920 = vpack.c.b16 %v2872, %v2872
        %v2921 = vpack.c.b16 %v2873, %v2873
        %v2922 = vpack.c.b16 %v2874, %v2874
        %v2923 = vpack.c.b16 %v2875, %v2875
        %v2924 = vpack.c.b16 %v2876, %v2876
        %v2925 = vpack.c.b16 %v2877, %v2877
        %v2926 = vpack.c.b16 %v2878, %v2878
        %v2927 = vpack.c.b16 %v2879, %v2879
        %v2928 = vpack.c.b16 %v2880, %v2880
        %v2929 = vpack.c.b16 %v2881, %v2881
        %v2930 = vpack.c.b16 %v2882, %v2882
        %v2931 = vpack.c.b16 %v2883, %v2883
        %v2932 = vpack.c.b16 %v2884, %v2884
        %v2933 = vpack.c.b16 %v2885, %v2885
        %v2934 = vpack.c.b16 %v2886, %v2886
        %v2935 = vpack.c.b16 %v2887, %v2887
        %v2936 = vpack.c.b16 %v2888, %v2888
        %v2937 = vpack.c.b16 %v2889, %v2889
        %v2938 = vpack.c.b16 %v2890, %v2890
        %v2939 = vpack.c.b16 %v2891, %v2891
        %v2940 = vpack.c.b16 %v2892, %v2892
        %v2941 = vpack.c.b16 %v2893, %v2893
        %s2990 = scalar_lea.vmem [#allocation2], 12
        %2991 = vst [vmem:[%s2990] sm:$0xf] %v2894
        %2992 = vst [vmem:[%s2990 + $0x4] sm:$0xf] %v2895
        %2993 = vst [vmem:[%s2990 + $0x8] sm:$0xf] %v2896
        %2994 = vst [vmem:[%s2990 + $0xc] sm:$0xf] %v2897
        %2995 = vst [vmem:[%s2990 + $0x10] sm:$0xf] %v2898
        %2996 = vst [vmem:[%s2990 + $0x14] sm:$0xf] %v2899
        %2997 = vst [vmem:[%s2990 + $0x18] sm:$0xf] %v2900
        %2998 = vst [vmem:[%s2990 + $0x1c] sm:$0xf] %v2901
        %2999 = vst [vmem:[%s2990 + $0x20] sm:$0xf] %v2902
        %3000 = vst [vmem:[%s2990 + $0x24] sm:$0xf] %v2903
        %3001 = vst [vmem:[%s2990 + $0x28] sm:$0xf] %v2904
        %3002 = vst [vmem:[%s2990 + $0x2c] sm:$0xf] %v2905
        %3003 = vst [vmem:[%s2990 + $0x30] sm:$0xf] %v2906
        %3004 = vst [vmem:[%s2990 + $0x34] sm:$0xf] %v2907
        %3005 = vst [vmem:[%s2990 + $0x38] sm:$0xf] %v2908
        %3006 = vst [vmem:[%s2990 + $0x3c] sm:$0xf] %v2909
        %3007 = vst [vmem:[%s2990 + $0x40] sm:$0xf] %v2910
        %3008 = vst [vmem:[%s2990 + $0x44] sm:$0xf] %v2911
        %3009 = vst [vmem:[%s2990 + $0x48] sm:$0xf] %v2912
        %3010 = vst [vmem:[%s2990 + $0x4c] sm:$0xf] %v2913
        %3011 = vst [vmem:[%s2990 + $0x50] sm:$0xf] %v2914
        %3012 = vst [vmem:[%s2990 + $0x54] sm:$0xf] %v2915
        %3013 = vst [vmem:[%s2990 + $0x58] sm:$0xf] %v2916
        %3014 = vst [vmem:[%s2990 + $0x5c] sm:$0xf] %v2917
        %3015 = vst [vmem:[%s2990 + $0x60] sm:$0xf] %v2918
        %3016 = vst [vmem:[%s2990 + $0x64] sm:$0xf] %v2919
        %3017 = vst [vmem:[%s2990 + $0x68] sm:$0xf] %v2920
        %3018 = vst [vmem:[%s2990 + $0x6c] sm:$0xf] %v2921
        %3019 = vst [vmem:[%s2990 + $0x70] sm:$0xf] %v2922
        %3020 = vst [vmem:[%s2990 + $0x74] sm:$0xf] %v2923
        %3021 = vst [vmem:[%s2990 + $0x78] sm:$0xf] %v2924
        %3022 = vst [vmem:[%s2990 + $0x7c] sm:$0xf] %v2925
        %3023 = vst [vmem:[%s2990 + $0x80] sm:$0xf] %v2926
        %3024 = vst [vmem:[%s2990 + $0x84] sm:$0xf] %v2927
        %3025 = vst [vmem:[%s2990 + $0x88] sm:$0xf] %v2928
        %3026 = vst [vmem:[%s2990 + $0x8c] sm:$0xf] %v2929
        %3027 = vst [vmem:[%s2990 + $0x90] sm:$0xf] %v2930
        %3028 = vst [vmem:[%s2990 + $0x94] sm:$0xf] %v2931
        %3029 = vst [vmem:[%s2990 + $0x98] sm:$0xf] %v2932
        %3030 = vst [vmem:[%s2990 + $0x9c] sm:$0xf] %v2933
        %3031 = vst [vmem:[%s2990 + $0xa0] sm:$0xf] %v2934
        %3032 = vst [vmem:[%s2990 + $0xa4] sm:$0xf] %v2935
        %3033 = vst [vmem:[%s2990 + $0xa8] sm:$0xf] %v2936
        %3034 = vst [vmem:[%s2990 + $0xac] sm:$0xf] %v2937
        %3035 = vst [vmem:[%s2990 + $0xb0] sm:$0xf] %v2938
        %3036 = vst [vmem:[%s2990 + $0xb4] sm:$0xf] %v2939
        %3037 = vst [vmem:[%s2990 + $0xb8] sm:$0xf] %v2940
        %3038 = vst [vmem:[%s2990 + $0xbc] sm:$0xf] %v2941
        %v3039 = vld [vmem:[%s321] sm:$0xf]
        %v3040 = vld [vmem:[%s321 + $0x4] sm:$0xf]
        %v3041 = vld [vmem:[%s321 + $0x8] sm:$0xf]
        %v3042 = vld [vmem:[%s321 + $0xc] sm:$0xf]
        %v3043 = vld [vmem:[%s321 + $0x10] sm:$0xf]
        %v3044 = vld [vmem:[%s321 + $0x14] sm:$0xf]
        %v3045 = vld [vmem:[%s321 + $0x18] sm:$0xf]
        %v3046 = vld [vmem:[%s321 + $0x1c] sm:$0xf]
        %v3047 = vld [vmem:[%s321 + $0x20] sm:$0xf]
        %v3048 = vld [vmem:[%s321 + $0x24] sm:$0xf]
        %v3049 = vld [vmem:[%s321 + $0x28] sm:$0xf]
        %v3050 = vld [vmem:[%s321 + $0x2c] sm:$0xf]
        %v3051 = vld [vmem:[%s321 + $0x30] sm:$0xf]
        %v3052 = vld [vmem:[%s321 + $0x34] sm:$0xf]
        %v3053 = vld [vmem:[%s321 + $0x38] sm:$0xf]
        %v3054 = vld [vmem:[%s321 + $0x3c] sm:$0xf]
        %v3055 = vld [vmem:[%s321 + $0x40] sm:$0xf]
        %v3056 = vld [vmem:[%s321 + $0x44] sm:$0xf]
        %v3057 = vld [vmem:[%s321 + $0x48] sm:$0xf]
        %v3058 = vld [vmem:[%s321 + $0x4c] sm:$0xf]
        %v3059 = vld [vmem:[%s321 + $0x50] sm:$0xf]
        %v3060 = vld [vmem:[%s321 + $0x54] sm:$0xf]
        %v3061 = vld [vmem:[%s321 + $0x58] sm:$0xf]
        %v3062 = vld [vmem:[%s321 + $0x5c] sm:$0xf]
        %v3063 = vld [vmem:[%s321 + $0x60] sm:$0xf]
        %v3064 = vld [vmem:[%s321 + $0x64] sm:$0xf]
        %v3065 = vld [vmem:[%s321 + $0x68] sm:$0xf]
        %v3066 = vld [vmem:[%s321 + $0x6c] sm:$0xf]
        %v3067 = vld [vmem:[%s321 + $0x70] sm:$0xf]
        %v3068 = vld [vmem:[%s321 + $0x74] sm:$0xf]
        %v3069 = vld [vmem:[%s321 + $0x78] sm:$0xf]
        %v3070 = vld [vmem:[%s321 + $0x7c] sm:$0xf]
        %v3071 = vld [vmem:[%s321 + $0x80] sm:$0xf]
        %v3072 = vld [vmem:[%s321 + $0x84] sm:$0xf]
        %v3073 = vld [vmem:[%s321 + $0x88] sm:$0xf]
        %v3074 = vld [vmem:[%s321 + $0x8c] sm:$0xf]
        %v3075 = vld [vmem:[%s321 + $0x90] sm:$0xf]
        %v3076 = vld [vmem:[%s321 + $0x94] sm:$0xf]
        %v3077 = vld [vmem:[%s321 + $0x98] sm:$0xf]
        %v3078 = vld [vmem:[%s321 + $0x9c] sm:$0xf]
        %v3079 = vld [vmem:[%s321 + $0xa0] sm:$0xf]
        %v3080 = vld [vmem:[%s321 + $0xa4] sm:$0xf]
        %v3081 = vld [vmem:[%s321 + $0xa8] sm:$0xf]
        %v3082 = vld [vmem:[%s321 + $0xac] sm:$0xf]
        %v3083 = vld [vmem:[%s321 + $0xb0] sm:$0xf]
        %v3084 = vld [vmem:[%s321 + $0xb4] sm:$0xf]
        %v3085 = vld [vmem:[%s321 + $0xb8] sm:$0xf]
        %v3086 = vld [vmem:[%s321 + $0xbc] sm:$0xf]
        %v3087 = vunpack.c.l.bf16 %v3039
        %v3088 = vunpack.c.l.bf16 %v3040
        %v3089 = vunpack.c.l.bf16 %v3041
        %v3090 = vunpack.c.l.bf16 %v3042
        %v3091 = vunpack.c.l.bf16 %v3043
        %v3092 = vunpack.c.l.bf16 %v3044
        %v3093 = vunpack.c.l.bf16 %v3045
        %v3094 = vunpack.c.l.bf16 %v3046
        %v3095 = vunpack.c.l.bf16 %v3047
        %v3096 = vunpack.c.l.bf16 %v3048
        %v3097 = vunpack.c.l.bf16 %v3049
        %v3098 = vunpack.c.l.bf16 %v3050
        %v3099 = vunpack.c.l.bf16 %v3051
        %v3100 = vunpack.c.l.bf16 %v3052
        %v3101 = vunpack.c.l.bf16 %v3053
        %v3102 = vunpack.c.l.bf16 %v3054
        %v3103 = vunpack.c.l.bf16 %v3055
        %v3104 = vunpack.c.l.bf16 %v3056
        %v3105 = vunpack.c.l.bf16 %v3057
        %v3106 = vunpack.c.l.bf16 %v3058
        %v3107 = vunpack.c.l.bf16 %v3059
        %v3108 = vunpack.c.l.bf16 %v3060
        %v3109 = vunpack.c.l.bf16 %v3061
        %v3110 = vunpack.c.l.bf16 %v3062
        %v3111 = vunpack.c.l.bf16 %v3063
        %v3112 = vunpack.c.l.bf16 %v3064
        %v3113 = vunpack.c.l.bf16 %v3065
        %v3114 = vunpack.c.l.bf16 %v3066
        %v3115 = vunpack.c.l.bf16 %v3067
        %v3116 = vunpack.c.l.bf16 %v3068
        %v3117 = vunpack.c.l.bf16 %v3069
        %v3118 = vunpack.c.l.bf16 %v3070
        %v3119 = vunpack.c.l.bf16 %v3071
        %v3120 = vunpack.c.l.bf16 %v3072
        %v3121 = vunpack.c.l.bf16 %v3073
        %v3122 = vunpack.c.l.bf16 %v3074
        %v3123 = vunpack.c.l.bf16 %v3075
        %v3124 = vunpack.c.l.bf16 %v3076
        %v3125 = vunpack.c.l.bf16 %v3077
        %v3126 = vunpack.c.l.bf16 %v3078
        %v3127 = vunpack.c.l.bf16 %v3079
        %v3128 = vunpack.c.l.bf16 %v3080
        %v3129 = vunpack.c.l.bf16 %v3081
        %v3130 = vunpack.c.l.bf16 %v3082
        %v3131 = vunpack.c.l.bf16 %v3083
        %v3132 = vunpack.c.l.bf16 %v3084
        %v3133 = vunpack.c.l.bf16 %v3085
        %v3134 = vunpack.c.l.bf16 %v3086
        %v3135 = vld [vmem:[#allocation2] sm:$0xf]
        %v3136 = vld [vmem:[#allocation2 + $0x4] sm:$0xf]
        %v3137 = vld [vmem:[#allocation2 + $0x8] sm:$0xf]
        %v3138 = vld [vmem:[#allocation2 + $0xc] sm:$0xf]
        %v3139 = vld [vmem:[#allocation2 + $0x10] sm:$0xf]
        %v3140 = vld [vmem:[#allocation2 + $0x14] sm:$0xf]
        %v3141 = vld [vmem:[#allocation2 + $0x18] sm:$0xf]
        %v3142 = vld [vmem:[#allocation2 + $0x1c] sm:$0xf]
        %v3143 = vld [vmem:[#allocation2 + $0x20] sm:$0xf]
        %v3144 = vld [vmem:[#allocation2 + $0x24] sm:$0xf]
        %v3145 = vld [vmem:[#allocation2 + $0x28] sm:$0xf]
        %v3146 = vld [vmem:[#allocation2 + $0x2c] sm:$0xf]
        %v3147 = vld [vmem:[#allocation2 + $0x30] sm:$0xf]
        %v3148 = vld [vmem:[#allocation2 + $0x34] sm:$0xf]
        %v3149 = vld [vmem:[#allocation2 + $0x38] sm:$0xf]
        %v3150 = vld [vmem:[#allocation2 + $0x3c] sm:$0xf]
        %v3151 = vld [vmem:[#allocation2 + $0x40] sm:$0xf]
        %v3152 = vld [vmem:[#allocation2 + $0x44] sm:$0xf]
        %v3153 = vld [vmem:[#allocation2 + $0x48] sm:$0xf]
        %v3154 = vld [vmem:[#allocation2 + $0x4c] sm:$0xf]
        %v3155 = vld [vmem:[#allocation2 + $0x50] sm:$0xf]
        %v3156 = vld [vmem:[#allocation2 + $0x54] sm:$0xf]
        %v3157 = vld [vmem:[#allocation2 + $0x58] sm:$0xf]
        %v3158 = vld [vmem:[#allocation2 + $0x5c] sm:$0xf]
        %v3159 = vld [vmem:[#allocation2 + $0x60] sm:$0xf]
        %v3160 = vld [vmem:[#allocation2 + $0x64] sm:$0xf]
        %v3161 = vld [vmem:[#allocation2 + $0x68] sm:$0xf]
        %v3162 = vld [vmem:[#allocation2 + $0x6c] sm:$0xf]
        %v3163 = vld [vmem:[#allocation2 + $0x70] sm:$0xf]
        %v3164 = vld [vmem:[#allocation2 + $0x74] sm:$0xf]
        %v3165 = vld [vmem:[#allocation2 + $0x78] sm:$0xf]
        %v3166 = vld [vmem:[#allocation2 + $0x7c] sm:$0xf]
        %v3167 = vld [vmem:[#allocation2 + $0x80] sm:$0xf]
        %v3168 = vld [vmem:[#allocation2 + $0x84] sm:$0xf]
        %v3169 = vld [vmem:[#allocation2 + $0x88] sm:$0xf]
        %v3170 = vld [vmem:[#allocation2 + $0x8c] sm:$0xf]
        %v3171 = vld [vmem:[#allocation2 + $0x90] sm:$0xf]
        %v3172 = vld [vmem:[#allocation2 + $0x94] sm:$0xf]
        %v3173 = vld [vmem:[#allocation2 + $0x98] sm:$0xf]
        %v3174 = vld [vmem:[#allocation2 + $0x9c] sm:$0xf]
        %v3175 = vld [vmem:[#allocation2 + $0xa0] sm:$0xf]
        %v3176 = vld [vmem:[#allocation2 + $0xa4] sm:$0xf]
        %v3177 = vld [vmem:[#allocation2 + $0xa8] sm:$0xf]
        %v3178 = vld [vmem:[#allocation2 + $0xac] sm:$0xf]
        %v3179 = vld [vmem:[#allocation2 + $0xb0] sm:$0xf]
        %v3180 = vld [vmem:[#allocation2 + $0xb4] sm:$0xf]
        %v3181 = vld [vmem:[#allocation2 + $0xb8] sm:$0xf]
        %v3182 = vld [vmem:[#allocation2 + $0xbc] sm:$0xf]
        %v3183 = vld [vmem:[%s2990] sm:$0xf]
        %v3184 = vld [vmem:[%s2990 + $0x4] sm:$0xf]
        %v3185 = vld [vmem:[%s2990 + $0x8] sm:$0xf]
        %v3186 = vld [vmem:[%s2990 + $0xc] sm:$0xf]
        %v3187 = vld [vmem:[%s2990 + $0x10] sm:$0xf]
        %v3188 = vld [vmem:[%s2990 + $0x14] sm:$0xf]
        %v3189 = vld [vmem:[%s2990 + $0x18] sm:$0xf]
        %v3190 = vld [vmem:[%s2990 + $0x1c] sm:$0xf]
        %v3191 = vld [vmem:[%s2990 + $0x20] sm:$0xf]
        %v3192 = vld [vmem:[%s2990 + $0x24] sm:$0xf]
        %v3193 = vld [vmem:[%s2990 + $0x28] sm:$0xf]
        %v3194 = vld [vmem:[%s2990 + $0x2c] sm:$0xf]
        %v3195 = vld [vmem:[%s2990 + $0x30] sm:$0xf]
        %v3196 = vld [vmem:[%s2990 + $0x34] sm:$0xf]
        %v3197 = vld [vmem:[%s2990 + $0x38] sm:$0xf]
        %v3198 = vld [vmem:[%s2990 + $0x3c] sm:$0xf]
        %v3199 = vld [vmem:[%s2990 + $0x40] sm:$0xf]
        %v3200 = vld [vmem:[%s2990 + $0x44] sm:$0xf]
        %v3201 = vld [vmem:[%s2990 + $0x48] sm:$0xf]
        %v3202 = vld [vmem:[%s2990 + $0x4c] sm:$0xf]
        %v3203 = vld [vmem:[%s2990 + $0x50] sm:$0xf]
        %v3204 = vld [vmem:[%s2990 + $0x54] sm:$0xf]
        %v3205 = vld [vmem:[%s2990 + $0x58] sm:$0xf]
        %v3206 = vld [vmem:[%s2990 + $0x5c] sm:$0xf]
        %v3207 = vld [vmem:[%s2990 + $0x60] sm:$0xf]
        %v3208 = vld [vmem:[%s2990 + $0x64] sm:$0xf]
        %v3209 = vld [vmem:[%s2990 + $0x68] sm:$0xf]
        %v3210 = vld [vmem:[%s2990 + $0x6c] sm:$0xf]
        %v3211 = vld [vmem:[%s2990 + $0x70] sm:$0xf]
        %v3212 = vld [vmem:[%s2990 + $0x74] sm:$0xf]
        %v3213 = vld [vmem:[%s2990 + $0x78] sm:$0xf]
        %v3214 = vld [vmem:[%s2990 + $0x7c] sm:$0xf]
        %v3215 = vld [vmem:[%s2990 + $0x80] sm:$0xf]
        %v3216 = vld [vmem:[%s2990 + $0x84] sm:$0xf]
        %v3217 = vld [vmem:[%s2990 + $0x88] sm:$0xf]
        %v3218 = vld [vmem:[%s2990 + $0x8c] sm:$0xf]
        %v3219 = vld [vmem:[%s2990 + $0x90] sm:$0xf]
        %v3220 = vld [vmem:[%s2990 + $0x94] sm:$0xf]
        %v3221 = vld [vmem:[%s2990 + $0x98] sm:$0xf]
        %v3222 = vld [vmem:[%s2990 + $0x9c] sm:$0xf]
        %v3223 = vld [vmem:[%s2990 + $0xa0] sm:$0xf]
        %v3224 = vld [vmem:[%s2990 + $0xa4] sm:$0xf]
        %v3225 = vld [vmem:[%s2990 + $0xa8] sm:$0xf]
        %v3226 = vld [vmem:[%s2990 + $0xac] sm:$0xf]
        %v3227 = vld [vmem:[%s2990 + $0xb0] sm:$0xf]
        %v3228 = vld [vmem:[%s2990 + $0xb4] sm:$0xf]
        %v3229 = vld [vmem:[%s2990 + $0xb8] sm:$0xf]
        %v3230 = vld [vmem:[%s2990 + $0xbc] sm:$0xf]
        %s3231 = scalar_lea.vmem [#allocation2], 24
        %v3232 = vld [vmem:[%s3231] sm:$0xf]
        %v3233 = vld [vmem:[%s3231 + $0x4] sm:$0xf]
        %v3234 = vld [vmem:[%s3231 + $0x8] sm:$0xf]
        %v3235 = vld [vmem:[%s3231 + $0xc] sm:$0xf]
        %v3236 = vld [vmem:[%s3231 + $0x10] sm:$0xf]
        %v3237 = vld [vmem:[%s3231 + $0x14] sm:$0xf]
        %v3238 = vld [vmem:[%s3231 + $0x18] sm:$0xf]
        %v3239 = vld [vmem:[%s3231 + $0x1c] sm:$0xf]
        %v3240 = vld [vmem:[%s3231 + $0x20] sm:$0xf]
        %v3241 = vld [vmem:[%s3231 + $0x24] sm:$0xf]
        %v3242 = vld [vmem:[%s3231 + $0x28] sm:$0xf]
        %v3243 = vld [vmem:[%s3231 + $0x2c] sm:$0xf]
        %v3244 = vld [vmem:[%s3231 + $0x30] sm:$0xf]
        %v3245 = vld [vmem:[%s3231 + $0x34] sm:$0xf]
        %v3246 = vld [vmem:[%s3231 + $0x38] sm:$0xf]
        %v3247 = vld [vmem:[%s3231 + $0x3c] sm:$0xf]
        %v3248 = vld [vmem:[%s3231 + $0x40] sm:$0xf]
        %v3249 = vld [vmem:[%s3231 + $0x44] sm:$0xf]
        %v3250 = vld [vmem:[%s3231 + $0x48] sm:$0xf]
        %v3251 = vld [vmem:[%s3231 + $0x4c] sm:$0xf]
        %v3252 = vld [vmem:[%s3231 + $0x50] sm:$0xf]
        %v3253 = vld [vmem:[%s3231 + $0x54] sm:$0xf]
        %v3254 = vld [vmem:[%s3231 + $0x58] sm:$0xf]
        %v3255 = vld [vmem:[%s3231 + $0x5c] sm:$0xf]
        %v3256 = vld [vmem:[%s3231 + $0x60] sm:$0xf]
        %v3257 = vld [vmem:[%s3231 + $0x64] sm:$0xf]
        %v3258 = vld [vmem:[%s3231 + $0x68] sm:$0xf]
        %v3259 = vld [vmem:[%s3231 + $0x6c] sm:$0xf]
        %v3260 = vld [vmem:[%s3231 + $0x70] sm:$0xf]
        %v3261 = vld [vmem:[%s3231 + $0x74] sm:$0xf]
        %v3262 = vld [vmem:[%s3231 + $0x78] sm:$0xf]
        %v3263 = vld [vmem:[%s3231 + $0x7c] sm:$0xf]
        %v3264 = vld [vmem:[%s3231 + $0x80] sm:$0xf]
        %v3265 = vld [vmem:[%s3231 + $0x84] sm:$0xf]
        %v3266 = vld [vmem:[%s3231 + $0x88] sm:$0xf]
        %v3267 = vld [vmem:[%s3231 + $0x8c] sm:$0xf]
        %v3268 = vld [vmem:[%s3231 + $0x90] sm:$0xf]
        %v3269 = vld [vmem:[%s3231 + $0x94] sm:$0xf]
        %v3270 = vld [vmem:[%s3231 + $0x98] sm:$0xf]
        %v3271 = vld [vmem:[%s3231 + $0x9c] sm:$0xf]
        %v3272 = vld [vmem:[%s3231 + $0xa0] sm:$0xf]
        %v3273 = vld [vmem:[%s3231 + $0xa4] sm:$0xf]
        %v3274 = vld [vmem:[%s3231 + $0xa8] sm:$0xf]
        %v3275 = vld [vmem:[%s3231 + $0xac] sm:$0xf]
        %v3276 = vld [vmem:[%s3231 + $0xb0] sm:$0xf]
        %v3277 = vld [vmem:[%s3231 + $0xb4] sm:$0xf]
        %v3278 = vld [vmem:[%s3231 + $0xb8] sm:$0xf]
        %v3279 = vld [vmem:[%s3231 + $0xbc] sm:$0xf]
        %v3328 = vunpack.c.l.b16 %v3135
        %v3329 = vunpack.c.l.b16 %v3136
        %v3330 = vunpack.c.l.b16 %v3137
        %v3331 = vunpack.c.l.b16 %v3138
        %v3332 = vunpack.c.l.b16 %v3139
        %v3333 = vunpack.c.l.b16 %v3140
        %v3334 = vunpack.c.l.b16 %v3141
        %v3335 = vunpack.c.l.b16 %v3142
        %v3336 = vunpack.c.l.b16 %v3143
        %v3337 = vunpack.c.l.b16 %v3144
        %v3338 = vunpack.c.l.b16 %v3145
        %v3339 = vunpack.c.l.b16 %v3146
        %v3340 = vunpack.c.l.b16 %v3147
        %v3341 = vunpack.c.l.b16 %v3148
        %v3342 = vunpack.c.l.b16 %v3149
        %v3343 = vunpack.c.l.b16 %v3150
        %v3344 = vunpack.c.l.b16 %v3151
        %v3345 = vunpack.c.l.b16 %v3152
        %v3346 = vunpack.c.l.b16 %v3153
        %v3347 = vunpack.c.l.b16 %v3154
        %v3348 = vunpack.c.l.b16 %v3155
        %v3349 = vunpack.c.l.b16 %v3156
        %v3350 = vunpack.c.l.b16 %v3157
        %v3351 = vunpack.c.l.b16 %v3158
        %v3352 = vunpack.c.l.b16 %v3159
        %v3353 = vunpack.c.l.b16 %v3160
        %v3354 = vunpack.c.l.b16 %v3161
        %v3355 = vunpack.c.l.b16 %v3162
        %v3356 = vunpack.c.l.b16 %v3163
        %v3357 = vunpack.c.l.b16 %v3164
        %v3358 = vunpack.c.l.b16 %v3165
        %v3359 = vunpack.c.l.b16 %v3166
        %v3360 = vunpack.c.l.b16 %v3167
        %v3361 = vunpack.c.l.b16 %v3168
        %v3362 = vunpack.c.l.b16 %v3169
        %v3363 = vunpack.c.l.b16 %v3170
        %v3364 = vunpack.c.l.b16 %v3171
        %v3365 = vunpack.c.l.b16 %v3172
        %v3366 = vunpack.c.l.b16 %v3173
        %v3367 = vunpack.c.l.b16 %v3174
        %v3368 = vunpack.c.l.b16 %v3175
        %v3369 = vunpack.c.l.b16 %v3176
        %v3370 = vunpack.c.l.b16 %v3177
        %v3371 = vunpack.c.l.b16 %v3178
        %v3372 = vunpack.c.l.b16 %v3179
        %v3373 = vunpack.c.l.b16 %v3180
        %v3374 = vunpack.c.l.b16 %v3181
        %v3375 = vunpack.c.l.b16 %v3182
        %v3424 = vunpack.c.l.b16 %v3183
        %v3425 = vunpack.c.l.b16 %v3184
        %v3426 = vunpack.c.l.b16 %v3185
        %v3427 = vunpack.c.l.b16 %v3186
        %v3428 = vunpack.c.l.b16 %v3187
        %v3429 = vunpack.c.l.b16 %v3188
        %v3430 = vunpack.c.l.b16 %v3189
        %v3431 = vunpack.c.l.b16 %v3190
        %v3432 = vunpack.c.l.b16 %v3191
        %v3433 = vunpack.c.l.b16 %v3192
        %v3434 = vunpack.c.l.b16 %v3193
        %v3435 = vunpack.c.l.b16 %v3194
        %v3436 = vunpack.c.l.b16 %v3195
        %v3437 = vunpack.c.l.b16 %v3196
        %v3438 = vunpack.c.l.b16 %v3197
        %v3439 = vunpack.c.l.b16 %v3198
        %v3440 = vunpack.c.l.b16 %v3199
        %v3441 = vunpack.c.l.b16 %v3200
        %v3442 = vunpack.c.l.b16 %v3201
        %v3443 = vunpack.c.l.b16 %v3202
        %v3444 = vunpack.c.l.b16 %v3203
        %v3445 = vunpack.c.l.b16 %v3204
        %v3446 = vunpack.c.l.b16 %v3205
        %v3447 = vunpack.c.l.b16 %v3206
        %v3448 = vunpack.c.l.b16 %v3207
        %v3449 = vunpack.c.l.b16 %v3208
        %v3450 = vunpack.c.l.b16 %v3209
        %v3451 = vunpack.c.l.b16 %v3210
        %v3452 = vunpack.c.l.b16 %v3211
        %v3453 = vunpack.c.l.b16 %v3212
        %v3454 = vunpack.c.l.b16 %v3213
        %v3455 = vunpack.c.l.b16 %v3214
        %v3456 = vunpack.c.l.b16 %v3215
        %v3457 = vunpack.c.l.b16 %v3216
        %v3458 = vunpack.c.l.b16 %v3217
        %v3459 = vunpack.c.l.b16 %v3218
        %v3460 = vunpack.c.l.b16 %v3219
        %v3461 = vunpack.c.l.b16 %v3220
        %v3462 = vunpack.c.l.b16 %v3221
        %v3463 = vunpack.c.l.b16 %v3222
        %v3464 = vunpack.c.l.b16 %v3223
        %v3465 = vunpack.c.l.b16 %v3224
        %v3466 = vunpack.c.l.b16 %v3225
        %v3467 = vunpack.c.l.b16 %v3226
        %v3468 = vunpack.c.l.b16 %v3227
        %v3469 = vunpack.c.l.b16 %v3228
        %v3470 = vunpack.c.l.b16 %v3229
        %v3471 = vunpack.c.l.b16 %v3230
        %v3520 = vunpack.c.l.b16 %v3232
        %v3521 = vunpack.c.l.b16 %v3233
        %v3522 = vunpack.c.l.b16 %v3234
        %v3523 = vunpack.c.l.b16 %v3235
        %v3524 = vunpack.c.l.b16 %v3236
        %v3525 = vunpack.c.l.b16 %v3237
        %v3526 = vunpack.c.l.b16 %v3238
        %v3527 = vunpack.c.l.b16 %v3239
        %v3528 = vunpack.c.l.b16 %v3240
        %v3529 = vunpack.c.l.b16 %v3241
        %v3530 = vunpack.c.l.b16 %v3242
        %v3531 = vunpack.c.l.b16 %v3243
        %v3532 = vunpack.c.l.b16 %v3244
        %v3533 = vunpack.c.l.b16 %v3245
        %v3534 = vunpack.c.l.b16 %v3246
        %v3535 = vunpack.c.l.b16 %v3247
        %v3536 = vunpack.c.l.b16 %v3248
        %v3537 = vunpack.c.l.b16 %v3249
        %v3538 = vunpack.c.l.b16 %v3250
        %v3539 = vunpack.c.l.b16 %v3251
        %v3540 = vunpack.c.l.b16 %v3252
        %v3541 = vunpack.c.l.b16 %v3253
        %v3542 = vunpack.c.l.b16 %v3254
        %v3543 = vunpack.c.l.b16 %v3255
        %v3544 = vunpack.c.l.b16 %v3256
        %v3545 = vunpack.c.l.b16 %v3257
        %v3546 = vunpack.c.l.b16 %v3258
        %v3547 = vunpack.c.l.b16 %v3259
        %v3548 = vunpack.c.l.b16 %v3260
        %v3549 = vunpack.c.l.b16 %v3261
        %v3550 = vunpack.c.l.b16 %v3262
        %v3551 = vunpack.c.l.b16 %v3263
        %v3552 = vunpack.c.l.b16 %v3264
        %v3553 = vunpack.c.l.b16 %v3265
        %v3554 = vunpack.c.l.b16 %v3266
        %v3555 = vunpack.c.l.b16 %v3267
        %v3556 = vunpack.c.l.b16 %v3268
        %v3557 = vunpack.c.l.b16 %v3269
        %v3558 = vunpack.c.l.b16 %v3270
        %v3559 = vunpack.c.l.b16 %v3271
        %v3560 = vunpack.c.l.b16 %v3272
        %v3561 = vunpack.c.l.b16 %v3273
        %v3562 = vunpack.c.l.b16 %v3274
        %v3563 = vunpack.c.l.b16 %v3275
        %v3564 = vunpack.c.l.b16 %v3276
        %v3565 = vunpack.c.l.b16 %v3277
        %v3566 = vunpack.c.l.b16 %v3278
        %v3567 = vunpack.c.l.b16 %v3279
        %v3568 = vld [vmem:[#allocation8] sm:$0xff]
        %v3569 = vld [vmem:[#allocation8 + $0x8] sm:$0xf]
        %v3570 = vld [vmem:[#allocation8 + $0xc] sm:$0xff]
        %v3571 = vld [vmem:[#allocation8 + $0x14] sm:$0xf]
        %v3572 = vld [vmem:[#allocation8 + $0x18] sm:$0xff]
        %v3573 = vld [vmem:[#allocation8 + $0x20] sm:$0xf]
        %v3574 = vld [vmem:[#allocation8 + $0x24] sm:$0xff]
        %v3575 = vld [vmem:[#allocation8 + $0x2c] sm:$0xf]
        %v3576 = vld [vmem:[#allocation8 + $0x30] sm:$0xff]
        %v3577 = vld [vmem:[#allocation8 + $0x38] sm:$0xf]
        %v3578 = vld [vmem:[#allocation8 + $0x3c] sm:$0xff]
        %v3579 = vld [vmem:[#allocation8 + $0x44] sm:$0xf]
        %v3580 = vld [vmem:[#allocation8 + $0x48] sm:$0xff]
        %v3581 = vld [vmem:[#allocation8 + $0x50] sm:$0xf]
        %v3582 = vld [vmem:[#allocation8 + $0x54] sm:$0xff]
        %v3583 = vld [vmem:[#allocation8 + $0x5c] sm:$0xf]
        %v3584 = vld [vmem:[#allocation8 + $0x60] sm:$0xff]
        %v3585 = vld [vmem:[#allocation8 + $0x68] sm:$0xf]
        %v3586 = vld [vmem:[#allocation8 + $0x6c] sm:$0xff]
        %v3587 = vld [vmem:[#allocation8 + $0x74] sm:$0xf]
        %v3588 = vld [vmem:[#allocation8 + $0x78] sm:$0xff]
        %v3589 = vld [vmem:[#allocation8 + $0x80] sm:$0xf]
        %v3590 = vld [vmem:[#allocation8 + $0x84] sm:$0xff]
        %v3591 = vld [vmem:[#allocation8 + $0x8c] sm:$0xf]
        %v3592 = vld [vmem:[#allocation8 + $0x90] sm:$0xff]
        %v3593 = vld [vmem:[#allocation8 + $0x98] sm:$0xf]
        %v3594 = vld [vmem:[#allocation8 + $0x9c] sm:$0xff]
        %v3595 = vld [vmem:[#allocation8 + $0xa4] sm:$0xf]
        %v3596 = vld [vmem:[#allocation8 + $0xa8] sm:$0xff]
        %v3597 = vld [vmem:[#allocation8 + $0xb0] sm:$0xf]
        %v3598 = vld [vmem:[#allocation8 + $0xb4] sm:$0xff]
        %v3599 = vld [vmem:[#allocation8 + $0xbc] sm:$0xf]
        %v3600 = vld [vmem:[#allocation8 + $0xc0] sm:$0xff]
        %v3601 = vld [vmem:[#allocation8 + $0xc8] sm:$0xf]
        %v3602 = vld [vmem:[#allocation8 + $0xcc] sm:$0xff]
        %v3603 = vld [vmem:[#allocation8 + $0xd4] sm:$0xf]
        %v3604 = vld [vmem:[#allocation8 + $0xd8] sm:$0xff]
        %v3605 = vld [vmem:[#allocation8 + $0xe0] sm:$0xf]
        %v3606 = vld [vmem:[#allocation8 + $0xe4] sm:$0xff]
        %v3607 = vld [vmem:[#allocation8 + $0xec] sm:$0xf]
        %v3608 = vld [vmem:[#allocation8 + $0xf0] sm:$0xff]
        %v3609 = vld [vmem:[#allocation8 + $0xf8] sm:$0xf]
        %v3610 = vld [vmem:[#allocation8 + $0xfc] sm:$0xff]
        %v3611 = vld [vmem:[#allocation8 + $0x104] sm:$0xf]
        %v3612 = vld [vmem:[#allocation8 + $0x108] sm:$0xff]
        %v3613 = vld [vmem:[#allocation8 + $0x110] sm:$0xf]
        %v3614 = vld [vmem:[#allocation8 + $0x114] sm:$0xff]
        %v3615 = vld [vmem:[#allocation8 + $0x11c] sm:$0xf]
        %v3616 = vld [vmem:[#allocation8 + $0x120] sm:$0xff]
        %v3617 = vld [vmem:[#allocation8 + $0x128] sm:$0xf]
        %v3618 = vld [vmem:[#allocation8 + $0x12c] sm:$0xff]
        %v3619 = vld [vmem:[#allocation8 + $0x134] sm:$0xf]
        %v3620 = vld [vmem:[#allocation8 + $0x138] sm:$0xff]
        %v3621 = vld [vmem:[#allocation8 + $0x140] sm:$0xf]
        %v3622 = vld [vmem:[#allocation8 + $0x144] sm:$0xff]
        %v3623 = vld [vmem:[#allocation8 + $0x14c] sm:$0xf]
        %v3624 = vld [vmem:[#allocation8 + $0x150] sm:$0xff]
        %v3625 = vld [vmem:[#allocation8 + $0x158] sm:$0xf]
        %v3626 = vld [vmem:[#allocation8 + $0x15c] sm:$0xff]
        %v3627 = vld [vmem:[#allocation8 + $0x164] sm:$0xf]
        %v3628 = vld [vmem:[#allocation8 + $0x168] sm:$0xff]
        %v3629 = vld [vmem:[#allocation8 + $0x170] sm:$0xf]
        %v3630 = vld [vmem:[#allocation8 + $0x174] sm:$0xff]
        %v3631 = vld [vmem:[#allocation8 + $0x17c] sm:$0xf]
        %v3632 = vld [vmem:[#allocation8 + $0x180] sm:$0xff]
        %v3633 = vld [vmem:[#allocation8 + $0x188] sm:$0xf]
        %v3634 = vld [vmem:[#allocation8 + $0x18c] sm:$0xff]
        %v3635 = vld [vmem:[#allocation8 + $0x194] sm:$0xf]
        %v3636 = vld [vmem:[#allocation8 + $0x198] sm:$0xff]
        %v3637 = vld [vmem:[#allocation8 + $0x1a0] sm:$0xf]
        %v3638 = vld [vmem:[#allocation8 + $0x1a4] sm:$0xff]
        %v3639 = vld [vmem:[#allocation8 + $0x1ac] sm:$0xf]
        %v3640 = vld [vmem:[#allocation8 + $0x1b0] sm:$0xff]
        %v3641 = vld [vmem:[#allocation8 + $0x1b8] sm:$0xf]
        %v3642 = vld [vmem:[#allocation8 + $0x1bc] sm:$0xff]
        %v3643 = vld [vmem:[#allocation8 + $0x1c4] sm:$0xf]
        %v3644 = vld [vmem:[#allocation8 + $0x1c8] sm:$0xff]
        %v3645 = vld [vmem:[#allocation8 + $0x1d0] sm:$0xf]
        %v3646 = vld [vmem:[#allocation8 + $0x1d4] sm:$0xff]
        %v3647 = vld [vmem:[#allocation8 + $0x1dc] sm:$0xf]
        %v3648 = vld [vmem:[#allocation8 + $0x1e0] sm:$0xff]
        %v3649 = vld [vmem:[#allocation8 + $0x1e8] sm:$0xf]
        %v3650 = vld [vmem:[#allocation8 + $0x1ec] sm:$0xff]
        %v3651 = vld [vmem:[#allocation8 + $0x1f4] sm:$0xf]
        %v3652 = vld [vmem:[#allocation8 + $0x1f8] sm:$0xff]
        %v3653 = vld [vmem:[#allocation8 + $0x200] sm:$0xf]
        %v3654 = vld [vmem:[#allocation8 + $0x204] sm:$0xff]
        %v3655 = vld [vmem:[#allocation8 + $0x20c] sm:$0xf]
        %v3656 = vld [vmem:[#allocation8 + $0x210] sm:$0xff]
        %v3657 = vld [vmem:[#allocation8 + $0x218] sm:$0xf]
        %v3658 = vld [vmem:[#allocation8 + $0x21c] sm:$0xff]
        %v3659 = vld [vmem:[#allocation8 + $0x224] sm:$0xf]
        %v3660 = vld [vmem:[#allocation8 + $0x228] sm:$0xff]
        %v3661 = vld [vmem:[#allocation8 + $0x230] sm:$0xf]
        %v3662 = vld [vmem:[#allocation8 + $0x234] sm:$0xff]
        %v3663 = vld [vmem:[#allocation8 + $0x23c] sm:$0xf]
        %v3664 = vpack.c.b16 %v3329, %v3328
        %v3665 = vpack.c.b16 %v3425, %v3424
        %v3666 = vpack.c.b16 %v3521, %v3520
        %v3667 = vpack.c.b16 %v3331, %v3330
        %v3668 = vpack.c.b16 %v3427, %v3426
        %v3669 = vpack.c.b16 %v3523, %v3522
        %v3670 = vpack.c.b16 %v3333, %v3332
        %v3671 = vpack.c.b16 %v3429, %v3428
        %v3672 = vpack.c.b16 %v3525, %v3524
        %v3673 = vpack.c.b16 %v3335, %v3334
        %v3674 = vpack.c.b16 %v3431, %v3430
        %v3675 = vpack.c.b16 %v3527, %v3526
        %v3676 = vpack.c.b16 %v3337, %v3336
        %v3677 = vpack.c.b16 %v3433, %v3432
        %v3678 = vpack.c.b16 %v3529, %v3528
        %v3679 = vpack.c.b16 %v3339, %v3338
        %v3680 = vpack.c.b16 %v3435, %v3434
        %v3681 = vpack.c.b16 %v3531, %v3530
        %v3682 = vpack.c.b16 %v3341, %v3340
        %v3683 = vpack.c.b16 %v3437, %v3436
        %v3684 = vpack.c.b16 %v3533, %v3532
        %v3685 = vpack.c.b16 %v3343, %v3342
        %v3686 = vpack.c.b16 %v3439, %v3438
        %v3687 = vpack.c.b16 %v3535, %v3534
        %v3688 = vpack.c.b16 %v3345, %v3344
        %v3689 = vpack.c.b16 %v3441, %v3440
        %v3690 = vpack.c.b16 %v3537, %v3536
        %v3691 = vpack.c.b16 %v3347, %v3346
        %v3692 = vpack.c.b16 %v3443, %v3442
        %v3693 = vpack.c.b16 %v3539, %v3538
        %v3694 = vpack.c.b16 %v3349, %v3348
        %v3695 = vpack.c.b16 %v3445, %v3444
        %v3696 = vpack.c.b16 %v3541, %v3540
        %v3697 = vpack.c.b16 %v3351, %v3350
        %v3698 = vpack.c.b16 %v3447, %v3446
        %v3699 = vpack.c.b16 %v3543, %v3542
        %v3700 = vpack.c.b16 %v3353, %v3352
        %v3701 = vpack.c.b16 %v3449, %v3448
        %v3702 = vpack.c.b16 %v3545, %v3544
        %v3703 = vpack.c.b16 %v3355, %v3354
        %v3704 = vpack.c.b16 %v3451, %v3450
        %v3705 = vpack.c.b16 %v3547, %v3546
        %v3706 = vpack.c.b16 %v3357, %v3356
        %v3707 = vpack.c.b16 %v3453, %v3452
        %v3708 = vpack.c.b16 %v3549, %v3548
        %v3709 = vpack.c.b16 %v3359, %v3358
        %v3710 = vpack.c.b16 %v3455, %v3454
        %v3711 = vpack.c.b16 %v3551, %v3550
        %v3712 = vpack.c.b16 %v3361, %v3360
        %v3713 = vpack.c.b16 %v3457, %v3456
        %v3714 = vpack.c.b16 %v3553, %v3552
        %v3715 = vpack.c.b16 %v3363, %v3362
        %v3716 = vpack.c.b16 %v3459, %v3458
        %v3717 = vpack.c.b16 %v3555, %v3554
        %v3718 = vpack.c.b16 %v3365, %v3364
        %v3719 = vpack.c.b16 %v3461, %v3460
        %v3720 = vpack.c.b16 %v3557, %v3556
        %v3721 = vpack.c.b16 %v3367, %v3366
        %v3722 = vpack.c.b16 %v3463, %v3462
        %v3723 = vpack.c.b16 %v3559, %v3558
        %v3724 = vpack.c.b16 %v3369, %v3368
        %v3725 = vpack.c.b16 %v3465, %v3464
        %v3726 = vpack.c.b16 %v3561, %v3560
        %v3727 = vpack.c.b16 %v3371, %v3370
        %v3728 = vpack.c.b16 %v3467, %v3466
        %v3729 = vpack.c.b16 %v3563, %v3562
        %v3730 = vpack.c.b16 %v3373, %v3372
        %v3731 = vpack.c.b16 %v3469, %v3468
        %v3732 = vpack.c.b16 %v3565, %v3564
        %v3733 = vpack.c.b16 %v3375, %v3374
        %v3734 = vpack.c.b16 %v3471, %v3470
        %v3735 = vpack.c.b16 %v3567, %v3566
        %v3904 = vunpack.c.l.b16 %v3568
        %v3905 = vunpack.c.h.b16 %v3568
        %v3906 = vunpack.c.l.b16 %v3569
        %v3907 = vunpack.c.l.b16 %v3570
        %v3908 = vunpack.c.h.b16 %v3570
        %v3909 = vunpack.c.l.b16 %v3571
        %v3910 = vunpack.c.l.b16 %v3572
        %v3911 = vunpack.c.h.b16 %v3572
        %v3912 = vunpack.c.l.b16 %v3573
        %v3913 = vunpack.c.l.b16 %v3574
        %v3914 = vunpack.c.h.b16 %v3574
        %v3915 = vunpack.c.l.b16 %v3575
        %v3916 = vunpack.c.l.b16 %v3576
        %v3917 = vunpack.c.h.b16 %v3576
        %v3918 = vunpack.c.l.b16 %v3577
        %v3919 = vunpack.c.l.b16 %v3578
        %v3920 = vunpack.c.h.b16 %v3578
        %v3921 = vunpack.c.l.b16 %v3579
        %v3922 = vunpack.c.l.b16 %v3580
        %v3923 = vunpack.c.h.b16 %v3580
        %v3924 = vunpack.c.l.b16 %v3581
        %v3925 = vunpack.c.l.b16 %v3582
        %v3926 = vunpack.c.h.b16 %v3582
        %v3927 = vunpack.c.l.b16 %v3583
        %v3928 = vunpack.c.l.b16 %v3584
        %v3929 = vunpack.c.h.b16 %v3584
        %v3930 = vunpack.c.l.b16 %v3585
        %v3931 = vunpack.c.l.b16 %v3586
        %v3932 = vunpack.c.h.b16 %v3586
        %v3933 = vunpack.c.l.b16 %v3587
        %v3934 = vunpack.c.l.b16 %v3588
        %v3935 = vunpack.c.h.b16 %v3588
        %v3936 = vunpack.c.l.b16 %v3589
        %v3937 = vunpack.c.l.b16 %v3590
        %v3938 = vunpack.c.h.b16 %v3590
        %v3939 = vunpack.c.l.b16 %v3591
        %v3940 = vunpack.c.l.b16 %v3592
        %v3941 = vunpack.c.h.b16 %v3592
        %v3942 = vunpack.c.l.b16 %v3593
        %v3943 = vunpack.c.l.b16 %v3594
        %v3944 = vunpack.c.h.b16 %v3594
        %v3945 = vunpack.c.l.b16 %v3595
        %v3946 = vunpack.c.l.b16 %v3596
        %v3947 = vunpack.c.h.b16 %v3596
        %v3948 = vunpack.c.l.b16 %v3597
        %v3949 = vunpack.c.l.b16 %v3598
        %v3950 = vunpack.c.h.b16 %v3598
        %v3951 = vunpack.c.l.b16 %v3599
        %v3952 = vunpack.c.l.b16 %v3600
        %v3953 = vunpack.c.h.b16 %v3600
        %v3954 = vunpack.c.l.b16 %v3601
        %v3955 = vunpack.c.l.b16 %v3602
        %v3956 = vunpack.c.h.b16 %v3602
        %v3957 = vunpack.c.l.b16 %v3603
        %v3958 = vunpack.c.l.b16 %v3604
        %v3959 = vunpack.c.h.b16 %v3604
        %v3960 = vunpack.c.l.b16 %v3605
        %v3961 = vunpack.c.l.b16 %v3606
        %v3962 = vunpack.c.h.b16 %v3606
        %v3963 = vunpack.c.l.b16 %v3607
        %v3964 = vunpack.c.l.b16 %v3608
        %v3965 = vunpack.c.h.b16 %v3608
        %v3966 = vunpack.c.l.b16 %v3609
        %v3967 = vunpack.c.l.b16 %v3610
        %v3968 = vunpack.c.h.b16 %v3610
        %v3969 = vunpack.c.l.b16 %v3611
        %v3970 = vunpack.c.l.b16 %v3612
        %v3971 = vunpack.c.h.b16 %v3612
        %v3972 = vunpack.c.l.b16 %v3613
        %v3973 = vunpack.c.l.b16 %v3614
        %v3974 = vunpack.c.h.b16 %v3614
        %v3975 = vunpack.c.l.b16 %v3615
        %v3976 = vunpack.c.l.b16 %v3616
        %v3977 = vunpack.c.h.b16 %v3616
        %v3978 = vunpack.c.l.b16 %v3617
        %v3979 = vunpack.c.l.b16 %v3618
        %v3980 = vunpack.c.h.b16 %v3618
        %v3981 = vunpack.c.l.b16 %v3619
        %v3982 = vunpack.c.l.b16 %v3620
        %v3983 = vunpack.c.h.b16 %v3620
        %v3984 = vunpack.c.l.b16 %v3621
        %v3985 = vunpack.c.l.b16 %v3622
        %v3986 = vunpack.c.h.b16 %v3622
        %v3987 = vunpack.c.l.b16 %v3623
        %v3988 = vunpack.c.l.b16 %v3624
        %v3989 = vunpack.c.h.b16 %v3624
        %v3990 = vunpack.c.l.b16 %v3625
        %v3991 = vunpack.c.l.b16 %v3626
        %v3992 = vunpack.c.h.b16 %v3626
        %v3993 = vunpack.c.l.b16 %v3627
        %v3994 = vunpack.c.l.b16 %v3628
        %v3995 = vunpack.c.h.b16 %v3628
        %v3996 = vunpack.c.l.b16 %v3629
        %v3997 = vunpack.c.l.b16 %v3630
        %v3998 = vunpack.c.h.b16 %v3630
        %v3999 = vunpack.c.l.b16 %v3631
        %v4000 = vunpack.c.l.b16 %v3632
        %v4001 = vunpack.c.h.b16 %v3632
        %v4002 = vunpack.c.l.b16 %v3633
        %v4003 = vunpack.c.l.b16 %v3634
        %v4004 = vunpack.c.h.b16 %v3634
        %v4005 = vunpack.c.l.b16 %v3635
        %v4006 = vunpack.c.l.b16 %v3636
        %v4007 = vunpack.c.h.b16 %v3636
        %v4008 = vunpack.c.l.b16 %v3637
        %v4009 = vunpack.c.l.b16 %v3638
        %v4010 = vunpack.c.h.b16 %v3638
        %v4011 = vunpack.c.l.b16 %v3639
        %v4012 = vunpack.c.l.b16 %v3640
        %v4013 = vunpack.c.h.b16 %v3640
        %v4014 = vunpack.c.l.b16 %v3641
        %v4015 = vunpack.c.l.b16 %v3642
        %v4016 = vunpack.c.h.b16 %v3642
        %v4017 = vunpack.c.l.b16 %v3643
        %v4018 = vunpack.c.l.b16 %v3644
        %v4019 = vunpack.c.h.b16 %v3644
        %v4020 = vunpack.c.l.b16 %v3645
        %v4021 = vunpack.c.l.b16 %v3646
        %v4022 = vunpack.c.h.b16 %v3646
        %v4023 = vunpack.c.l.b16 %v3647
        %v4024 = vunpack.c.l.b16 %v3648
        %v4025 = vunpack.c.h.b16 %v3648
        %v4026 = vunpack.c.l.b16 %v3649
        %v4027 = vunpack.c.l.b16 %v3650
        %v4028 = vunpack.c.h.b16 %v3650
        %v4029 = vunpack.c.l.b16 %v3651
        %v4030 = vunpack.c.l.b16 %v3652
        %v4031 = vunpack.c.h.b16 %v3652
        %v4032 = vunpack.c.l.b16 %v3653
        %v4033 = vunpack.c.l.b16 %v3654
        %v4034 = vunpack.c.h.b16 %v3654
        %v4035 = vunpack.c.l.b16 %v3655
        %v4036 = vunpack.c.l.b16 %v3656
        %v4037 = vunpack.c.h.b16 %v3656
        %v4038 = vunpack.c.l.b16 %v3657
        %v4039 = vunpack.c.l.b16 %v3658
        %v4040 = vunpack.c.h.b16 %v3658
        %v4041 = vunpack.c.l.b16 %v3659
        %v4042 = vunpack.c.l.b16 %v3660
        %v4043 = vunpack.c.h.b16 %v3660
        %v4044 = vunpack.c.l.b16 %v3661
        %v4045 = vunpack.c.l.b16 %v3662
        %v4046 = vunpack.c.h.b16 %v3662
        %v4047 = vunpack.c.l.b16 %v3663
        %v4048 = vpack.c.b16 %v3907, %v3904
        %v4049 = vpack.c.b16 %v3908, %v3905
        %v4050 = vpack.c.b16 %v3909, %v3906
        %v4051 = vpack.c.b16 %v3913, %v3910
        %v4052 = vpack.c.b16 %v3914, %v3911
        %v4053 = vpack.c.b16 %v3915, %v3912
        %v4054 = vpack.c.b16 %v3919, %v3916
        %v4055 = vpack.c.b16 %v3920, %v3917
        %v4056 = vpack.c.b16 %v3921, %v3918
        %v4057 = vpack.c.b16 %v3925, %v3922
        %v4058 = vpack.c.b16 %v3926, %v3923
        %v4059 = vpack.c.b16 %v3927, %v3924
        %v4060 = vpack.c.b16 %v3931, %v3928
        %v4061 = vpack.c.b16 %v3932, %v3929
        %v4062 = vpack.c.b16 %v3933, %v3930
        %v4063 = vpack.c.b16 %v3937, %v3934
        %v4064 = vpack.c.b16 %v3938, %v3935
        %v4065 = vpack.c.b16 %v3939, %v3936
        %v4066 = vpack.c.b16 %v3943, %v3940
        %v4067 = vpack.c.b16 %v3944, %v3941
        %v4068 = vpack.c.b16 %v3945, %v3942
        %v4069 = vpack.c.b16 %v3949, %v3946
        %v4070 = vpack.c.b16 %v3950, %v3947
        %v4071 = vpack.c.b16 %v3951, %v3948
        %v4072 = vpack.c.b16 %v3955, %v3952
        %v4073 = vpack.c.b16 %v3956, %v3953
        %v4074 = vpack.c.b16 %v3957, %v3954
        %v4075 = vpack.c.b16 %v3961, %v3958
        %v4076 = vpack.c.b16 %v3962, %v3959
        %v4077 = vpack.c.b16 %v3963, %v3960
        %v4078 = vpack.c.b16 %v3967, %v3964
        %v4079 = vpack.c.b16 %v3968, %v3965
        %v4080 = vpack.c.b16 %v3969, %v3966
        %v4081 = vpack.c.b16 %v3973, %v3970
        %v4082 = vpack.c.b16 %v3974, %v3971
        %v4083 = vpack.c.b16 %v3975, %v3972
        %v4084 = vpack.c.b16 %v3979, %v3976
        %v4085 = vpack.c.b16 %v3980, %v3977
        %v4086 = vpack.c.b16 %v3981, %v3978
        %v4087 = vpack.c.b16 %v3985, %v3982
        %v4088 = vpack.c.b16 %v3986, %v3983
        %v4089 = vpack.c.b16 %v3987, %v3984
        %v4090 = vpack.c.b16 %v3991, %v3988
        %v4091 = vpack.c.b16 %v3992, %v3989
        %v4092 = vpack.c.b16 %v3993, %v3990
        %v4093 = vpack.c.b16 %v3997, %v3994
        %v4094 = vpack.c.b16 %v3998, %v3995
        %v4095 = vpack.c.b16 %v3999, %v3996
        %v4096 = vpack.c.b16 %v4003, %v4000
        %v4097 = vpack.c.b16 %v4004, %v4001
        %v4098 = vpack.c.b16 %v4005, %v4002
        %v4099 = vpack.c.b16 %v4009, %v4006
        %v4100 = vpack.c.b16 %v4010, %v4007
        %v4101 = vpack.c.b16 %v4011, %v4008
        %v4102 = vpack.c.b16 %v4015, %v4012
        %v4103 = vpack.c.b16 %v4016, %v4013
        %v4104 = vpack.c.b16 %v4017, %v4014
        %v4105 = vpack.c.b16 %v4021, %v4018
        %v4106 = vpack.c.b16 %v4022, %v4019
        %v4107 = vpack.c.b16 %v4023, %v4020
        %v4108 = vpack.c.b16 %v4027, %v4024
        %v4109 = vpack.c.b16 %v4028, %v4025
        %v4110 = vpack.c.b16 %v4029, %v4026
        %v4111 = vpack.c.b16 %v4033, %v4030
        %v4112 = vpack.c.b16 %v4034, %v4031
        %v4113 = vpack.c.b16 %v4035, %v4032
        %v4114 = vpack.c.b16 %v4039, %v4036
        %v4115 = vpack.c.b16 %v4040, %v4037
        %v4116 = vpack.c.b16 %v4041, %v4038
        %v4117 = vpack.c.b16 %v4045, %v4042
        %v4118 = vpack.c.b16 %v4046, %v4043
        %v4119 = vpack.c.b16 %v4047, %v4044
        %4192 = vmatprep.subr.bf16.mxu0 %v4049
        %4193 = vmatpush1.bf16.msra.mxu0 %v4048
        %4194 = vmatprep.subr.bf16.mxu0 %v4052
        %4195 = vmatpush1.bf16.msra.mxu0 %v4051
        %4196 = vmatprep.subr.bf16.mxu0 %v4055
        %4197 = vmatpush1.bf16.msra.mxu0 %v4054
        %4198 = vmatprep.subr.bf16.mxu0 %v4058
        %4199 = vmatpush1.bf16.msra.mxu0 %v4057
        %4200 = vmatprep.subr.bf16.mxu0 %v4061
        %4201 = vmatpush1.bf16.msra.mxu0 %v4060
        %4202 = vmatprep.subr.bf16.mxu0 %v4064
        %4203 = vmatpush1.bf16.msra.mxu0 %v4063
        %4204 = vmatprep.subr.bf16.mxu0 %v4067
        %4205 = vmatpush1.bf16.msra.mxu0 %v4066
        %4206 = vmatprep.subr.bf16.mxu0 %v4070
        %4207 = vmatpush1.bf16.msra.mxu0 %v4069
        %4208 = vmatprep.subr.bf16.mxu0 %v4073
        %4209 = vmatpush1.bf16.msra.mxu0 %v4072
        %4210 = vmatprep.subr.bf16.mxu0 %v4076
        %4211 = vmatpush1.bf16.msra.mxu0 %v4075
        %4212 = vmatprep.subr.bf16.mxu0 %v4079
        %4213 = vmatpush1.bf16.msra.mxu0 %v4078
        %4214 = vmatprep.subr.bf16.mxu0 %v4082
        %4215 = vmatpush1.bf16.msra.mxu0 %v4081
        %4216 = vmatprep.subr.bf16.mxu0 %v4085
        %4217 = vmatpush1.bf16.msra.mxu0 %v4084
        %4218 = vmatprep.subr.bf16.mxu0 %v4088
        %4219 = vmatpush1.bf16.msra.mxu0 %v4087
        %4220 = vmatprep.subr.bf16.mxu0 %v4091
        %4221 = vmatpush1.bf16.msra.mxu0 %v4090
        %4222 = vmatprep.subr.bf16.mxu0 %v4094
        %4223 = vmatpush1.bf16.msra.mxu0 %v4093
        %4224 = vmatprep.mubr.bf16.mxu0 %v3665
        %4225 = vmatmul.mubr.bf16.gmra.mrb[0].mxu0 %v3664
        %v4226 = vpop.f32.mrb[0].mxu0
        %v4227 = vadd.f32 0.0, %v4226
        %v4228 = vpop.f32.mrb[0].mxu0
        %v4229 = vadd.f32 0.0, %v4228
        %v4230 = vpop.f32.mrb[0].mxu0
        %v4231 = vadd.f32 0.0, %v4230
        %v4232 = vpop.f32.mrb[0].mxu0
        %v4233 = vadd.f32 0.0, %v4232
        %4234 = vmatprep.mubr.bf16.mxu0 %v3668
        %4235 = vmatmul.mubr.bf16.gmra.mrb[0].mxu0 %v3667
        %v4236 = vpop.f32.mrb[0].mxu0
        %v4237 = vadd.f32 0.0, %v4236
        %v4238 = vpop.f32.mrb[0].mxu0
        %v4239 = vadd.f32 0.0, %v4238
        %v4240 = vpop.f32.mrb[0].mxu0
        %v4241 = vadd.f32 0.0, %v4240
        %v4242 = vpop.f32.mrb[0].mxu0
        %v4243 = vadd.f32 0.0, %v4242
        %4244 = vmatprep.mubr.bf16.mxu0 %v3671
        %4245 = vmatmul.mubr.bf16.gmra.mrb[0].mxu0 %v3670
        %v4246 = vpop.f32.mrb[0].mxu0
        %v4247 = vadd.f32 0.0, %v4246
        %v4248 = vpop.f32.mrb[0].mxu0
        %v4249 = vadd.f32 0.0, %v4248
        %v4250 = vpop.f32.mrb[0].mxu0
        %v4251 = vadd.f32 0.0, %v4250
        %v4252 = vpop.f32.mrb[0].mxu0
        %v4253 = vadd.f32 0.0, %v4252
        %4254 = vmatprep.mubr.bf16.mxu0 %v3674
        %4255 = vmatmul.mubr.bf16.gmra.mrb[0].mxu0 %v3673
        %v4256 = vpop.f32.mrb[0].mxu0
        %v4257 = vadd.f32 0.0, %v4256
        %v4258 = vpop.f32.mrb[0].mxu0
        %v4259 = vadd.f32 0.0, %v4258
        %v4260 = vpop.f32.mrb[0].mxu0
        %v4261 = vadd.f32 0.0, %v4260
        %v4262 = vpop.f32.mrb[0].mxu0
        %v4263 = vadd.f32 0.0, %v4262
        %4264 = vmatprep.mubr.bf16.mxu0 %v3677
        %4265 = vmatmul.mubr.bf16.gmra.mrb[0].mxu0 %v3676
        %v4266 = vpop.f32.mrb[0].mxu0
        %v4267 = vadd.f32 0.0, %v4266
        %v4268 = vpop.f32.mrb[0].mxu0
        %v4269 = vadd.f32 0.0, %v4268
        %v4270 = vpop.f32.mrb[0].mxu0
        %v4271 = vadd.f32 0.0, %v4270
        %v4272 = vpop.f32.mrb[0].mxu0
        %v4273 = vadd.f32 0.0, %v4272
        %4274 = vmatprep.mubr.bf16.mxu0 %v3680
        %4275 = vmatmul.mubr.bf16.gmra.mrb[0].mxu0 %v3679
        %v4276 = vpop.f32.mrb[0].mxu0
        %v4277 = vadd.f32 0.0, %v4276
        %v4278 = vpop.f32.mrb[0].mxu0
        %v4279 = vadd.f32 0.0, %v4278
        %v4280 = vpop.f32.mrb[0].mxu0
        %v4281 = vadd.f32 0.0, %v4280
        %v4282 = vpop.f32.mrb[0].mxu0
        %v4283 = vadd.f32 0.0, %v4282
        %4284 = vmatprep.mubr.bf16.mxu0 %v3683
        %4285 = vmatmul.mubr.bf16.gmra.mrb[0].mxu0 %v3682
        %v4286 = vpop.f32.mrb[0].mxu0
        %v4287 = vadd.f32 0.0, %v4286
        %v4288 = vpop.f32.mrb[0].mxu0
        %v4289 = vadd.f32 0.0, %v4288
        %v4290 = vpop.f32.mrb[0].mxu0
        %v4291 = vadd.f32 0.0, %v4290
        %v4292 = vpop.f32.mrb[0].mxu0
        %v4293 = vadd.f32 0.0, %v4292
        %4294 = vmatprep.mubr.bf16.mxu0 %v3686
        %4295 = vmatmul.mubr.bf16.gmra.mrb[0].mxu0 %v3685
        %v4296 = vpop.f32.mrb[0].mxu0
        %v4297 = vadd.f32 0.0, %v4296
        %v4298 = vpop.f32.mrb[0].mxu0
        %v4299 = vadd.f32 0.0, %v4298
        %v4300 = vpop.f32.mrb[0].mxu0
        %v4301 = vadd.f32 0.0, %v4300
        %v4302 = vpop.f32.mrb[0].mxu0
        %v4303 = vadd.f32 0.0, %v4302
        %4304 = vmatprep.mubr.bf16.mxu0 %v3689
        %4305 = vmatmul.mubr.bf16.gmra.mrb[0].mxu0 %v3688
        %v4306 = vpop.f32.mrb[0].mxu0
        %v4307 = vadd.f32 0.0, %v4306
        %v4308 = vpop.f32.mrb[0].mxu0
        %v4309 = vadd.f32 0.0, %v4308
        %v4310 = vpop.f32.mrb[0].mxu0
        %v4311 = vadd.f32 0.0, %v4310
        %v4312 = vpop.f32.mrb[0].mxu0
        %v4313 = vadd.f32 0.0, %v4312
        %4314 = vmatprep.mubr.bf16.mxu0 %v3692
        %4315 = vmatmul.mubr.bf16.gmra.mrb[0].mxu0 %v3691
        %v4316 = vpop.f32.mrb[0].mxu0
        %v4317 = vadd.f32 0.0, %v4316
        %v4318 = vpop.f32.mrb[0].mxu0
        %v4319 = vadd.f32 0.0, %v4318
        %v4320 = vpop.f32.mrb[0].mxu0
        %v4321 = vadd.f32 0.0, %v4320
        %v4322 = vpop.f32.mrb[0].mxu0
        %v4323 = vadd.f32 0.0, %v4322
        %4324 = vmatprep.mubr.bf16.mxu0 %v3695
        %4325 = vmatmul.mubr.bf16.gmra.mrb[0].mxu0 %v3694
        %v4326 = vpop.f32.mrb[0].mxu0
        %v4327 = vadd.f32 0.0, %v4326
        %v4328 = vpop.f32.mrb[0].mxu0
        %v4329 = vadd.f32 0.0, %v4328
        %v4330 = vpop.f32.mrb[0].mxu0
        %v4331 = vadd.f32 0.0, %v4330
        %v4332 = vpop.f32.mrb[0].mxu0
        %v4333 = vadd.f32 0.0, %v4332
        %4334 = vmatprep.mubr.bf16.mxu0 %v3698
        %4335 = vmatmul.mubr.bf16.gmra.mrb[0].mxu0 %v3697
        %v4336 = vpop.f32.mrb[0].mxu0
        %v4337 = vadd.f32 0.0, %v4336
        %v4338 = vpop.f32.mrb[0].mxu0
        %v4339 = vadd.f32 0.0, %v4338
        %v4340 = vpop.f32.mrb[0].mxu0
        %v4341 = vadd.f32 0.0, %v4340
        %v4342 = vpop.f32.mrb[0].mxu0
        %v4343 = vadd.f32 0.0, %v4342
        %4344 = vmatprep.mubr.bf16.mxu0 %v3701
        %4345 = vmatmul.mubr.bf16.gmra.mrb[0].mxu0 %v3700
        %v4346 = vpop.f32.mrb[0].mxu0
        %v4347 = vadd.f32 0.0, %v4346
        %v4348 = vpop.f32.mrb[0].mxu0
        %v4349 = vadd.f32 0.0, %v4348
        %v4350 = vpop.f32.mrb[0].mxu0
        %v4351 = vadd.f32 0.0, %v4350
        %v4352 = vpop.f32.mrb[0].mxu0
        %v4353 = vadd.f32 0.0, %v4352
        %4354 = vmatprep.mubr.bf16.mxu0 %v3704
        %4355 = vmatmul.mubr.bf16.gmra.mrb[0].mxu0 %v3703
        %v4356 = vpop.f32.mrb[0].mxu0
        %v4357 = vadd.f32 0.0, %v4356
        %v4358 = vpop.f32.mrb[0].mxu0
        %v4359 = vadd.f32 0.0, %v4358
        %v4360 = vpop.f32.mrb[0].mxu0
        %v4361 = vadd.f32 0.0, %v4360
        %v4362 = vpop.f32.mrb[0].mxu0
        %v4363 = vadd.f32 0.0, %v4362
        %4364 = vmatprep.mubr.bf16.mxu0 %v3707
        %4365 = vmatmul.mubr.bf16.gmra.mrb[0].mxu0 %v3706
        %v4366 = vpop.f32.mrb[0].mxu0
        %v4367 = vadd.f32 0.0, %v4366
        %v4368 = vpop.f32.mrb[0].mxu0
        %v4369 = vadd.f32 0.0, %v4368
        %v4370 = vpop.f32.mrb[0].mxu0
        %v4371 = vadd.f32 0.0, %v4370
        %v4372 = vpop.f32.mrb[0].mxu0
        %v4373 = vadd.f32 0.0, %v4372
        %4374 = vmatprep.mubr.bf16.mxu0 %v3710
        %4375 = vmatmul.mubr.bf16.gmra.mrb[0].mxu0 %v3709
        %v4376 = vpop.f32.mrb[0].mxu0
        %v4377 = vadd.f32 0.0, %v4376
        %v4378 = vpop.f32.mrb[0].mxu0
        %v4379 = vadd.f32 0.0, %v4378
        %v4380 = vpop.f32.mrb[0].mxu0
        %v4381 = vadd.f32 0.0, %v4380
        %v4382 = vpop.f32.mrb[0].mxu0
        %v4383 = vadd.f32 0.0, %v4382
        %4384 = vmatprep.mubr.bf16.mxu0 %v3713
        %4385 = vmatmul.mubr.bf16.gmra.mrb[0].mxu0 %v3712
        %v4386 = vpop.f32.mrb[0].mxu0
        %v4387 = vadd.f32 0.0, %v4386
        %v4388 = vpop.f32.mrb[0].mxu0
        %v4389 = vadd.f32 0.0, %v4388
        %v4390 = vpop.f32.mrb[0].mxu0
        %v4391 = vadd.f32 0.0, %v4390
        %v4392 = vpop.f32.mrb[0].mxu0
        %v4393 = vadd.f32 0.0, %v4392
        %4394 = vmatprep.mubr.bf16.mxu0 %v3716
        %4395 = vmatmul.mubr.bf16.gmra.mrb[0].mxu0 %v3715
        %v4396 = vpop.f32.mrb[0].mxu0
        %v4397 = vadd.f32 0.0, %v4396
        %v4398 = vpop.f32.mrb[0].mxu0
        %v4399 = vadd.f32 0.0, %v4398
        %v4400 = vpop.f32.mrb[0].mxu0
        %v4401 = vadd.f32 0.0, %v4400
        %v4402 = vpop.f32.mrb[0].mxu0
        %v4403 = vadd.f32 0.0, %v4402
        %4404 = vmatprep.mubr.bf16.mxu0 %v3719
        %4405 = vmatmul.mubr.bf16.gmra.mrb[0].mxu0 %v3718
        %v4406 = vpop.f32.mrb[0].mxu0
        %v4407 = vadd.f32 0.0, %v4406
        %v4408 = vpop.f32.mrb[0].mxu0
        %v4409 = vadd.f32 0.0, %v4408
        %v4410 = vpop.f32.mrb[0].mxu0
        %v4411 = vadd.f32 0.0, %v4410
        %v4412 = vpop.f32.mrb[0].mxu0
        %v4413 = vadd.f32 0.0, %v4412
        %4414 = vmatprep.mubr.bf16.mxu0 %v3722
        %4415 = vmatmul.mubr.bf16.gmra.mrb[0].mxu0 %v3721
        %v4416 = vpop.f32.mrb[0].mxu0
        %v4417 = vadd.f32 0.0, %v4416
        %v4418 = vpop.f32.mrb[0].mxu0
        %v4419 = vadd.f32 0.0, %v4418
        %v4420 = vpop.f32.mrb[0].mxu0
        %v4421 = vadd.f32 0.0, %v4420
        %v4422 = vpop.f32.mrb[0].mxu0
        %v4423 = vadd.f32 0.0, %v4422
        %4424 = vmatprep.mubr.bf16.mxu0 %v3725
        %4425 = vmatmul.mubr.bf16.gmra.mrb[0].mxu0 %v3724
        %v4426 = vpop.f32.mrb[0].mxu0
        %v4427 = vadd.f32 0.0, %v4426
        %v4428 = vpop.f32.mrb[0].mxu0
        %v4429 = vadd.f32 0.0, %v4428
        %v4430 = vpop.f32.mrb[0].mxu0
        %v4431 = vadd.f32 0.0, %v4430
        %v4432 = vpop.f32.mrb[0].mxu0
        %v4433 = vadd.f32 0.0, %v4432
        %4434 = vmatprep.mubr.bf16.mxu0 %v3728
        %4435 = vmatmul.mubr.bf16.gmra.mrb[0].mxu0 %v3727
        %v4436 = vpop.f32.mrb[0].mxu0
        %v4437 = vadd.f32 0.0, %v4436
        %v4438 = vpop.f32.mrb[0].mxu0
        %v4439 = vadd.f32 0.0, %v4438
        %v4440 = vpop.f32.mrb[0].mxu0
        %v4441 = vadd.f32 0.0, %v4440
        %v4442 = vpop.f32.mrb[0].mxu0
        %v4443 = vadd.f32 0.0, %v4442
        %4444 = vmatprep.mubr.bf16.mxu0 %v3731
        %4445 = vmatmul.mubr.bf16.gmra.mrb[0].mxu0 %v3730
        %v4446 = vpop.f32.mrb[0].mxu0
        %v4447 = vadd.f32 0.0, %v4446
        %v4448 = vpop.f32.mrb[0].mxu0
        %v4449 = vadd.f32 0.0, %v4448
        %v4450 = vpop.f32.mrb[0].mxu0
        %v4451 = vadd.f32 0.0, %v4450
        %v4452 = vpop.f32.mrb[0].mxu0
        %v4453 = vadd.f32 0.0, %v4452
        %4454 = vmatprep.mubr.bf16.mxu0 %v3734
        %4455 = vmatmul.mubr.bf16.gmra.mrb[0].mxu0 %v3733
        %v4456 = vpop.f32.mrb[0].mxu0
        %v4457 = vadd.f32 0.0, %v4456
        %v4458 = vpop.f32.mrb[0].mxu0
        %v4459 = vadd.f32 0.0, %v4458
        %v4460 = vpop.f32.mrb[0].mxu0
        %v4461 = vadd.f32 0.0, %v4460
        %v4462 = vpop.f32.mrb[0].mxu0
        %v4463 = vadd.f32 0.0, %v4462
        %4464 = vdwg.mxu0
        %4465 = vmatprep.subr.bf16.mxu0 %v4097
        %4466 = vmatpush1.bf16.msra.mxu0 %v4096
        %4467 = vmatprep.subr.bf16.mxu0 %v4100
        %4468 = vmatpush1.bf16.msra.mxu0 %v4099
        %4469 = vmatprep.subr.bf16.mxu0 %v4103
        %4470 = vmatpush1.bf16.msra.mxu0 %v4102
        %4471 = vmatprep.subr.bf16.mxu0 %v4106
        %4472 = vmatpush1.bf16.msra.mxu0 %v4105
        %4473 = vmatprep.subr.bf16.mxu0 %v4109
        %4474 = vmatpush1.bf16.msra.mxu0 %v4108
        %4475 = vmatprep.subr.bf16.mxu0 %v4112
        %4476 = vmatpush1.bf16.msra.mxu0 %v4111
        %4477 = vmatprep.subr.bf16.mxu0 %v4115
        %4478 = vmatpush1.bf16.msra.mxu0 %v4114
        %4479 = vmatprep.subr.bf16.mxu0 %v4118
        %4480 = vmatpush1.bf16.msra.mxu0 %v4117
        %4481 = vmatprep.subr.bf16.mxu0 0
        %4482 = vmatpush1.bf16.msra.mxu0 0
        %4483 = vmatprep.subr.bf16.mxu0 0
        %4484 = vmatpush1.bf16.msra.mxu0 0
        %4485 = vmatprep.subr.bf16.mxu0 0
        %4486 = vmatpush1.bf16.msra.mxu0 0
        %4487 = vmatprep.subr.bf16.mxu0 0
        %4488 = vmatpush1.bf16.msra.mxu0 0
        %4489 = vmatprep.subr.bf16.mxu0 0
        %4490 = vmatpush1.bf16.msra.mxu0 0
        %4491 = vmatprep.subr.bf16.mxu0 0
        %4492 = vmatpush1.bf16.msra.mxu0 0
        %4493 = vmatprep.subr.bf16.mxu0 0
        %4494 = vmatpush1.bf16.msra.mxu0 0
        %4495 = vmatprep.subr.bf16.mxu0 0
        %4496 = vmatpush1.bf16.msra.mxu0 0
        %4497 = vmatprep.mubr.bf16.mxu0 0
        %4498 = vmatmul.mubr.bf16.gmra.mrb[0].mxu0 %v3666
        %v4499 = vpop.f32.mrb[0].mxu0
        %v4500 = vadd.f32 %v4227, %v4499
        %v4501 = vpop.f32.mrb[0].mxu0
        %v4502 = vadd.f32 %v4229, %v4501
        %v4503 = vpop.f32.mrb[0].mxu0
        %v4504 = vadd.f32 %v4231, %v4503
        %v4505 = vpop.f32.mrb[0].mxu0
        %v4506 = vadd.f32 %v4233, %v4505
        %4507 = vmatprep.mubr.bf16.mxu0 0
        %4508 = vmatmul.mubr.bf16.gmra.mrb[0].mxu0 %v3669
        %v4509 = vpop.f32.mrb[0].mxu0
        %v4510 = vadd.f32 %v4237, %v4509
        %v4511 = vpop.f32.mrb[0].mxu0
        %v4512 = vadd.f32 %v4239, %v4511
        %v4513 = vpop.f32.mrb[0].mxu0
        %v4514 = vadd.f32 %v4241, %v4513
        %v4515 = vpop.f32.mrb[0].mxu0
        %v4516 = vadd.f32 %v4243, %v4515
        %4517 = vmatprep.mubr.bf16.mxu0 0
        %4518 = vmatmul.mubr.bf16.gmra.mrb[0].mxu0 %v3672
        %v4519 = vpop.f32.mrb[0].mxu0
        %v4520 = vadd.f32 %v4247, %v4519
        %v4521 = vpop.f32.mrb[0].mxu0
        %v4522 = vadd.f32 %v4249, %v4521
        %v4523 = vpop.f32.mrb[0].mxu0
        %v4524 = vadd.f32 %v4251, %v4523
        %v4525 = vpop.f32.mrb[0].mxu0
        %v4526 = vadd.f32 %v4253, %v4525
        %4527 = vmatprep.mubr.bf16.mxu0 0
        %4528 = vmatmul.mubr.bf16.gmra.mrb[0].mxu0 %v3675
        %v4529 = vpop.f32.mrb[0].mxu0
        %v4530 = vadd.f32 %v4257, %v4529
        %v4531 = vpop.f32.mrb[0].mxu0
        %v4532 = vadd.f32 %v4259, %v4531
        %v4533 = vpop.f32.mrb[0].mxu0
        %v4534 = vadd.f32 %v4261, %v4533
        %v4535 = vpop.f32.mrb[0].mxu0
        %v4536 = vadd.f32 %v4263, %v4535
        %4537 = vmatprep.mubr.bf16.mxu0 0
        %4538 = vmatmul.mubr.bf16.gmra.mrb[0].mxu0 %v3678
        %v4539 = vpop.f32.mrb[0].mxu0
        %v4540 = vadd.f32 %v4267, %v4539
        %v4541 = vpop.f32.mrb[0].mxu0
        %v4542 = vadd.f32 %v4269, %v4541
        %v4543 = vpop.f32.mrb[0].mxu0
        %v4544 = vadd.f32 %v4271, %v4543
        %v4545 = vpop.f32.mrb[0].mxu0
        %v4546 = vadd.f32 %v4273, %v4545
        %4547 = vmatprep.mubr.bf16.mxu0 0
        %4548 = vmatmul.mubr.bf16.gmra.mrb[0].mxu0 %v3681
        %v4549 = vpop.f32.mrb[0].mxu0
        %v4550 = vadd.f32 %v4277, %v4549
        %v4551 = vpop.f32.mrb[0].mxu0
        %v4552 = vadd.f32 %v4279, %v4551
        %v4553 = vpop.f32.mrb[0].mxu0
        %v4554 = vadd.f32 %v4281, %v4553
        %v4555 = vpop.f32.mrb[0].mxu0
        %v4556 = vadd.f32 %v4283, %v4555
        %4557 = vmatprep.mubr.bf16.mxu0 0
        %4558 = vmatmul.mubr.bf16.gmra.mrb[0].mxu0 %v3684
        %v4559 = vpop.f32.mrb[0].mxu0
        %v4560 = vadd.f32 %v4287, %v4559
        %v4561 = vpop.f32.mrb[0].mxu0
        %v4562 = vadd.f32 %v4289, %v4561
        %v4563 = vpop.f32.mrb[0].mxu0
        %v4564 = vadd.f32 %v4291, %v4563
        %v4565 = vpop.f32.mrb[0].mxu0
        %v4566 = vadd.f32 %v4293, %v4565
        %4567 = vmatprep.mubr.bf16.mxu0 0
        %4568 = vmatmul.mubr.bf16.gmra.mrb[0].mxu0 %v3687
        %v4569 = vpop.f32.mrb[0].mxu0
        %v4570 = vadd.f32 %v4297, %v4569
        %v4571 = vpop.f32.mrb[0].mxu0
        %v4572 = vadd.f32 %v4299, %v4571
        %v4573 = vpop.f32.mrb[0].mxu0
        %v4574 = vadd.f32 %v4301, %v4573
        %v4575 = vpop.f32.mrb[0].mxu0
        %v4576 = vadd.f32 %v4303, %v4575
        %4577 = vmatprep.mubr.bf16.mxu0 0
        %4578 = vmatmul.mubr.bf16.gmra.mrb[0].mxu0 %v3690
        %v4579 = vpop.f32.mrb[0].mxu0
        %v4580 = vadd.f32 %v4307, %v4579
        %v4581 = vpop.f32.mrb[0].mxu0
        %v4582 = vadd.f32 %v4309, %v4581
        %v4583 = vpop.f32.mrb[0].mxu0
        %v4584 = vadd.f32 %v4311, %v4583
        %v4585 = vpop.f32.mrb[0].mxu0
        %v4586 = vadd.f32 %v4313, %v4585
        %4587 = vmatprep.mubr.bf16.mxu0 0
        %4588 = vmatmul.mubr.bf16.gmra.mrb[0].mxu0 %v3693
        %v4589 = vpop.f32.mrb[0].mxu0
        %v4590 = vadd.f32 %v4317, %v4589
        %v4591 = vpop.f32.mrb[0].mxu0
        %v4592 = vadd.f32 %v4319, %v4591
        %v4593 = vpop.f32.mrb[0].mxu0
        %v4594 = vadd.f32 %v4321, %v4593
        %v4595 = vpop.f32.mrb[0].mxu0
        %v4596 = vadd.f32 %v4323, %v4595
        %4597 = vmatprep.mubr.bf16.mxu0 0
        %4598 = vmatmul.mubr.bf16.gmra.mrb[0].mxu0 %v3696
        %v4599 = vpop.f32.mrb[0].mxu0
        %v4600 = vadd.f32 %v4327, %v4599
        %v4601 = vpop.f32.mrb[0].mxu0
        %v4602 = vadd.f32 %v4329, %v4601
        %v4603 = vpop.f32.mrb[0].mxu0
        %v4604 = vadd.f32 %v4331, %v4603
        %v4605 = vpop.f32.mrb[0].mxu0
        %v4606 = vadd.f32 %v4333, %v4605
        %4607 = vmatprep.mubr.bf16.mxu0 0
        %4608 = vmatmul.mubr.bf16.gmra.mrb[0].mxu0 %v3699
        %v4609 = vpop.f32.mrb[0].mxu0
        %v4610 = vadd.f32 %v4337, %v4609
        %v4611 = vpop.f32.mrb[0].mxu0
        %v4612 = vadd.f32 %v4339, %v4611
        %v4613 = vpop.f32.mrb[0].mxu0
        %v4614 = vadd.f32 %v4341, %v4613
        %v4615 = vpop.f32.mrb[0].mxu0
        %v4616 = vadd.f32 %v4343, %v4615
        %4617 = vmatprep.mubr.bf16.mxu0 0
        %4618 = vmatmul.mubr.bf16.gmra.mrb[0].mxu0 %v3702
        %v4619 = vpop.f32.mrb[0].mxu0
        %v4620 = vadd.f32 %v4347, %v4619
        %v4621 = vpop.f32.mrb[0].mxu0
        %v4622 = vadd.f32 %v4349, %v4621
        %v4623 = vpop.f32.mrb[0].mxu0
        %v4624 = vadd.f32 %v4351, %v4623
        %v4625 = vpop.f32.mrb[0].mxu0
        %v4626 = vadd.f32 %v4353, %v4625
        %4627 = vmatprep.mubr.bf16.mxu0 0
        %4628 = vmatmul.mubr.bf16.gmra.mrb[0].mxu0 %v3705
        %v4629 = vpop.f32.mrb[0].mxu0
        %v4630 = vadd.f32 %v4357, %v4629
        %v4631 = vpop.f32.mrb[0].mxu0
        %v4632 = vadd.f32 %v4359, %v4631
        %v4633 = vpop.f32.mrb[0].mxu0
        %v4634 = vadd.f32 %v4361, %v4633
        %v4635 = vpop.f32.mrb[0].mxu0
        %v4636 = vadd.f32 %v4363, %v4635
        %4637 = vmatprep.mubr.bf16.mxu0 0
        %4638 = vmatmul.mubr.bf16.gmra.mrb[0].mxu0 %v3708
        %v4639 = vpop.f32.mrb[0].mxu0
        %v4640 = vadd.f32 %v4367, %v4639
        %v4641 = vpop.f32.mrb[0].mxu0
        %v4642 = vadd.f32 %v4369, %v4641
        %v4643 = vpop.f32.mrb[0].mxu0
        %v4644 = vadd.f32 %v4371, %v4643
        %v4645 = vpop.f32.mrb[0].mxu0
        %v4646 = vadd.f32 %v4373, %v4645
        %4647 = vmatprep.mubr.bf16.mxu0 0
        %4648 = vmatmul.mubr.bf16.gmra.mrb[0].mxu0 %v3711
        %v4649 = vpop.f32.mrb[0].mxu0
        %v4650 = vadd.f32 %v4377, %v4649
        %v4651 = vpop.f32.mrb[0].mxu0
        %v4652 = vadd.f32 %v4379, %v4651
        %v4653 = vpop.f32.mrb[0].mxu0
        %v4654 = vadd.f32 %v4381, %v4653
        %v4655 = vpop.f32.mrb[0].mxu0
        %v4656 = vadd.f32 %v4383, %v4655
        %4657 = vmatprep.mubr.bf16.mxu0 0
        %4658 = vmatmul.mubr.bf16.gmra.mrb[0].mxu0 %v3714
        %v4659 = vpop.f32.mrb[0].mxu0
        %v4660 = vadd.f32 %v4387, %v4659
        %v4661 = vpop.f32.mrb[0].mxu0
        %v4662 = vadd.f32 %v4389, %v4661
        %v4663 = vpop.f32.mrb[0].mxu0
        %v4664 = vadd.f32 %v4391, %v4663
        %v4665 = vpop.f32.mrb[0].mxu0
        %v4666 = vadd.f32 %v4393, %v4665
        %4667 = vmatprep.mubr.bf16.mxu0 0
        %4668 = vmatmul.mubr.bf16.gmra.mrb[0].mxu0 %v3717
        %v4669 = vpop.f32.mrb[0].mxu0
        %v4670 = vadd.f32 %v4397, %v4669
        %v4671 = vpop.f32.mrb[0].mxu0
        %v4672 = vadd.f32 %v4399, %v4671
        %v4673 = vpop.f32.mrb[0].mxu0
        %v4674 = vadd.f32 %v4401, %v4673
        %v4675 = vpop.f32.mrb[0].mxu0
        %v4676 = vadd.f32 %v4403, %v4675
        %4677 = vmatprep.mubr.bf16.mxu0 0
        %4678 = vmatmul.mubr.bf16.gmra.mrb[0].mxu0 %v3720
        %v4679 = vpop.f32.mrb[0].mxu0
        %v4680 = vadd.f32 %v4407, %v4679
        %v4681 = vpop.f32.mrb[0].mxu0
        %v4682 = vadd.f32 %v4409, %v4681
        %v4683 = vpop.f32.mrb[0].mxu0
        %v4684 = vadd.f32 %v4411, %v4683
        %v4685 = vpop.f32.mrb[0].mxu0
        %v4686 = vadd.f32 %v4413, %v4685
        %4687 = vmatprep.mubr.bf16.mxu0 0
        %4688 = vmatmul.mubr.bf16.gmra.mrb[0].mxu0 %v3723
        %v4689 = vpop.f32.mrb[0].mxu0
        %v4690 = vadd.f32 %v4417, %v4689
        %v4691 = vpop.f32.mrb[0].mxu0
        %v4692 = vadd.f32 %v4419, %v4691
        %v4693 = vpop.f32.mrb[0].mxu0
        %v4694 = vadd.f32 %v4421, %v4693
        %v4695 = vpop.f32.mrb[0].mxu0
        %v4696 = vadd.f32 %v4423, %v4695
        %4697 = vmatprep.mubr.bf16.mxu0 0
        %4698 = vmatmul.mubr.bf16.gmra.mrb[0].mxu0 %v3726
        %v4699 = vpop.f32.mrb[0].mxu0
        %v4700 = vadd.f32 %v4427, %v4699
        %v4701 = vpop.f32.mrb[0].mxu0
        %v4702 = vadd.f32 %v4429, %v4701
        %v4703 = vpop.f32.mrb[0].mxu0
        %v4704 = vadd.f32 %v4431, %v4703
        %v4705 = vpop.f32.mrb[0].mxu0
        %v4706 = vadd.f32 %v4433, %v4705
        %4707 = vmatprep.mubr.bf16.mxu0 0
        %4708 = vmatmul.mubr.bf16.gmra.mrb[0].mxu0 %v3729
        %v4709 = vpop.f32.mrb[0].mxu0
        %v4710 = vadd.f32 %v4437, %v4709
        %v4711 = vpop.f32.mrb[0].mxu0
        %v4712 = vadd.f32 %v4439, %v4711
        %v4713 = vpop.f32.mrb[0].mxu0
        %v4714 = vadd.f32 %v4441, %v4713
        %v4715 = vpop.f32.mrb[0].mxu0
        %v4716 = vadd.f32 %v4443, %v4715
        %4717 = vmatprep.mubr.bf16.mxu0 0
        %4718 = vmatmul.mubr.bf16.gmra.mrb[0].mxu0 %v3732
        %v4719 = vpop.f32.mrb[0].mxu0
        %v4720 = vadd.f32 %v4447, %v4719
        %v4721 = vpop.f32.mrb[0].mxu0
        %v4722 = vadd.f32 %v4449, %v4721
        %v4723 = vpop.f32.mrb[0].mxu0
        %v4724 = vadd.f32 %v4451, %v4723
        %v4725 = vpop.f32.mrb[0].mxu0
        %v4726 = vadd.f32 %v4453, %v4725
        %4727 = vmatprep.mubr.bf16.mxu0 0
        %4728 = vmatmul.mubr.bf16.gmra.mrb[0].mxu0 %v3735
        %v4729 = vpop.f32.mrb[0].mxu0
        %v4730 = vadd.f32 %v4457, %v4729
        %v4731 = vpop.f32.mrb[0].mxu0
        %v4732 = vadd.f32 %v4459, %v4731
        %v4733 = vpop.f32.mrb[0].mxu0
        %v4734 = vadd.f32 %v4461, %v4733
        %v4735 = vpop.f32.mrb[0].mxu0
        %v4736 = vadd.f32 %v4463, %v4735
        %4737 = vdwg.mxu0
        %4738 = vmatprep.subr.bf16.mxu0 0
        %4739 = vmatpush1.bf16.msra.mxu0 %v4050
        %4740 = vmatprep.subr.bf16.mxu0 0
        %4741 = vmatpush1.bf16.msra.mxu0 %v4053
        %4742 = vmatprep.subr.bf16.mxu0 0
        %4743 = vmatpush1.bf16.msra.mxu0 %v4056
        %4744 = vmatprep.subr.bf16.mxu0 0
        %4745 = vmatpush1.bf16.msra.mxu0 %v4059
        %4746 = vmatprep.subr.bf16.mxu0 0
        %4747 = vmatpush1.bf16.msra.mxu0 %v4062
        %4748 = vmatprep.subr.bf16.mxu0 0
        %4749 = vmatpush1.bf16.msra.mxu0 %v4065
        %4750 = vmatprep.subr.bf16.mxu0 0
        %4751 = vmatpush1.bf16.msra.mxu0 %v4068
        %4752 = vmatprep.subr.bf16.mxu0 0
        %4753 = vmatpush1.bf16.msra.mxu0 %v4071
        %4754 = vmatprep.subr.bf16.mxu0 0
        %4755 = vmatpush1.bf16.msra.mxu0 %v4074
        %4756 = vmatprep.subr.bf16.mxu0 0
        %4757 = vmatpush1.bf16.msra.mxu0 %v4077
        %4758 = vmatprep.subr.bf16.mxu0 0
        %4759 = vmatpush1.bf16.msra.mxu0 %v4080
        %4760 = vmatprep.subr.bf16.mxu0 0
        %4761 = vmatpush1.bf16.msra.mxu0 %v4083
        %4762 = vmatprep.subr.bf16.mxu0 0
        %4763 = vmatpush1.bf16.msra.mxu0 %v4086
        %4764 = vmatprep.subr.bf16.mxu0 0
        %4765 = vmatpush1.bf16.msra.mxu0 %v4089
        %4766 = vmatprep.subr.bf16.mxu0 0
        %4767 = vmatpush1.bf16.msra.mxu0 %v4092
        %4768 = vmatprep.subr.bf16.mxu0 0
        %4769 = vmatpush1.bf16.msra.mxu0 %v4095
        %4770 = vmatprep.mubr.bf16.mxu0 %v3665
        %4771 = vmatmul.mubr.bf16.gmra.mrb[0].mxu0 %v3664
        %v4772 = vpop.f32.mrb[0].mxu0
        %v4773 = vadd.f32 0.0, %v4772
        %v4774 = vpop.f32.mrb[0].mxu0
        %v4775 = vpop.f32.mrb[0].mxu0
        %v4776 = vadd.f32 0.0, %v4775
        %v4777 = vpop.f32.mrb[0].mxu0
        %4778 = vmatprep.mubr.bf16.mxu0 %v3668
        %4779 = vmatmul.mubr.bf16.gmra.mrb[0].mxu0 %v3667
        %v4780 = vpop.f32.mrb[0].mxu0
        %v4781 = vadd.f32 0.0, %v4780
        %v4782 = vpop.f32.mrb[0].mxu0
        %v4783 = vpop.f32.mrb[0].mxu0
        %v4784 = vadd.f32 0.0, %v4783
        %v4785 = vpop.f32.mrb[0].mxu0
        %4786 = vmatprep.mubr.bf16.mxu0 %v3671
        %4787 = vmatmul.mubr.bf16.gmra.mrb[0].mxu0 %v3670
        %v4788 = vpop.f32.mrb[0].mxu0
        %v4789 = vadd.f32 0.0, %v4788
        %v4790 = vpop.f32.mrb[0].mxu0
        %v4791 = vpop.f32.mrb[0].mxu0
        %v4792 = vadd.f32 0.0, %v4791
        %v4793 = vpop.f32.mrb[0].mxu0
        %4794 = vmatprep.mubr.bf16.mxu0 %v3674
        %4795 = vmatmul.mubr.bf16.gmra.mrb[0].mxu0 %v3673
        %v4796 = vpop.f32.mrb[0].mxu0
        %v4797 = vadd.f32 0.0, %v4796
        %v4798 = vpop.f32.mrb[0].mxu0
        %v4799 = vpop.f32.mrb[0].mxu0
        %v4800 = vadd.f32 0.0, %v4799
        %v4801 = vpop.f32.mrb[0].mxu0
        %4802 = vmatprep.mubr.bf16.mxu0 %v3677
        %4803 = vmatmul.mubr.bf16.gmra.mrb[0].mxu0 %v3676
        %v4804 = vpop.f32.mrb[0].mxu0
        %v4805 = vadd.f32 0.0, %v4804
        %v4806 = vpop.f32.mrb[0].mxu0
        %v4807 = vpop.f32.mrb[0].mxu0
        %v4808 = vadd.f32 0.0, %v4807
        %v4809 = vpop.f32.mrb[0].mxu0
        %4810 = vmatprep.mubr.bf16.mxu0 %v3680
        %4811 = vmatmul.mubr.bf16.gmra.mrb[0].mxu0 %v3679
        %v4812 = vpop.f32.mrb[0].mxu0
        %v4813 = vadd.f32 0.0, %v4812
        %v4814 = vpop.f32.mrb[0].mxu0
        %v4815 = vpop.f32.mrb[0].mxu0
        %v4816 = vadd.f32 0.0, %v4815
        %v4817 = vpop.f32.mrb[0].mxu0
        %4818 = vmatprep.mubr.bf16.mxu0 %v3683
        %4819 = vmatmul.mubr.bf16.gmra.mrb[0].mxu0 %v3682
        %v4820 = vpop.f32.mrb[0].mxu0
        %v4821 = vadd.f32 0.0, %v4820
        %v4822 = vpop.f32.mrb[0].mxu0
        %v4823 = vpop.f32.mrb[0].mxu0
        %v4824 = vadd.f32 0.0, %v4823
        %v4825 = vpop.f32.mrb[0].mxu0
        %4826 = vmatprep.mubr.bf16.mxu0 %v3686
        %4827 = vmatmul.mubr.bf16.gmra.mrb[0].mxu0 %v3685
        %v4828 = vpop.f32.mrb[0].mxu0
        %v4829 = vadd.f32 0.0, %v4828
        %v4830 = vpop.f32.mrb[0].mxu0
        %v4831 = vpop.f32.mrb[0].mxu0
        %v4832 = vadd.f32 0.0, %v4831
        %v4833 = vpop.f32.mrb[0].mxu0
        %4834 = vmatprep.mubr.bf16.mxu0 %v3689
        %4835 = vmatmul.mubr.bf16.gmra.mrb[0].mxu0 %v3688
        %v4836 = vpop.f32.mrb[0].mxu0
        %v4837 = vadd.f32 0.0, %v4836
        %v4838 = vpop.f32.mrb[0].mxu0
        %v4839 = vpop.f32.mrb[0].mxu0
        %v4840 = vadd.f32 0.0, %v4839
        %v4841 = vpop.f32.mrb[0].mxu0
        %4842 = vmatprep.mubr.bf16.mxu0 %v3692
        %4843 = vmatmul.mubr.bf16.gmra.mrb[0].mxu0 %v3691
        %v4844 = vpop.f32.mrb[0].mxu0
        %v4845 = vadd.f32 0.0, %v4844
        %v4846 = vpop.f32.mrb[0].mxu0
        %v4847 = vpop.f32.mrb[0].mxu0
        %v4848 = vadd.f32 0.0, %v4847
        %v4849 = vpop.f32.mrb[0].mxu0
        %4850 = vmatprep.mubr.bf16.mxu0 %v3695
        %4851 = vmatmul.mubr.bf16.gmra.mrb[0].mxu0 %v3694
        %v4852 = vpop.f32.mrb[0].mxu0
        %v4853 = vadd.f32 0.0, %v4852
        %v4854 = vpop.f32.mrb[0].mxu0
        %v4855 = vpop.f32.mrb[0].mxu0
        %v4856 = vadd.f32 0.0, %v4855
        %v4857 = vpop.f32.mrb[0].mxu0
        %4858 = vmatprep.mubr.bf16.mxu0 %v3698
        %4859 = vmatmul.mubr.bf16.gmra.mrb[0].mxu0 %v3697
        %v4860 = vpop.f32.mrb[0].mxu0
        %v4861 = vadd.f32 0.0, %v4860
        %v4862 = vpop.f32.mrb[0].mxu0
        %v4863 = vpop.f32.mrb[0].mxu0
        %v4864 = vadd.f32 0.0, %v4863
        %v4865 = vpop.f32.mrb[0].mxu0
        %4866 = vmatprep.mubr.bf16.mxu0 %v3701
        %4867 = vmatmul.mubr.bf16.gmra.mrb[0].mxu0 %v3700
        %v4868 = vpop.f32.mrb[0].mxu0
        %v4869 = vadd.f32 0.0, %v4868
        %v4870 = vpop.f32.mrb[0].mxu0
        %v4871 = vpop.f32.mrb[0].mxu0
        %v4872 = vadd.f32 0.0, %v4871
        %v4873 = vpop.f32.mrb[0].mxu0
        %4874 = vmatprep.mubr.bf16.mxu0 %v3704
        %4875 = vmatmul.mubr.bf16.gmra.mrb[0].mxu0 %v3703
        %v4876 = vpop.f32.mrb[0].mxu0
        %v4877 = vadd.f32 0.0, %v4876
        %v4878 = vpop.f32.mrb[0].mxu0
        %v4879 = vpop.f32.mrb[0].mxu0
        %v4880 = vadd.f32 0.0, %v4879
        %v4881 = vpop.f32.mrb[0].mxu0
        %4882 = vmatprep.mubr.bf16.mxu0 %v3707
        %4883 = vmatmul.mubr.bf16.gmra.mrb[0].mxu0 %v3706
        %v4884 = vpop.f32.mrb[0].mxu0
        %v4885 = vadd.f32 0.0, %v4884
        %v4886 = vpop.f32.mrb[0].mxu0
        %v4887 = vpop.f32.mrb[0].mxu0
        %v4888 = vadd.f32 0.0, %v4887
        %v4889 = vpop.f32.mrb[0].mxu0
        %4890 = vmatprep.mubr.bf16.mxu0 %v3710
        %4891 = vmatmul.mubr.bf16.gmra.mrb[0].mxu0 %v3709
        %v4892 = vpop.f32.mrb[0].mxu0
        %v4893 = vadd.f32 0.0, %v4892
        %v4894 = vpop.f32.mrb[0].mxu0
        %v4895 = vpop.f32.mrb[0].mxu0
        %v4896 = vadd.f32 0.0, %v4895
        %v4897 = vpop.f32.mrb[0].mxu0
        %4898 = vmatprep.mubr.bf16.mxu0 %v3713
        %4899 = vmatmul.mubr.bf16.gmra.mrb[0].mxu0 %v3712
        %v4900 = vpop.f32.mrb[0].mxu0
        %v4901 = vadd.f32 0.0, %v4900
        %v4902 = vpop.f32.mrb[0].mxu0
        %v4903 = vpop.f32.mrb[0].mxu0
        %v4904 = vadd.f32 0.0, %v4903
        %v4905 = vpop.f32.mrb[0].mxu0
        %4906 = vmatprep.mubr.bf16.mxu0 %v3716
        %4907 = vmatmul.mubr.bf16.gmra.mrb[0].mxu0 %v3715
        %v4908 = vpop.f32.mrb[0].mxu0
        %v4909 = vadd.f32 0.0, %v4908
        %v4910 = vpop.f32.mrb[0].mxu0
        %v4911 = vpop.f32.mrb[0].mxu0
        %v4912 = vadd.f32 0.0, %v4911
        %v4913 = vpop.f32.mrb[0].mxu0
        %4914 = vmatprep.mubr.bf16.mxu0 %v3719
        %4915 = vmatmul.mubr.bf16.gmra.mrb[0].mxu0 %v3718
        %v4916 = vpop.f32.mrb[0].mxu0
        %v4917 = vadd.f32 0.0, %v4916
        %v4918 = vpop.f32.mrb[0].mxu0
        %v4919 = vpop.f32.mrb[0].mxu0
        %v4920 = vadd.f32 0.0, %v4919
        %v4921 = vpop.f32.mrb[0].mxu0
        %4922 = vmatprep.mubr.bf16.mxu0 %v3722
        %4923 = vmatmul.mubr.bf16.gmra.mrb[0].mxu0 %v3721
        %v4924 = vpop.f32.mrb[0].mxu0
        %v4925 = vadd.f32 0.0, %v4924
        %v4926 = vpop.f32.mrb[0].mxu0
        %v4927 = vpop.f32.mrb[0].mxu0
        %v4928 = vadd.f32 0.0, %v4927
        %v4929 = vpop.f32.mrb[0].mxu0
        %4930 = vmatprep.mubr.bf16.mxu0 %v3725
        %4931 = vmatmul.mubr.bf16.gmra.mrb[0].mxu0 %v3724
        %v4932 = vpop.f32.mrb[0].mxu0
        %v4933 = vadd.f32 0.0, %v4932
        %v4934 = vpop.f32.mrb[0].mxu0
        %v4935 = vpop.f32.mrb[0].mxu0
        %v4936 = vadd.f32 0.0, %v4935
        %v4937 = vpop.f32.mrb[0].mxu0
        %4938 = vmatprep.mubr.bf16.mxu0 %v3728
        %4939 = vmatmul.mubr.bf16.gmra.mrb[0].mxu0 %v3727
        %v4940 = vpop.f32.mrb[0].mxu0
        %v4941 = vadd.f32 0.0, %v4940
        %v4942 = vpop.f32.mrb[0].mxu0
        %v4943 = vpop.f32.mrb[0].mxu0
        %v4944 = vadd.f32 0.0, %v4943
        %v4945 = vpop.f32.mrb[0].mxu0
        %4946 = vmatprep.mubr.bf16.mxu0 %v3731
        %4947 = vmatmul.mubr.bf16.gmra.mrb[0].mxu0 %v3730
        %v4948 = vpop.f32.mrb[0].mxu0
        %v4949 = vadd.f32 0.0, %v4948
        %v4950 = vpop.f32.mrb[0].mxu0
        %v4951 = vpop.f32.mrb[0].mxu0
        %v4952 = vadd.f32 0.0, %v4951
        %v4953 = vpop.f32.mrb[0].mxu0
        %4954 = vmatprep.mubr.bf16.mxu0 %v3734
        %4955 = vmatmul.mubr.bf16.gmra.mrb[0].mxu0 %v3733
        %v4956 = vpop.f32.mrb[0].mxu0
        %v4957 = vadd.f32 0.0, %v4956
        %v4958 = vpop.f32.mrb[0].mxu0
        %v4959 = vpop.f32.mrb[0].mxu0
        %v4960 = vadd.f32 0.0, %v4959
        %v4961 = vpop.f32.mrb[0].mxu0
        %4962 = vdwg.mxu0
        %4963 = vmatprep.subr.bf16.mxu0 0
        %4964 = vmatpush1.bf16.msra.mxu0 %v4098
        %4965 = vmatprep.subr.bf16.mxu0 0
        %4966 = vmatpush1.bf16.msra.mxu0 %v4101
        %4967 = vmatprep.subr.bf16.mxu0 0
        %4968 = vmatpush1.bf16.msra.mxu0 %v4104
        %4969 = vmatprep.subr.bf16.mxu0 0
        %4970 = vmatpush1.bf16.msra.mxu0 %v4107
        %4971 = vmatprep.subr.bf16.mxu0 0
        %4972 = vmatpush1.bf16.msra.mxu0 %v4110
        %4973 = vmatprep.subr.bf16.mxu0 0
        %4974 = vmatpush1.bf16.msra.mxu0 %v4113
        %4975 = vmatprep.subr.bf16.mxu0 0
        %4976 = vmatpush1.bf16.msra.mxu0 %v4116
        %4977 = vmatprep.subr.bf16.mxu0 0
        %4978 = vmatpush1.bf16.msra.mxu0 %v4119
        %4979 = vmatprep.subr.bf16.mxu0 0
        %4980 = vmatpush1.bf16.msra.mxu0 0
        %4981 = vmatprep.subr.bf16.mxu0 0
        %4982 = vmatpush1.bf16.msra.mxu0 0
        %4983 = vmatprep.subr.bf16.mxu0 0
        %4984 = vmatpush1.bf16.msra.mxu0 0
        %4985 = vmatprep.subr.bf16.mxu0 0
        %4986 = vmatpush1.bf16.msra.mxu0 0
        %4987 = vmatprep.subr.bf16.mxu0 0
        %4988 = vmatpush1.bf16.msra.mxu0 0
        %4989 = vmatprep.subr.bf16.mxu0 0
        %4990 = vmatpush1.bf16.msra.mxu0 0
        %4991 = vmatprep.subr.bf16.mxu0 0
        %4992 = vmatpush1.bf16.msra.mxu0 0
        %4993 = vmatprep.subr.bf16.mxu0 0
        %4994 = vmatpush1.bf16.msra.mxu0 0
        %4995 = vmatprep.mubr.bf16.mxu0 0
        %4996 = vmatmul.mubr.bf16.gmra.mrb[0].mxu0 %v3666
        %v4997 = vpop.f32.mrb[0].mxu0
        %v4998 = vadd.f32 %v4773, %v4997
        %v4999 = vpop.f32.mrb[0].mxu0
        %v5000 = vpop.f32.mrb[0].mxu0
        %v5001 = vadd.f32 %v4776, %v5000
        %v5002 = vpop.f32.mrb[0].mxu0
        %5003 = vmatprep.mubr.bf16.mxu0 0
        %5004 = vmatmul.mubr.bf16.gmra.mrb[0].mxu0 %v3669
        %v5005 = vpop.f32.mrb[0].mxu0
        %v5006 = vadd.f32 %v4781, %v5005
        %v5007 = vpop.f32.mrb[0].mxu0
        %v5008 = vpop.f32.mrb[0].mxu0
        %v5009 = vadd.f32 %v4784, %v5008
        %v5010 = vpop.f32.mrb[0].mxu0
        %5011 = vmatprep.mubr.bf16.mxu0 0
        %5012 = vmatmul.mubr.bf16.gmra.mrb[0].mxu0 %v3672
        %v5013 = vpop.f32.mrb[0].mxu0
        %v5014 = vadd.f32 %v4789, %v5013
        %v5015 = vpop.f32.mrb[0].mxu0
        %v5016 = vpop.f32.mrb[0].mxu0
        %v5017 = vadd.f32 %v4792, %v5016
        %v5018 = vpop.f32.mrb[0].mxu0
        %5019 = vmatprep.mubr.bf16.mxu0 0
        %5020 = vmatmul.mubr.bf16.gmra.mrb[0].mxu0 %v3675
        %v5021 = vpop.f32.mrb[0].mxu0
        %v5022 = vadd.f32 %v4797, %v5021
        %v5023 = vpop.f32.mrb[0].mxu0
        %v5024 = vpop.f32.mrb[0].mxu0
        %v5025 = vadd.f32 %v4800, %v5024
        %v5026 = vpop.f32.mrb[0].mxu0
        %5027 = vmatprep.mubr.bf16.mxu0 0
        %5028 = vmatmul.mubr.bf16.gmra.mrb[0].mxu0 %v3678
        %v5029 = vpop.f32.mrb[0].mxu0
        %v5030 = vadd.f32 %v4805, %v5029
        %v5031 = vpop.f32.mrb[0].mxu0
        %v5032 = vpop.f32.mrb[0].mxu0
        %v5033 = vadd.f32 %v4808, %v5032
        %v5034 = vpop.f32.mrb[0].mxu0
        %5035 = vmatprep.mubr.bf16.mxu0 0
        %5036 = vmatmul.mubr.bf16.gmra.mrb[0].mxu0 %v3681
        %v5037 = vpop.f32.mrb[0].mxu0
        %v5038 = vadd.f32 %v4813, %v5037
        %v5039 = vpop.f32.mrb[0].mxu0
        %v5040 = vpop.f32.mrb[0].mxu0
        %v5041 = vadd.f32 %v4816, %v5040
        %v5042 = vpop.f32.mrb[0].mxu0
        %5043 = vmatprep.mubr.bf16.mxu0 0
        %5044 = vmatmul.mubr.bf16.gmra.mrb[0].mxu0 %v3684
        %v5045 = vpop.f32.mrb[0].mxu0
        %v5046 = vadd.f32 %v4821, %v5045
        %v5047 = vpop.f32.mrb[0].mxu0
        %v5048 = vpop.f32.mrb[0].mxu0
        %v5049 = vadd.f32 %v4824, %v5048
        %v5050 = vpop.f32.mrb[0].mxu0
        %5051 = vmatprep.mubr.bf16.mxu0 0
        %5052 = vmatmul.mubr.bf16.gmra.mrb[0].mxu0 %v3687
        %v5053 = vpop.f32.mrb[0].mxu0
        %v5054 = vadd.f32 %v4829, %v5053
        %v5055 = vpop.f32.mrb[0].mxu0
        %v5056 = vpop.f32.mrb[0].mxu0
        %v5057 = vadd.f32 %v4832, %v5056
        %v5058 = vpop.f32.mrb[0].mxu0
        %5059 = vmatprep.mubr.bf16.mxu0 0
        %5060 = vmatmul.mubr.bf16.gmra.mrb[0].mxu0 %v3690
        %v5061 = vpop.f32.mrb[0].mxu0
        %v5062 = vadd.f32 %v4837, %v5061
        %v5063 = vpop.f32.mrb[0].mxu0
        %v5064 = vpop.f32.mrb[0].mxu0
        %v5065 = vadd.f32 %v4840, %v5064
        %v5066 = vpop.f32.mrb[0].mxu0
        %5067 = vmatprep.mubr.bf16.mxu0 0
        %5068 = vmatmul.mubr.bf16.gmra.mrb[0].mxu0 %v3693
        %v5069 = vpop.f32.mrb[0].mxu0
        %v5070 = vadd.f32 %v4845, %v5069
        %v5071 = vpop.f32.mrb[0].mxu0
        %v5072 = vpop.f32.mrb[0].mxu0
        %v5073 = vadd.f32 %v4848, %v5072
        %v5074 = vpop.f32.mrb[0].mxu0
        %5075 = vmatprep.mubr.bf16.mxu0 0
        %5076 = vmatmul.mubr.bf16.gmra.mrb[0].mxu0 %v3696
        %v5077 = vpop.f32.mrb[0].mxu0
        %v5078 = vadd.f32 %v4853, %v5077
        %v5079 = vpop.f32.mrb[0].mxu0
        %v5080 = vpop.f32.mrb[0].mxu0
        %v5081 = vadd.f32 %v4856, %v5080
        %v5082 = vpop.f32.mrb[0].mxu0
        %5083 = vmatprep.mubr.bf16.mxu0 0
        %5084 = vmatmul.mubr.bf16.gmra.mrb[0].mxu0 %v3699
        %v5085 = vpop.f32.mrb[0].mxu0
        %v5086 = vadd.f32 %v4861, %v5085
        %v5087 = vpop.f32.mrb[0].mxu0
        %v5088 = vpop.f32.mrb[0].mxu0
        %v5089 = vadd.f32 %v4864, %v5088
        %v5090 = vpop.f32.mrb[0].mxu0
        %5091 = vmatprep.mubr.bf16.mxu0 0
        %5092 = vmatmul.mubr.bf16.gmra.mrb[0].mxu0 %v3702
        %v5093 = vpop.f32.mrb[0].mxu0
        %v5094 = vadd.f32 %v4869, %v5093
        %v5095 = vpop.f32.mrb[0].mxu0
        %v5096 = vpop.f32.mrb[0].mxu0
        %v5097 = vadd.f32 %v4872, %v5096
        %v5098 = vpop.f32.mrb[0].mxu0
        %5099 = vmatprep.mubr.bf16.mxu0 0
        %5100 = vmatmul.mubr.bf16.gmra.mrb[0].mxu0 %v3705
        %v5101 = vpop.f32.mrb[0].mxu0
        %v5102 = vadd.f32 %v4877, %v5101
        %v5103 = vpop.f32.mrb[0].mxu0
        %v5104 = vpop.f32.mrb[0].mxu0
        %v5105 = vadd.f32 %v4880, %v5104
        %v5106 = vpop.f32.mrb[0].mxu0
        %5107 = vmatprep.mubr.bf16.mxu0 0
        %5108 = vmatmul.mubr.bf16.gmra.mrb[0].mxu0 %v3708
        %v5109 = vpop.f32.mrb[0].mxu0
        %v5110 = vadd.f32 %v4885, %v5109
        %v5111 = vpop.f32.mrb[0].mxu0
        %v5112 = vpop.f32.mrb[0].mxu0
        %v5113 = vadd.f32 %v4888, %v5112
        %v5114 = vpop.f32.mrb[0].mxu0
        %5115 = vmatprep.mubr.bf16.mxu0 0
        %5116 = vmatmul.mubr.bf16.gmra.mrb[0].mxu0 %v3711
        %v5117 = vpop.f32.mrb[0].mxu0
        %v5118 = vadd.f32 %v4893, %v5117
        %v5119 = vpop.f32.mrb[0].mxu0
        %v5120 = vpop.f32.mrb[0].mxu0
        %v5121 = vadd.f32 %v4896, %v5120
        %v5122 = vpop.f32.mrb[0].mxu0
        %5123 = vmatprep.mubr.bf16.mxu0 0
        %5124 = vmatmul.mubr.bf16.gmra.mrb[0].mxu0 %v3714
        %v5125 = vpop.f32.mrb[0].mxu0
        %v5126 = vadd.f32 %v4901, %v5125
        %v5127 = vpop.f32.mrb[0].mxu0
        %v5128 = vpop.f32.mrb[0].mxu0
        %v5129 = vadd.f32 %v4904, %v5128
        %v5130 = vpop.f32.mrb[0].mxu0
        %5131 = vmatprep.mubr.bf16.mxu0 0
        %5132 = vmatmul.mubr.bf16.gmra.mrb[0].mxu0 %v3717
        %v5133 = vpop.f32.mrb[0].mxu0
        %v5134 = vadd.f32 %v4909, %v5133
        %v5135 = vpop.f32.mrb[0].mxu0
        %v5136 = vpop.f32.mrb[0].mxu0
        %v5137 = vadd.f32 %v4912, %v5136
        %v5138 = vpop.f32.mrb[0].mxu0
        %5139 = vmatprep.mubr.bf16.mxu0 0
        %5140 = vmatmul.mubr.bf16.gmra.mrb[0].mxu0 %v3720
        %v5141 = vpop.f32.mrb[0].mxu0
        %v5142 = vadd.f32 %v4917, %v5141
        %v5143 = vpop.f32.mrb[0].mxu0
        %v5144 = vpop.f32.mrb[0].mxu0
        %v5145 = vadd.f32 %v4920, %v5144
        %v5146 = vpop.f32.mrb[0].mxu0
        %5147 = vmatprep.mubr.bf16.mxu0 0
        %5148 = vmatmul.mubr.bf16.gmra.mrb[0].mxu0 %v3723
        %v5149 = vpop.f32.mrb[0].mxu0
        %v5150 = vadd.f32 %v4925, %v5149
        %v5151 = vpop.f32.mrb[0].mxu0
        %v5152 = vpop.f32.mrb[0].mxu0
        %v5153 = vadd.f32 %v4928, %v5152
        %v5154 = vpop.f32.mrb[0].mxu0
        %5155 = vmatprep.mubr.bf16.mxu0 0
        %5156 = vmatmul.mubr.bf16.gmra.mrb[0].mxu0 %v3726
        %v5157 = vpop.f32.mrb[0].mxu0
        %v5158 = vadd.f32 %v4933, %v5157
        %v5159 = vpop.f32.mrb[0].mxu0
        %v5160 = vpop.f32.mrb[0].mxu0
        %v5161 = vadd.f32 %v4936, %v5160
        %v5162 = vpop.f32.mrb[0].mxu0
        %5163 = vmatprep.mubr.bf16.mxu0 0
        %5164 = vmatmul.mubr.bf16.gmra.mrb[0].mxu0 %v3729
        %v5165 = vpop.f32.mrb[0].mxu0
        %v5166 = vadd.f32 %v4941, %v5165
        %v5167 = vpop.f32.mrb[0].mxu0
        %v5168 = vpop.f32.mrb[0].mxu0
        %v5169 = vadd.f32 %v4944, %v5168
        %v5170 = vpop.f32.mrb[0].mxu0
        %5171 = vmatprep.mubr.bf16.mxu0 0
        %5172 = vmatmul.mubr.bf16.gmra.mrb[0].mxu0 %v3732
        %v5173 = vpop.f32.mrb[0].mxu0
        %v5174 = vadd.f32 %v4949, %v5173
        %v5175 = vpop.f32.mrb[0].mxu0
        %v5176 = vpop.f32.mrb[0].mxu0
        %v5177 = vadd.f32 %v4952, %v5176
        %v5178 = vpop.f32.mrb[0].mxu0
        %5179 = vmatprep.mubr.bf16.mxu0 0
        %5180 = vmatmul.mubr.bf16.gmra.mrb[0].mxu0 %v3735
        %v5181 = vpop.f32.mrb[0].mxu0
        %v5182 = vadd.f32 %v4957, %v5181
        %v5183 = vpop.f32.mrb[0].mxu0
        %v5184 = vpop.f32.mrb[0].mxu0
        %v5185 = vadd.f32 %v4960, %v5184
        %v5186 = vpop.f32.mrb[0].mxu0
        %5187 = vdwg.mxu0
        %v5188 = vrot.slane %v4500, 7
        %v5189 = vrot.slane %v4504, 7
        %v5190 = vrot.slane %v4510, 7
        %v5191 = vrot.slane %v4514, 7
        %v5192 = vrot.slane %v4520, 7
        %v5193 = vrot.slane %v4524, 7
        %v5194 = vrot.slane %v4530, 7
        %v5195 = vrot.slane %v4534, 7
        %v5196 = vrot.slane %v4540, 7
        %v5197 = vrot.slane %v4544, 7
        %v5198 = vrot.slane %v4550, 7
        %v5199 = vrot.slane %v4554, 7
        %v5200 = vrot.slane %v4560, 7
        %v5201 = vrot.slane %v4564, 7
        %v5202 = vrot.slane %v4570, 7
        %v5203 = vrot.slane %v4574, 7
        %v5204 = vrot.slane %v4580, 7
        %v5205 = vrot.slane %v4584, 7
        %v5206 = vrot.slane %v4590, 7
        %v5207 = vrot.slane %v4594, 7
        %v5208 = vrot.slane %v4600, 7
        %v5209 = vrot.slane %v4604, 7
        %v5210 = vrot.slane %v4610, 7
        %v5211 = vrot.slane %v4614, 7
        %v5212 = vrot.slane %v4620, 7
        %v5213 = vrot.slane %v4624, 7
        %v5214 = vrot.slane %v4630, 7
        %v5215 = vrot.slane %v4634, 7
        %v5216 = vrot.slane %v4640, 7
        %v5217 = vrot.slane %v4644, 7
        %v5218 = vrot.slane %v4650, 7
        %v5219 = vrot.slane %v4654, 7
        %v5220 = vrot.slane %v4660, 7
        %v5221 = vrot.slane %v4664, 7
        %v5222 = vrot.slane %v4670, 7
        %v5223 = vrot.slane %v4674, 7
        %v5224 = vrot.slane %v4680, 7
        %v5225 = vrot.slane %v4684, 7
        %v5226 = vrot.slane %v4690, 7
        %v5227 = vrot.slane %v4694, 7
        %v5228 = vrot.slane %v4700, 7
        %v5229 = vrot.slane %v4704, 7
        %v5230 = vrot.slane %v4710, 7
        %v5231 = vrot.slane %v4714, 7
        %v5232 = vrot.slane %v4720, 7
        %v5233 = vrot.slane %v4724, 7
        %v5234 = vrot.slane %v4730, 7
        %v5235 = vrot.slane %v4734, 7
        %v5236 = vsel %vm2377, %v5234, %v5235
        %v5237 = vsel %vm2377, %v5233, %v5234
        %v5238 = vsel %vm2377, %v5232, %v5233
        %v5239 = vsel %vm2377, %v5231, %v5232
        %v5240 = vsel %vm2377, %v5230, %v5231
        %v5241 = vsel %vm2377, %v5229, %v5230
        %v5242 = vsel %vm2377, %v5228, %v5229
        %v5243 = vsel %vm2377, %v5227, %v5228
        %v5244 = vsel %vm2377, %v5226, %v5227
        %v5245 = vsel %vm2377, %v5225, %v5226
        %v5246 = vsel %vm2377, %v5224, %v5225
        %v5247 = vsel %vm2377, %v5223, %v5224
        %v5248 = vsel %vm2377, %v5222, %v5223
        %v5249 = vsel %vm2377, %v5221, %v5222
        %v5250 = vsel %vm2377, %v5220, %v5221
        %v5251 = vsel %vm2377, %v5219, %v5220
        %v5252 = vsel %vm2377, %v5218, %v5219
        %v5253 = vsel %vm2377, %v5217, %v5218
        %v5254 = vsel %vm2377, %v5216, %v5217
        %v5255 = vsel %vm2377, %v5215, %v5216
        %v5256 = vsel %vm2377, %v5214, %v5215
        %v5257 = vsel %vm2377, %v5213, %v5214
        %v5258 = vsel %vm2377, %v5212, %v5213
        %v5259 = vsel %vm2377, %v5211, %v5212
        %v5260 = vsel %vm2377, %v5210, %v5211
        %v5261 = vsel %vm2377, %v5209, %v5210
        %v5262 = vsel %vm2377, %v5208, %v5209
        %v5263 = vsel %vm2377, %v5207, %v5208
        %v5264 = vsel %vm2377, %v5206, %v5207
        %v5265 = vsel %vm2377, %v5205, %v5206
        %v5266 = vsel %vm2377, %v5204, %v5205
        %v5267 = vsel %vm2377, %v5203, %v5204
        %v5268 = vsel %vm2377, %v5202, %v5203
        %v5269 = vsel %vm2377, %v5201, %v5202
        %v5270 = vsel %vm2377, %v5200, %v5201
        %v5271 = vsel %vm2377, %v5199, %v5200
        %v5272 = vsel %vm2377, %v5198, %v5199
        %v5273 = vsel %vm2377, %v5197, %v5198
        %v5274 = vsel %vm2377, %v5196, %v5197
        %v5275 = vsel %vm2377, %v5195, %v5196
        %v5276 = vsel %vm2377, %v5194, %v5195
        %v5277 = vsel %vm2377, %v5193, %v5194
        %v5278 = vsel %vm2377, %v5192, %v5193
        %v5279 = vsel %vm2377, %v5191, %v5192
        %v5280 = vsel %vm2377, %v5190, %v5191
        %v5281 = vsel %vm2377, %v5189, %v5190
        %v5282 = vsel %vm2377, %v5188, %v5189
        %v5283 = vsel %vm2377, %v5235, %v5188
        %v5284 = vadd.f32 %v5283, %v4502
        %v5285 = vadd.f32 %v5282, %v4506
        %v5286 = vadd.f32 %v5281, %v4512
        %v5287 = vadd.f32 %v5280, %v4516
        %v5288 = vadd.f32 %v5279, %v4522
        %v5289 = vadd.f32 %v5278, %v4526
        %v5290 = vadd.f32 %v5277, %v4532
        %v5291 = vadd.f32 %v5276, %v4536
        %v5292 = vadd.f32 %v5275, %v4542
        %v5293 = vadd.f32 %v5274, %v4546
        %v5294 = vadd.f32 %v5273, %v4552
        %v5295 = vadd.f32 %v5272, %v4556
        %v5296 = vadd.f32 %v5271, %v4562
        %v5297 = vadd.f32 %v5270, %v4566
        %v5298 = vadd.f32 %v5269, %v4572
        %v5299 = vadd.f32 %v5268, %v4576
        %v5300 = vadd.f32 %v5267, %v4582
        %v5301 = vadd.f32 %v5266, %v4586
        %v5302 = vadd.f32 %v5265, %v4592
        %v5303 = vadd.f32 %v5264, %v4596
        %v5304 = vadd.f32 %v5263, %v4602
        %v5305 = vadd.f32 %v5262, %v4606
        %v5306 = vadd.f32 %v5261, %v4612
        %v5307 = vadd.f32 %v5260, %v4616
        %v5308 = vadd.f32 %v5259, %v4622
        %v5309 = vadd.f32 %v5258, %v4626
        %v5310 = vadd.f32 %v5257, %v4632
        %v5311 = vadd.f32 %v5256, %v4636
        %v5312 = vadd.f32 %v5255, %v4642
        %v5313 = vadd.f32 %v5254, %v4646
        %v5314 = vadd.f32 %v5253, %v4652
        %v5315 = vadd.f32 %v5252, %v4656
        %v5316 = vadd.f32 %v5251, %v4662
        %v5317 = vadd.f32 %v5250, %v4666
        %v5318 = vadd.f32 %v5249, %v4672
        %v5319 = vadd.f32 %v5248, %v4676
        %v5320 = vadd.f32 %v5247, %v4682
        %v5321 = vadd.f32 %v5246, %v4686
        %v5322 = vadd.f32 %v5245, %v4692
        %v5323 = vadd.f32 %v5244, %v4696
        %v5324 = vadd.f32 %v5243, %v4702
        %v5325 = vadd.f32 %v5242, %v4706
        %v5326 = vadd.f32 %v5241, %v4712
        %v5327 = vadd.f32 %v5240, %v4716
        %v5328 = vadd.f32 %v5239, %v4722
        %v5329 = vadd.f32 %v5238, %v4726
        %v5330 = vadd.f32 %v5237, %v4732
        %v5331 = vadd.f32 %v5236, %v4736
        %v5332 = vrot.slane %v4998, 1
        %v5333 = vrot.slane %v5001, 1
        %v5334 = vrot.slane %v5006, 1
        %v5335 = vrot.slane %v5009, 1
        %v5336 = vrot.slane %v5014, 1
        %v5337 = vrot.slane %v5017, 1
        %v5338 = vrot.slane %v5022, 1
        %v5339 = vrot.slane %v5025, 1
        %v5340 = vrot.slane %v5030, 1
        %v5341 = vrot.slane %v5033, 1
        %v5342 = vrot.slane %v5038, 1
        %v5343 = vrot.slane %v5041, 1
        %v5344 = vrot.slane %v5046, 1
        %v5345 = vrot.slane %v5049, 1
        %v5346 = vrot.slane %v5054, 1
        %v5347 = vrot.slane %v5057, 1
        %v5348 = vrot.slane %v5062, 1
        %v5349 = vrot.slane %v5065, 1
        %v5350 = vrot.slane %v5070, 1
        %v5351 = vrot.slane %v5073, 1
        %v5352 = vrot.slane %v5078, 1
        %v5353 = vrot.slane %v5081, 1
        %v5354 = vrot.slane %v5086, 1
        %v5355 = vrot.slane %v5089, 1
        %v5356 = vrot.slane %v5094, 1
        %v5357 = vrot.slane %v5097, 1
        %v5358 = vrot.slane %v5102, 1
        %v5359 = vrot.slane %v5105, 1
        %v5360 = vrot.slane %v5110, 1
        %v5361 = vrot.slane %v5113, 1
        %v5362 = vrot.slane %v5118, 1
        %v5363 = vrot.slane %v5121, 1
        %v5364 = vrot.slane %v5126, 1
        %v5365 = vrot.slane %v5129, 1
        %v5366 = vrot.slane %v5134, 1
        %v5367 = vrot.slane %v5137, 1
        %v5368 = vrot.slane %v5142, 1
        %v5369 = vrot.slane %v5145, 1
        %v5370 = vrot.slane %v5150, 1
        %v5371 = vrot.slane %v5153, 1
        %v5372 = vrot.slane %v5158, 1
        %v5373 = vrot.slane %v5161, 1
        %v5374 = vrot.slane %v5166, 1
        %v5375 = vrot.slane %v5169, 1
        %v5376 = vrot.slane %v5174, 1
        %v5377 = vrot.slane %v5177, 1
        %v5378 = vrot.slane %v5182, 1
        %v5379 = vrot.slane %v5185, 1
        %v5380 = vsel %vm2522, %v5378, %v5379
        %v5381 = vsel %vm2522, %v5377, %v5378
        %v5382 = vsel %vm2522, %v5376, %v5377
        %v5383 = vsel %vm2522, %v5375, %v5376
        %v5384 = vsel %vm2522, %v5374, %v5375
        %v5385 = vsel %vm2522, %v5373, %v5374
        %v5386 = vsel %vm2522, %v5372, %v5373
        %v5387 = vsel %vm2522, %v5371, %v5372
        %v5388 = vsel %vm2522, %v5370, %v5371
        %v5389 = vsel %vm2522, %v5369, %v5370
        %v5390 = vsel %vm2522, %v5368, %v5369
        %v5391 = vsel %vm2522, %v5367, %v5368
        %v5392 = vsel %vm2522, %v5366, %v5367
        %v5393 = vsel %vm2522, %v5365, %v5366
        %v5394 = vsel %vm2522, %v5364, %v5365
        %v5395 = vsel %vm2522, %v5363, %v5364
        %v5396 = vsel %vm2522, %v5362, %v5363
        %v5397 = vsel %vm2522, %v5361, %v5362
        %v5398 = vsel %vm2522, %v5360, %v5361
        %v5399 = vsel %vm2522, %v5359, %v5360
        %v5400 = vsel %vm2522, %v5358, %v5359
        %v5401 = vsel %vm2522, %v5357, %v5358
        %v5402 = vsel %vm2522, %v5356, %v5357
        %v5403 = vsel %vm2522, %v5355, %v5356
        %v5404 = vsel %vm2522, %v5354, %v5355
        %v5405 = vsel %vm2522, %v5353, %v5354
        %v5406 = vsel %vm2522, %v5352, %v5353
        %v5407 = vsel %vm2522, %v5351, %v5352
        %v5408 = vsel %vm2522, %v5350, %v5351
        %v5409 = vsel %vm2522, %v5349, %v5350
        %v5410 = vsel %vm2522, %v5348, %v5349
        %v5411 = vsel %vm2522, %v5347, %v5348
        %v5412 = vsel %vm2522, %v5346, %v5347
        %v5413 = vsel %vm2522, %v5345, %v5346
        %v5414 = vsel %vm2522, %v5344, %v5345
        %v5415 = vsel %vm2522, %v5343, %v5344
        %v5416 = vsel %vm2522, %v5342, %v5343
        %v5417 = vsel %vm2522, %v5341, %v5342
        %v5418 = vsel %vm2522, %v5340, %v5341
        %v5419 = vsel %vm2522, %v5339, %v5340
        %v5420 = vsel %vm2522, %v5338, %v5339
        %v5421 = vsel %vm2522, %v5337, %v5338
        %v5422 = vsel %vm2522, %v5336, %v5337
        %v5423 = vsel %vm2522, %v5335, %v5336
        %v5424 = vsel %vm2522, %v5334, %v5335
        %v5425 = vsel %vm2522, %v5333, %v5334
        %v5426 = vsel %vm2522, %v5332, %v5333
        %v5427 = vsel %vm2522, %v5379, %v5332
        %v5428 = vadd.f32 %v5284, %v5426
        %v5429 = vadd.f32 %v5285, %v5425
        %v5430 = vadd.f32 %v5286, %v5424
        %v5431 = vadd.f32 %v5287, %v5423
        %v5432 = vadd.f32 %v5288, %v5422
        %v5433 = vadd.f32 %v5289, %v5421
        %v5434 = vadd.f32 %v5290, %v5420
        %v5435 = vadd.f32 %v5291, %v5419
        %v5436 = vadd.f32 %v5292, %v5418
        %v5437 = vadd.f32 %v5293, %v5417
        %v5438 = vadd.f32 %v5294, %v5416
        %v5439 = vadd.f32 %v5295, %v5415
        %v5440 = vadd.f32 %v5296, %v5414
        %v5441 = vadd.f32 %v5297, %v5413
        %v5442 = vadd.f32 %v5298, %v5412
        %v5443 = vadd.f32 %v5299, %v5411
        %v5444 = vadd.f32 %v5300, %v5410
        %v5445 = vadd.f32 %v5301, %v5409
        %v5446 = vadd.f32 %v5302, %v5408
        %v5447 = vadd.f32 %v5303, %v5407
        %v5448 = vadd.f32 %v5304, %v5406
        %v5449 = vadd.f32 %v5305, %v5405
        %v5450 = vadd.f32 %v5306, %v5404
        %v5451 = vadd.f32 %v5307, %v5403
        %v5452 = vadd.f32 %v5308, %v5402
        %v5453 = vadd.f32 %v5309, %v5401
        %v5454 = vadd.f32 %v5310, %v5400
        %v5455 = vadd.f32 %v5311, %v5399
        %v5456 = vadd.f32 %v5312, %v5398
        %v5457 = vadd.f32 %v5313, %v5397
        %v5458 = vadd.f32 %v5314, %v5396
        %v5459 = vadd.f32 %v5315, %v5395
        %v5460 = vadd.f32 %v5316, %v5394
        %v5461 = vadd.f32 %v5317, %v5393
        %v5462 = vadd.f32 %v5318, %v5392
        %v5463 = vadd.f32 %v5319, %v5391
        %v5464 = vadd.f32 %v5320, %v5390
        %v5465 = vadd.f32 %v5321, %v5389
        %v5466 = vadd.f32 %v5322, %v5388
        %v5467 = vadd.f32 %v5323, %v5387
        %v5468 = vadd.f32 %v5324, %v5386
        %v5469 = vadd.f32 %v5325, %v5385
        %v5470 = vadd.f32 %v5326, %v5384
        %v5471 = vadd.f32 %v5327, %v5383
        %v5472 = vadd.f32 %v5328, %v5382
        %v5473 = vadd.f32 %v5329, %v5381
        %v5474 = vadd.f32 %v5330, %v5380
        %v5475 = vadd.f32 %v5331, %v5427
        %v5476 = vld [vmem:[%s4] sm:$0x1]
        %v5478 = vlaneseq
        %v5479 = vshrl.u32 %v5478, 7
        %v5480 = vsub.s32 0, %v5479
        %v5481 = vrot.slane %v5476, %v5480
        %v5483 = vadd.f32 %v5428, %v5481
        %v5484 = vadd.f32 %v5429, %v5481
        %v5485 = vadd.f32 %v5430, %v5481
        %v5486 = vadd.f32 %v5431, %v5481
        %v5487 = vadd.f32 %v5432, %v5481
        %v5488 = vadd.f32 %v5433, %v5481
        %v5489 = vadd.f32 %v5434, %v5481
        %v5490 = vadd.f32 %v5435, %v5481
        %v5491 = vadd.f32 %v5436, %v5481
        %v5492 = vadd.f32 %v5437, %v5481
        %v5493 = vadd.f32 %v5438, %v5481
        %v5494 = vadd.f32 %v5439, %v5481
        %v5495 = vadd.f32 %v5440, %v5481
        %v5496 = vadd.f32 %v5441, %v5481
        %v5497 = vadd.f32 %v5442, %v5481
        %v5498 = vadd.f32 %v5443, %v5481
        %v5499 = vadd.f32 %v5444, %v5481
        %v5500 = vadd.f32 %v5445, %v5481
        %v5501 = vadd.f32 %v5446, %v5481
        %v5502 = vadd.f32 %v5447, %v5481
        %v5503 = vadd.f32 %v5448, %v5481
        %v5504 = vadd.f32 %v5449, %v5481
        %v5505 = vadd.f32 %v5450, %v5481
        %v5506 = vadd.f32 %v5451, %v5481
        %v5507 = vadd.f32 %v5452, %v5481
        %v5508 = vadd.f32 %v5453, %v5481
        %v5509 = vadd.f32 %v5454, %v5481
        %v5510 = vadd.f32 %v5455, %v5481
        %v5511 = vadd.f32 %v5456, %v5481
        %v5512 = vadd.f32 %v5457, %v5481
        %v5513 = vadd.f32 %v5458, %v5481
        %v5514 = vadd.f32 %v5459, %v5481
        %v5515 = vadd.f32 %v5460, %v5481
        %v5516 = vadd.f32 %v5461, %v5481
        %v5517 = vadd.f32 %v5462, %v5481
        %v5518 = vadd.f32 %v5463, %v5481
        %v5519 = vadd.f32 %v5464, %v5481
        %v5520 = vadd.f32 %v5465, %v5481
        %v5521 = vadd.f32 %v5466, %v5481
        %v5522 = vadd.f32 %v5467, %v5481
        %v5523 = vadd.f32 %v5468, %v5481
        %v5524 = vadd.f32 %v5469, %v5481
        %v5525 = vadd.f32 %v5470, %v5481
        %v5526 = vadd.f32 %v5471, %v5481
        %v5527 = vadd.f32 %v5472, %v5481
        %v5528 = vadd.f32 %v5473, %v5481
        %v5529 = vadd.f32 %v5474, %v5481
        %v5530 = vadd.f32 %v5475, %v5481
        %v5531 = vadd.f32 %v5483, %v3087
        %v5532 = vadd.f32 %v5484, %v3088
        %v5533 = vadd.f32 %v5485, %v3089
        %v5534 = vadd.f32 %v5486, %v3090
        %v5535 = vadd.f32 %v5487, %v3091
        %v5536 = vadd.f32 %v5488, %v3092
        %v5537 = vadd.f32 %v5489, %v3093
        %v5538 = vadd.f32 %v5490, %v3094
        %v5539 = vadd.f32 %v5491, %v3095
        %v5540 = vadd.f32 %v5492, %v3096
        %v5541 = vadd.f32 %v5493, %v3097
        %v5542 = vadd.f32 %v5494, %v3098
        %v5543 = vadd.f32 %v5495, %v3099
        %v5544 = vadd.f32 %v5496, %v3100
        %v5545 = vadd.f32 %v5497, %v3101
        %v5546 = vadd.f32 %v5498, %v3102
        %v5547 = vadd.f32 %v5499, %v3103
        %v5548 = vadd.f32 %v5500, %v3104
        %v5549 = vadd.f32 %v5501, %v3105
        %v5550 = vadd.f32 %v5502, %v3106
        %v5551 = vadd.f32 %v5503, %v3107
        %v5552 = vadd.f32 %v5504, %v3108
        %v5553 = vadd.f32 %v5505, %v3109
        %v5554 = vadd.f32 %v5506, %v3110
        %v5555 = vadd.f32 %v5507, %v3111
        %v5556 = vadd.f32 %v5508, %v3112
        %v5557 = vadd.f32 %v5509, %v3113
        %v5558 = vadd.f32 %v5510, %v3114
        %v5559 = vadd.f32 %v5511, %v3115
        %v5560 = vadd.f32 %v5512, %v3116
        %v5561 = vadd.f32 %v5513, %v3117
        %v5562 = vadd.f32 %v5514, %v3118
        %v5563 = vadd.f32 %v5515, %v3119
        %v5564 = vadd.f32 %v5516, %v3120
        %v5565 = vadd.f32 %v5517, %v3121
        %v5566 = vadd.f32 %v5518, %v3122
        %v5567 = vadd.f32 %v5519, %v3123
        %v5568 = vadd.f32 %v5520, %v3124
        %v5569 = vadd.f32 %v5521, %v3125
        %v5570 = vadd.f32 %v5522, %v3126
        %v5571 = vadd.f32 %v5523, %v3127
        %v5572 = vadd.f32 %v5524, %v3128
        %v5573 = vadd.f32 %v5525, %v3129
        %v5574 = vadd.f32 %v5526, %v3130
        %v5575 = vadd.f32 %v5527, %v3131
        %v5576 = vadd.f32 %v5528, %v3132
        %v5577 = vadd.f32 %v5529, %v3133
        %v5578 = vadd.f32 %v5530, %v3134
        %v5579 = vmax.f32 %v5531, 0.0
        %v5580 = vmax.f32 %v5532, 0.0
        %v5581 = vmax.f32 %v5533, 0.0
        %v5582 = vmax.f32 %v5534, 0.0
        %v5583 = vmax.f32 %v5535, 0.0
        %v5584 = vmax.f32 %v5536, 0.0
        %v5585 = vmax.f32 %v5537, 0.0
        %v5586 = vmax.f32 %v5538, 0.0
        %v5587 = vmax.f32 %v5539, 0.0
        %v5588 = vmax.f32 %v5540, 0.0
        %v5589 = vmax.f32 %v5541, 0.0
        %v5590 = vmax.f32 %v5542, 0.0
        %v5591 = vmax.f32 %v5543, 0.0
        %v5592 = vmax.f32 %v5544, 0.0
        %v5593 = vmax.f32 %v5545, 0.0
        %v5594 = vmax.f32 %v5546, 0.0
        %v5595 = vmax.f32 %v5547, 0.0
        %v5596 = vmax.f32 %v5548, 0.0
        %v5597 = vmax.f32 %v5549, 0.0
        %v5598 = vmax.f32 %v5550, 0.0
        %v5599 = vmax.f32 %v5551, 0.0
        %v5600 = vmax.f32 %v5552, 0.0
        %v5601 = vmax.f32 %v5553, 0.0
        %v5602 = vmax.f32 %v5554, 0.0
        %v5603 = vmax.f32 %v5555, 0.0
        %v5604 = vmax.f32 %v5556, 0.0
        %v5605 = vmax.f32 %v5557, 0.0
        %v5606 = vmax.f32 %v5558, 0.0
        %v5607 = vmax.f32 %v5559, 0.0
        %v5608 = vmax.f32 %v5560, 0.0
        %v5609 = vmax.f32 %v5561, 0.0
        %v5610 = vmax.f32 %v5562, 0.0
        %v5611 = vmax.f32 %v5563, 0.0
        %v5612 = vmax.f32 %v5564, 0.0
        %v5613 = vmax.f32 %v5565, 0.0
        %v5614 = vmax.f32 %v5566, 0.0
        %v5615 = vmax.f32 %v5567, 0.0
        %v5616 = vmax.f32 %v5568, 0.0
        %v5617 = vmax.f32 %v5569, 0.0
        %v5618 = vmax.f32 %v5570, 0.0
        %v5619 = vmax.f32 %v5571, 0.0
        %v5620 = vmax.f32 %v5572, 0.0
        %v5621 = vmax.f32 %v5573, 0.0
        %v5622 = vmax.f32 %v5574, 0.0
        %v5623 = vmax.f32 %v5575, 0.0
        %v5624 = vmax.f32 %v5576, 0.0
        %v5625 = vmax.f32 %v5577, 0.0
        %v5626 = vmax.f32 %v5578, 0.0
        %v5627 = vpack.c.bf16 %v5580, %v5579
        %v5628 = vpack.c.bf16 %v5581, %v5581
        %v5629 = vpack.c.bf16 %v5583, %v5582
        %v5630 = vpack.c.bf16 %v5584, %v5584
        %v5631 = vpack.c.bf16 %v5586, %v5585
        %v5632 = vpack.c.bf16 %v5587, %v5587
        %v5633 = vpack.c.bf16 %v5589, %v5588
        %v5634 = vpack.c.bf16 %v5590, %v5590
        %v5635 = vpack.c.bf16 %v5592, %v5591
        %v5636 = vpack.c.bf16 %v5593, %v5593
        %v5637 = vpack.c.bf16 %v5595, %v5594
        %v5638 = vpack.c.bf16 %v5596, %v5596
        %v5639 = vpack.c.bf16 %v5598, %v5597
        %v5640 = vpack.c.bf16 %v5599, %v5599
        %v5641 = vpack.c.bf16 %v5601, %v5600
        %v5642 = vpack.c.bf16 %v5602, %v5602
        %v5643 = vpack.c.bf16 %v5604, %v5603
        %v5644 = vpack.c.bf16 %v5605, %v5605
        %v5645 = vpack.c.bf16 %v5607, %v5606
        %v5646 = vpack.c.bf16 %v5608, %v5608
        %v5647 = vpack.c.bf16 %v5610, %v5609
        %v5648 = vpack.c.bf16 %v5611, %v5611
        %v5649 = vpack.c.bf16 %v5613, %v5612
        %v5650 = vpack.c.bf16 %v5614, %v5614
        %v5651 = vpack.c.bf16 %v5616, %v5615
        %v5652 = vpack.c.bf16 %v5617, %v5617
        %v5653 = vpack.c.bf16 %v5619, %v5618
        %v5654 = vpack.c.bf16 %v5620, %v5620
        %v5655 = vpack.c.bf16 %v5622, %v5621
        %v5656 = vpack.c.bf16 %v5623, %v5623
        %v5657 = vpack.c.bf16 %v5625, %v5624
        %v5658 = vpack.c.bf16 %v5626, %v5626
        %v5691 = vunpack.c.l.b16 %v5627
        %v5692 = vunpack.c.h.b16 %v5627
        %v5693 = vunpack.c.l.b16 %v5628
        %v5694 = vunpack.c.l.b16 %v5629
        %v5695 = vunpack.c.h.b16 %v5629
        %v5696 = vunpack.c.l.b16 %v5630
        %v5697 = vunpack.c.l.b16 %v5631
        %v5698 = vunpack.c.h.b16 %v5631
        %v5699 = vunpack.c.l.b16 %v5632
        %v5700 = vunpack.c.l.b16 %v5633
        %v5701 = vunpack.c.h.b16 %v5633
        %v5702 = vunpack.c.l.b16 %v5634
        %v5703 = vunpack.c.l.b16 %v5635
        %v5704 = vunpack.c.h.b16 %v5635
        %v5705 = vunpack.c.l.b16 %v5636
        %v5706 = vunpack.c.l.b16 %v5637
        %v5707 = vunpack.c.h.b16 %v5637
        %v5708 = vunpack.c.l.b16 %v5638
        %v5709 = vunpack.c.l.b16 %v5639
        %v5710 = vunpack.c.h.b16 %v5639
        %v5711 = vunpack.c.l.b16 %v5640
        %v5712 = vunpack.c.l.b16 %v5641
        %v5713 = vunpack.c.h.b16 %v5641
        %v5714 = vunpack.c.l.b16 %v5642
        %v5715 = vunpack.c.l.b16 %v5643
        %v5716 = vunpack.c.h.b16 %v5643
        %v5717 = vunpack.c.l.b16 %v5644
        %v5718 = vunpack.c.l.b16 %v5645
        %v5719 = vunpack.c.h.b16 %v5645
        %v5720 = vunpack.c.l.b16 %v5646
        %v5721 = vunpack.c.l.b16 %v5647
        %v5722 = vunpack.c.h.b16 %v5647
        %v5723 = vunpack.c.l.b16 %v5648
        %v5724 = vunpack.c.l.b16 %v5649
        %v5725 = vunpack.c.h.b16 %v5649
        %v5726 = vunpack.c.l.b16 %v5650
        %v5727 = vunpack.c.l.b16 %v5651
        %v5728 = vunpack.c.h.b16 %v5651
        %v5729 = vunpack.c.l.b16 %v5652
        %v5730 = vunpack.c.l.b16 %v5653
        %v5731 = vunpack.c.h.b16 %v5653
        %v5732 = vunpack.c.l.b16 %v5654
        %v5733 = vunpack.c.l.b16 %v5655
        %v5734 = vunpack.c.h.b16 %v5655
        %v5735 = vunpack.c.l.b16 %v5656
        %v5736 = vunpack.c.l.b16 %v5657
        %v5737 = vunpack.c.h.b16 %v5657
        %v5738 = vunpack.c.l.b16 %v5658
        %v5739 = vpack.c.b16 %v5691, %v5691
        %v5740 = vpack.c.b16 %v5692, %v5692
        %v5741 = vpack.c.b16 %v5693, %v5693
        %v5742 = vpack.c.b16 %v5694, %v5694
        %v5743 = vpack.c.b16 %v5695, %v5695
        %v5744 = vpack.c.b16 %v5696, %v5696
        %v5745 = vpack.c.b16 %v5697, %v5697
        %v5746 = vpack.c.b16 %v5698, %v5698
        %v5747 = vpack.c.b16 %v5699, %v5699
        %v5748 = vpack.c.b16 %v5700, %v5700
        %v5749 = vpack.c.b16 %v5701, %v5701
        %v5750 = vpack.c.b16 %v5702, %v5702
        %v5751 = vpack.c.b16 %v5703, %v5703
        %v5752 = vpack.c.b16 %v5704, %v5704
        %v5753 = vpack.c.b16 %v5705, %v5705
        %v5754 = vpack.c.b16 %v5706, %v5706
        %v5755 = vpack.c.b16 %v5707, %v5707
        %v5756 = vpack.c.b16 %v5708, %v5708
        %v5757 = vpack.c.b16 %v5709, %v5709
        %v5758 = vpack.c.b16 %v5710, %v5710
        %v5759 = vpack.c.b16 %v5711, %v5711
        %v5760 = vpack.c.b16 %v5712, %v5712
        %v5761 = vpack.c.b16 %v5713, %v5713
        %v5762 = vpack.c.b16 %v5714, %v5714
        %v5763 = vpack.c.b16 %v5715, %v5715
        %v5764 = vpack.c.b16 %v5716, %v5716
        %v5765 = vpack.c.b16 %v5717, %v5717
        %v5766 = vpack.c.b16 %v5718, %v5718
        %v5767 = vpack.c.b16 %v5719, %v5719
        %v5768 = vpack.c.b16 %v5720, %v5720
        %v5769 = vpack.c.b16 %v5721, %v5721
        %v5770 = vpack.c.b16 %v5722, %v5722
        %v5771 = vpack.c.b16 %v5723, %v5723
        %v5772 = vpack.c.b16 %v5724, %v5724
        %v5773 = vpack.c.b16 %v5725, %v5725
        %v5774 = vpack.c.b16 %v5726, %v5726
        %v5775 = vpack.c.b16 %v5727, %v5727
        %v5776 = vpack.c.b16 %v5728, %v5728
        %v5777 = vpack.c.b16 %v5729, %v5729
        %v5778 = vpack.c.b16 %v5730, %v5730
        %v5779 = vpack.c.b16 %v5731, %v5731
        %v5780 = vpack.c.b16 %v5732, %v5732
        %v5781 = vpack.c.b16 %v5733, %v5733
        %v5782 = vpack.c.b16 %v5734, %v5734
        %v5783 = vpack.c.b16 %v5735, %v5735
        %v5784 = vpack.c.b16 %v5736, %v5736
        %v5785 = vpack.c.b16 %v5737, %v5737
        %v5786 = vpack.c.b16 %v5738, %v5738
        %5835 = vst [vmem:[%s271] sm:$0xf] %v5739
        %5836 = vst [vmem:[%s271 + $0x4] sm:$0xf] %v5740
        %5837 = vst [vmem:[%s271 + $0x8] sm:$0xf] %v5741
        %5838 = vst [vmem:[%s271 + $0xc] sm:$0xf] %v5742
        %5839 = vst [vmem:[%s271 + $0x10] sm:$0xf] %v5743
        %5840 = vst [vmem:[%s271 + $0x14] sm:$0xf] %v5744
        %5841 = vst [vmem:[%s271 + $0x18] sm:$0xf] %v5745
        %5842 = vst [vmem:[%s271 + $0x1c] sm:$0xf] %v5746
        %5843 = vst [vmem:[%s271 + $0x20] sm:$0xf] %v5747
        %5844 = vst [vmem:[%s271 + $0x24] sm:$0xf] %v5748
        %5845 = vst [vmem:[%s271 + $0x28] sm:$0xf] %v5749
        %5846 = vst [vmem:[%s271 + $0x2c] sm:$0xf] %v5750
        %5847 = vst [vmem:[%s271 + $0x30] sm:$0xf] %v5751
        %5848 = vst [vmem:[%s271 + $0x34] sm:$0xf] %v5752
        %5849 = vst [vmem:[%s271 + $0x38] sm:$0xf] %v5753
        %5850 = vst [vmem:[%s271 + $0x3c] sm:$0xf] %v5754
        %5851 = vst [vmem:[%s271 + $0x40] sm:$0xf] %v5755
        %5852 = vst [vmem:[%s271 + $0x44] sm:$0xf] %v5756
        %5853 = vst [vmem:[%s271 + $0x48] sm:$0xf] %v5757
        %5854 = vst [vmem:[%s271 + $0x4c] sm:$0xf] %v5758
        %5855 = vst [vmem:[%s271 + $0x50] sm:$0xf] %v5759
        %5856 = vst [vmem:[%s271 + $0x54] sm:$0xf] %v5760
        %5857 = vst [vmem:[%s271 + $0x58] sm:$0xf] %v5761
        %5858 = vst [vmem:[%s271 + $0x5c] sm:$0xf] %v5762
        %5859 = vst [vmem:[%s271 + $0x60] sm:$0xf] %v5763
        %5860 = vst [vmem:[%s271 + $0x64] sm:$0xf] %v5764
        %5861 = vst [vmem:[%s271 + $0x68] sm:$0xf] %v5765
        %5862 = vst [vmem:[%s271 + $0x6c] sm:$0xf] %v5766
        %5863 = vst [vmem:[%s271 + $0x70] sm:$0xf] %v5767
        %5864 = vst [vmem:[%s271 + $0x74] sm:$0xf] %v5768
        %5865 = vst [vmem:[%s271 + $0x78] sm:$0xf] %v5769
        %5866 = vst [vmem:[%s271 + $0x7c] sm:$0xf] %v5770
        %5867 = vst [vmem:[%s271 + $0x80] sm:$0xf] %v5771
        %5868 = vst [vmem:[%s271 + $0x84] sm:$0xf] %v5772
        %5869 = vst [vmem:[%s271 + $0x88] sm:$0xf] %v5773
        %5870 = vst [vmem:[%s271 + $0x8c] sm:$0xf] %v5774
        %5871 = vst [vmem:[%s271 + $0x90] sm:$0xf] %v5775
        %5872 = vst [vmem:[%s271 + $0x94] sm:$0xf] %v5776
        %5873 = vst [vmem:[%s271 + $0x98] sm:$0xf] %v5777
        %5874 = vst [vmem:[%s271 + $0x9c] sm:$0xf] %v5778
        %5875 = vst [vmem:[%s271 + $0xa0] sm:$0xf] %v5779
        %5876 = vst [vmem:[%s271 + $0xa4] sm:$0xf] %v5780
        %5877 = vst [vmem:[%s271 + $0xa8] sm:$0xf] %v5781
        %5878 = vst [vmem:[%s271 + $0xac] sm:$0xf] %v5782
        %5879 = vst [vmem:[%s271 + $0xb0] sm:$0xf] %v5783
        %5880 = vst [vmem:[%s271 + $0xb4] sm:$0xf] %v5784
        %5881 = vst [vmem:[%s271 + $0xb8] sm:$0xf] %v5785
        %5882 = vst [vmem:[%s271 + $0xbc] sm:$0xf] %v5786
        %s5883 = sand.u32 %s141, 1
        %s5884 = scalar_lea.sflag [#allocation5], %s5883
        %s5885 = sand.u32 %s141, 1
        %s5886 = smul.addr %s5885, 192
        %s5887 = scalar_lea.vmem [#allocation9], %s5886
        // Predicated region
        $region53: #{tpu_custom_call.1} parent=39 // pred_check
          %p5888 = pneg %p151
        $region54: #{tpu_custom_call.1} parent=39 // pred_check_branch
          %5890 = sbr.rel (%p5888) target = $region56
        $region55: #{tpu_custom_call.1} parent=39 // pred_region
          %s5892 = ssub.s32 3072, 3072
          %5893 = vsyncadd %s5884, %s5892
          %s5894 = smul.addr %s23, 48
          %s5895 = smul.addr %s5894, 64
          %s5896 = scalar_lea.hbm %s5, %s5895
          %s5897 = sshll.u32 %s5887, 4
          %s5898 = int_to_ptr.vmem [resolvable:$true] %s5897
          %5903 = dma.vmem_to_hbm [thread:$0]  %s5898, 3072, %s5896, %s5884, 64, 64, 4
        $region56: #{tpu_custom_call.1} parent=39 // pred_fallthru
          _
      $region40: #{tpu_custom_call.1} parent=5 // pred_fallthru
        _
      %p5904 = scmp.le.s32.totalorder 2, %s18
      // Predicated region
      $region57: #{tpu_custom_call.1} parent=5 // pred_check
        %p5905 = pneg %p5904
      $region58: #{tpu_custom_call.1} parent=5 // pred_check_branch
        %5907 = sbr.rel (%p5905) target = $region60
      $region59: #{tpu_custom_call.1} parent=5 // pred_region
        %s5908 = ssub.s32 %s18, 2
        // Predicated region
        $region61: #{tpu_custom_call.1} parent=59 // pred_check
          %p5909 = pneg %p157
        $region62: #{tpu_custom_call.1} parent=59 // pred_check_branch
          %5911 = sbr.rel (%p5909) target = $region64
        $region63: #{tpu_custom_call.1} parent=59 // pred_region
          %s5912 = sand.u32 %s142, 1
          %s5913 = scalar_lea.sflag [#allocation5], %s5912
          %s5914 = sand.u32 %s142, 1
          %s5915 = smul.addr %s5914, 192
          %s5916 = scalar_lea.vmem [#allocation9], %s5915
          %5917 = dma.done %s5913, 3072
        $region64: #{tpu_custom_call.1} parent=59 // pred_fallthru
          _
      $region60: #{tpu_custom_call.1} parent=5 // pred_fallthru
        _
    $region6: #{tpu_custom_call.1} parent=1 // loop_footer
      %s22 = sadd.s32 1, %s18
    $region7: #{tpu_custom_call.1} parent=1 // loop_footer_branch
      %17 = sbr.rel target = $region3
    $region8: #{tpu_custom_call.1} parent=1 // loop_exit
      _
    %5918 = vsyncpa [#allocation4], 1
    %s5919 = scalar_lea.sflag [#allocation4], 1
    %5920 = vsyncpa %s5919, 1
    %5921 = vsyncpa [#allocation7], 1
    %5922 = vsyncpa [#allocation5], 1
    %s5923 = scalar_lea.sflag [#allocation5], 1
    %5924 = vsyncpa %s5923, 1

</llo_original>
